<compile_context>
chip_gen: v6e
topology: v6e:2x2x1
jax: 0.10.0
libtpu: 0.0.40
codegen_flags: <defaults>
</compile_context>

<pallas_src>
import functools
import math

import jax
import jax.numpy as jnp
from jax.experimental import pallas as pl
from jax.experimental.pallas import tpu as pltpu

LN_EPS = 1e-5                      # PyTorch nn.LayerNorm default


def _default_vmem_limit():
    # 48 MiB is safe everywhere (v7x has only 64 MiB physical VMEM);
    # v5e / v6e have 128 MiB, so use more of it there.
    try:
        kind = jax.devices()[0].device_kind.lower()
    except Exception:
        return 48 * 1024 * 1024
    if any(t in kind for t in ("v5 lite", "v5e", "v5litepod", "v6 lite", "v6e")):
        return 96 * 1024 * 1024
    return 48 * 1024 * 1024


VMEM_LIMIT = _default_vmem_limit()

# Single-buffer the resident weight operands (constant index maps -> double
# buffering only doubles VMEM).  Flipped off by the fallback path in __main__
# if this Pallas version rejects pipeline_mode=pl.Buffered(1).
_SINGLE_BUFFER_WEIGHTS = True


def _weight_spec(shape):
    n = len(shape)
    idx = lambda *_, _n=n: (0,) * _n
    if _SINGLE_BUFFER_WEIGHTS:
        try:
            return pl.BlockSpec(shape, idx, pipeline_mode=pl.Buffered(1))
        except Exception:
            pass
    return pl.BlockSpec(shape, idx)


def _default_q_tile(s):
    big = 512 if VMEM_LIMIT >= 96 * 1024 * 1024 else 256
    return min(s, big)


# --------------------------------------------------------------------------
# In-kernel helpers
# --------------------------------------------------------------------------
def _layer_norm(x, g, b):
    mu = jnp.mean(x, axis=-1, keepdims=True)
    var = jnp.mean((x - mu) ** 2, axis=-1, keepdims=True)
    return (x - mu) * jax.lax.rsqrt(var + LN_EPS) * g + b


# --------------------------------------------------------------------------
# Pallas kernels
# --------------------------------------------------------------------------
def encoder_layer_kernel(x_ref,
                         wq_ref, bq_ref, wkv_ref, bkv_ref,
                         wo_ref, bo_ref, w1_ref, b1_ref, w2_ref, b2_ref,
                         g1_ref, be1_ref, g2_ref, be2_ref,
                         o_ref, k_scr, v_scr,
                         *, n_heads, d_k, q_tile, scale):
    d = n_heads * d_k
    qi = pl.program_id(1)

    # ---- K/V: full-width (S,D)@(D,2D) projection, once per batch element, ----
    # ---- stored head-major bf16 in VMEM scratch and reused by all q tiles. ----
    @pl.when(qi == 0)
    def _():
        xs16 = x_ref[0].astype(jnp.bfloat16)                           # (S, D)
        kv = jnp.dot(xs16, wkv_ref[...],
                     preferred_element_type=jnp.float32) + bkv_ref[...]  # (S, 2D)
        for h in range(n_heads):
            k_scr[h] = kv[:, h * d_k:(h + 1) * d_k].astype(jnp.bfloat16)
            v_scr[h] = kv[:, d + h * d_k:d + (h + 1) * d_k].astype(jnp.bfloat16)

    # ---- Q rows for this tile (sliced in-kernel from the resident block) ----
    q0 = pl.multiple_of(qi * q_tile, q_tile)
    xq = x_ref[0, pl.ds(q0, q_tile), :]                                # (TQ, D) f32
    q = jnp.dot(xq.astype(jnp.bfloat16), wq_ref[...],
                preferred_element_type=jnp.float32) + bq_ref[...]      # (TQ, D)

    # ---- per-head scaled dot-product attention (plain 2-D matmuls) ----
    ctx_parts = []
    for h in range(n_heads):
        qh = q[:, h * d_k:(h + 1) * d_k].astype(jnp.bfloat16)          # (TQ, dk)
        sc = jax.lax.dot_general(qh, k_scr[h], (((1,), (1,)), ((), ())),
                                 preferred_element_type=jnp.float32) * scale
        sc = sc - jnp.max(sc, axis=-1, keepdims=True)
        p = jnp.exp(sc)
        p = p * pl.reciprocal(jnp.sum(p, axis=-1, keepdims=True), approx=True)
        ctx_parts.append(jnp.dot(p.astype(jnp.bfloat16), v_scr[h],
                                 preferred_element_type=jnp.float32))  # (TQ, dk)
    ctx = jnp.concatenate(ctx_parts, axis=-1)                          # (TQ, D)

    # ---- output projection (single full-width matmul) + residual + LN1 ----
    attn = jnp.dot(ctx.astype(jnp.bfloat16), wo_ref[...],
                   preferred_element_type=jnp.float32) + bo_ref[...]
    h1 = _layer_norm(xq + attn, g1_ref[...], be1_ref[...])

    # ---- position-wise feed-forward + residual + LN2 ----
    ff = jnp.dot(h1.astype(jnp.bfloat16), w1_ref[...],
                 preferred_element_type=jnp.float32) + b1_ref[...]
    ff = jnp.maximum(ff, 0.0)
    ff = jnp.dot(ff.astype(jnp.bfloat16), w2_ref[...],
                 preferred_element_type=jnp.float32) + b2_ref[...]
    o_ref[0] = _layer_norm(h1 + ff, g2_ref[...], be2_ref[...])


def mlm_pre_kernel(x_ref, gf_ref, bf_ref, w1_ref, b1_ref, mg_ref, mbeta_ref, o_ref):
    # final encoder LayerNorm + MLM linear1 + GELU + MLM-head LayerNorm, fused.
    x = x_ref[0]                                                       # (TQ, D) f32
    y = _layer_norm(x, gf_ref[...], bf_ref[...])
    h = jnp.dot(y.astype(jnp.bfloat16), w1_ref[...],
                preferred_element_type=jnp.float32) + b1_ref[...]
    h = jax.nn.gelu(h, approximate=True)       # TODO(synk): exact erf-GELU
    # Emitted in bf16: g is only ever a matmul LHS (halves the HBM round trip).
    o_ref[0] = _layer_norm(h, mg_ref[...], mbeta_ref[...]).astype(o_ref.dtype)


def mlm_post_kernel(g_ref, w2_ref, b2_ref, o_ref):
    # vocab projection; g and w2 arrive bf16, accumulate + store f32.
    o_ref[0] = jnp.dot(g_ref[0], w2_ref[...],
                       preferred_element_type=jnp.float32) + b2_ref[...]


# --------------------------------------------------------------------------
# pallas_call wrappers
# --------------------------------------------------------------------------
def run_encoder_layer(x, p, n_heads, *, q_tile=None):
    b, s, d = x.shape
    d_k = d // n_heads
    tq = q_tile if q_tile is not None else _default_q_tile(s)
    assert s % tq == 0, "seq_len must be divisible by the q tile"
    nq = s // tq
    weights = [p["wq"], p["bq"], p["wkv"], p["bkv"], p["wo"], p["bo"],
               p["w1"], p["b1"], p["w2"], p["b2"],
               p["g1"], p["be1"], p["g2"], p["be2"]]
    kernel = functools.partial(encoder_layer_kernel, n_heads=n_heads, d_k=d_k,
                               q_tile=tq, scale=1.0 / math.sqrt(d_k))
    return pl.pallas_call(
        kernel,
        out_shape=jax.ShapeDtypeStruct((b, s, d), jnp.float32),
        grid=(b, nq),
        in_specs=[pl.BlockSpec((1, s, d), lambda bi, qi: (bi, 0, 0))]   # full seq
                 + [_weight_spec(w.shape) for w in weights],
        out_specs=pl.BlockSpec((1, tq, d), lambda bi, qi: (bi, qi, 0)),
        scratch_shapes=[pltpu.VMEM((n_heads, s, d_k), jnp.bfloat16),    # K
                        pltpu.VMEM((n_heads, s, d_k), jnp.bfloat16)],   # V
        compiler_params=pltpu.CompilerParams(
            dimension_semantics=("parallel", "arbitrary"),
            vmem_limit_bytes=VMEM_LIMIT),
    )(x, *weights)


def run_mlm_pre(x, params, *, q_tile=None):
    b, s, d = x.shape
    tq = q_tile if q_tile is not None else _default_q_tile(s)
    assert s % tq == 0
    nq = s // tq
    weights = [params["gf"], params["bf"], params["mw1"], params["mb1"],
               params["mg"], params["mbeta"]]
    return pl.pallas_call(
        mlm_pre_kernel,
        out_shape=jax.ShapeDtypeStruct((b, s, d), jnp.bfloat16),
        grid=(b, nq),
        in_specs=[pl.BlockSpec((1, tq, d), lambda bi, qi: (bi, qi, 0))]
                 + [_weight_spec(w.shape) for w in weights],
        out_specs=pl.BlockSpec((1, tq, d), lambda bi, qi: (bi, qi, 0)),
        compiler_params=pltpu.CompilerParams(
            dimension_semantics=("parallel", "parallel"),
            vmem_limit_bytes=VMEM_LIMIT),
    )(x, *weights)


def run_mlm_post(g, params, *, q_tile=None, vocab_tile=None):
    b, s, d = g.shape
    vocab = params["mw2"].shape[1]
    tq = q_tile if q_tile is not None else _default_q_tile(s)
    tn = vocab_tile if vocab_tile is not None else min(vocab, 1024)
    assert s % tq == 0 and vocab % tn == 0
    nq, nv = s // tq, vocab // tn
    # Grid ordered (batch, vocab_tile, q_tile): q innermost so the (d, tn) w2
    # tile stays VMEM-resident across all q tiles (w2 HBM traffic divided by nq).
    return pl.pallas_call(
        mlm_post_kernel,
        out_shape=jax.ShapeDtypeStruct((b, s, vocab), jnp.float32),
        grid=(b, nv, nq),
        in_specs=[pl.BlockSpec((1, tq, d), lambda bi, vi, qi: (bi, qi, 0)),
                  pl.BlockSpec((d, tn), lambda bi, vi, qi: (0, vi)),
                  pl.BlockSpec((1, tn), lambda bi, vi, qi: (0, vi))],
        out_specs=pl.BlockSpec((1, tq, tn), lambda bi, vi, qi: (bi, qi, vi)),
        compiler_params=pltpu.CompilerParams(
            dimension_semantics=("parallel", "parallel", "arbitrary"),
            vmem_limit_bytes=VMEM_LIMIT),
    )(g, params["mw2"], params["mb2"])


# --------------------------------------------------------------------------
# Parameters (deterministic, BERT-style init: N(0, 0.02), zero bias, LN=1/0)
# Canonical params are f32, "PyTorch-like" layout (W as (in, out), bias (1, out)).
# --------------------------------------------------------------------------
def init_params(key, vocab, d_model, n_layers, d_ff, max_seq_len):
    keys = iter(jax.random.split(key, 8 + 8 * n_layers))

    def lin(fi, fo):
        w = jax.random.normal(next(keys), (fi, fo), jnp.float32) * 0.02
        b = jnp.zeros((1, fo), jnp.float32)
        return w, b

    ones = lambda f: jnp.ones((1, f), jnp.float32)
    zeros = lambda f: jnp.zeros((1, f), jnp.float32)

    emb = jax.random.normal(next(keys), (vocab, d_model), jnp.float32) * 0.02

    layers = []
    for _ in range(n_layers):
        wq, bq = lin(d_model, d_model)
        wk, bk = lin(d_model, d_model)
        wv, bv = lin(d_model, d_model)
        wo, bo = lin(d_model, d_model)
        w1, b1 = lin(d_model, d_ff)
        w2, b2 = lin(d_ff, d_model)
        layers.append(dict(wq=wq, bq=bq, wk=wk, bk=bk, wv=wv, bv=bv, wo=wo, bo=bo,
                           w1=w1, b1=b1, w2=w2, b2=b2,
                           g1=ones(d_model), be1=zeros(d_model),
                           g2=ones(d_model), be2=zeros(d_model)))

    mw1, mb1 = lin(d_model, d_model)
    mw2, mb2 = lin(d_model, vocab)

    # Sinusoidal positional encoding (same construction as the PyTorch buffer).
    position = jnp.arange(max_seq_len, dtype=jnp.float32)[:, None]
    div_term = jnp.exp(jnp.arange(0, d_model, 2, dtype=jnp.float32)
                       * (-math.log(10000.0) / d_model))
    pe = jnp.zeros((max_seq_len, d_model), jnp.float32)
    pe = pe.at[:, 0::2].set(jnp.sin(position * div_term))
    pe = pe.at[:, 1::2].set(jnp.cos(position * div_term))

    return dict(emb=emb, pe=pe, layers=layers,
                gf=ones(d_model), bf=zeros(d_model),
                mw1=mw1, mb1=mb1, mg=ones(d_model), mbeta=zeros(d_model),
                mw2=mw2, mb2=mb2)


def prepare_kernel_params(params, n_heads):
    """bf16 matmul-weight re-layout for the kernels (K and V fused to (D, 2D))."""
    del n_heads  # head split happens in-kernel via static lane slices
    layers = []
    for p in params["layers"]:
        layers.append(dict(
            wq=p["wq"].astype(jnp.bfloat16), bq=p["bq"],
            wkv=jnp.concatenate([p["wk"], p["wv"]], axis=1).astype(jnp.bfloat16),
            bkv=jnp.concatenate([p["bk"], p["bv"]], axis=1),
            wo=p["wo"].astype(jnp.bfloat16), bo=p["bo"],
            w1=p["w1"].astype(jnp.bfloat16), b1=p["b1"],
            w2=p["w2"].astype(jnp.bfloat16), b2=p["b2"],
            g1=p["g1"], be1=p["be1"], g2=p["g2"], be2=p["be2"]))
    return dict(emb=params["emb"], pe=params["pe"], layers=layers,
                gf=params["gf"], bf=params["bf"],
                mw1=params["mw1"].astype(jnp.bfloat16), mb1=params["mb1"],
                mg=params["mg"], mbeta=params["mbeta"],
                mw2=params["mw2"].astype(jnp.bfloat16), mb2=params["mb2"])


# --------------------------------------------------------------------------
# Forward pass (Pallas) and pure-JAX f32 reference
# --------------------------------------------------------------------------
def transformer_mlm_forward(input_ids, kparams, n_heads):
    d_model = kparams["emb"].shape[1]
    seq = input_ids.shape[1]
    x = kparams["emb"][input_ids] * math.sqrt(d_model)      # embedding gather (glue)
    x = x + kparams["pe"][None, :seq, :]                    # positional encoding
    for lp in kparams["layers"]:
        x = run_encoder_layer(x, lp, n_heads)
    g = run_mlm_pre(x, kparams)                             # LN + linear1 + GELU + LN (bf16)
    return run_mlm_post(g, kparams)                         # vocab projection (f32 logits)


def reference_forward(input_ids, params, n_heads):
    def ln(x, g, b):
        mu = x.mean(-1, keepdims=True)
        var = ((x - mu) ** 2).mean(-1, keepdims=True)
        return (x - mu) / jnp.sqrt(var + LN_EPS) * g + b

    d_model = params["emb"].shape[1]
    d_k = d_model // n_heads
    x = params["emb"][input_ids] * math.sqrt(d_model)
    x = x + params["pe"][None, :input_ids.shape[1], :]
    bsz, s, d = x.shape
    for p in params["layers"]:
        q = (x @ p["wq"] + p["bq"]).reshape(bsz, s, n_heads, d_k).transpose(0, 2, 1, 3)
        k = (x @ p["wk"] + p["bk"]).reshape(bsz, s, n_heads, d_k).transpose(0, 2, 1, 3)
        v = (x @ p["wv"] + p["bv"]).reshape(bsz, s, n_heads, d_k).transpose(0, 2, 1, 3)
        sc = jnp.einsum("bhqd,bhkd->bhqk", q, k) / math.sqrt(d_k)
        a = jax.nn.softmax(sc, axis=-1)
        ctx = jnp.einsum("bhqk,bhkd->bhqd", a, v).transpose(0, 2, 1, 3).reshape(bsz, s, d)
        attn_out = ctx @ p["wo"] + p["bo"]
        x = ln(x + attn_out, p["g1"], p["be1"])
        ff = jnp.maximum(x @ p["w1"] + p["b1"], 0.0) @ p["w2"] + p["b2"]
        x = ln(x + ff, p["g2"], p["be2"])
    x = ln(x, params["gf"], params["bf"])
    h = jax.nn.gelu(x @ params["mw1"] + params["mb1"], approximate=False)
    h = ln(h, params["mg"], params["mbeta"])
    return h @ params["mw2"] + params["mb2"]


# --------------------------------------------------------------------------
if __name__ == "__main__":
    VOCAB, D_MODEL, N_HEADS, N_LAYERS = 64, 32, 4, 2
    D_FF = D_MODEL * 4
    BATCH, SEQ, MAX_SEQ = 2, 8, 16

    key = jax.random.PRNGKey(0)
    pkey, ikey = jax.random.split(key)
    params = init_params(pkey, VOCAB, D_MODEL, N_LAYERS, D_FF, MAX_SEQ)
    kparams = prepare_kernel_params(params, N_HEADS)
    input_ids = jax.random.randint(ikey, (BATCH, SEQ), 0, VOCAB)

    try:
        logits = jax.block_until_ready(
            transformer_mlm_forward(input_ids, kparams, N_HEADS))
    except Exception:
        # Fallback: disable single-buffered weight operands if this Pallas
        # version rejects pipeline_mode=pl.Buffered(1), and retry.
        _SINGLE_BUFFER_WEIGHTS = False
        logits = jax.block_until_ready(
            transformer_mlm_forward(input_ids, kparams, N_HEADS))

    assert logits.shape == (BATCH, SEQ, VOCAB)
    assert bool(jnp.all(jnp.isfinite(logits)))

    ref = reference_forward(input_ids, params, N_HEADS)
    if not jnp.allclose(logits, ref, atol=5e-2, rtol=5e-2):
        raise AssertionError("Pallas output does not match pure-JAX reference")

    print("KERNEL_OK")
</pallas_src>

<mosaic_0001>
module attributes {stable_mosaic.version = 11 : i64} {
  func.func @encoder_layer_kernel(%arg0: i32, %arg1: i32, %arg2: memref<1x8x32xf32, #tpu.memory_space<vmem>>, %arg3: memref<32x32xbf16, #tpu.memory_space<vmem>>, %arg4: memref<1x32xf32, #tpu.memory_space<vmem>>, %arg5: memref<32x64xbf16, #tpu.memory_space<vmem>>, %arg6: memref<1x64xf32, #tpu.memory_space<vmem>>, %arg7: memref<32x32xbf16, #tpu.memory_space<vmem>>, %arg8: memref<1x32xf32, #tpu.memory_space<vmem>>, %arg9: memref<32x128xbf16, #tpu.memory_space<vmem>>, %arg10: memref<1x128xf32, #tpu.memory_space<vmem>>, %arg11: memref<128x32xbf16, #tpu.memory_space<vmem>>, %arg12: memref<1x32xf32, #tpu.memory_space<vmem>>, %arg13: memref<1x32xf32, #tpu.memory_space<vmem>>, %arg14: memref<1x32xf32, #tpu.memory_space<vmem>>, %arg15: memref<1x32xf32, #tpu.memory_space<vmem>>, %arg16: memref<1x32xf32, #tpu.memory_space<vmem>>, %arg17: memref<1x8x32xf32, #tpu.memory_space<vmem>>, %arg18: memref<4x8x8xbf16, #tpu.memory_space<vmem>>, %arg19: memref<4x8x8xbf16, #tpu.memory_space<vmem>>) attributes {dimension_semantics = [#tpu.dimension_semantics<parallel>, #tpu.dimension_semantics<arbitrary>], iteration_bounds = array<i64: 2, 1>, scalar_prefetch = 0 : i64, scratch_operands = 2 : i64, tpu.core_type = #tpu.core_type<tc>, window_params = [{transform_indices = @transform_0, window_bounds = array<i64: 1, 8, 32>}, {pipeline_mode = #tpu.pipeline_mode<synchronous>, transform_indices = @transform_1, window_bounds = array<i64: 32, 32>}, {pipeline_mode = #tpu.pipeline_mode<synchronous>, transform_indices = @transform_2, window_bounds = array<i64: 1, 32>}, {pipeline_mode = #tpu.pipeline_mode<synchronous>, transform_indices = @transform_3, window_bounds = array<i64: 32, 64>}, {pipeline_mode = #tpu.pipeline_mode<synchronous>, transform_indices = @transform_4, window_bounds = array<i64: 1, 64>}, {pipeline_mode = #tpu.pipeline_mode<synchronous>, transform_indices = @transform_5, window_bounds = array<i64: 32, 32>}, {pipeline_mode = #tpu.pipeline_mode<synchronous>, transform_indices = @transform_6, window_bounds = array<i64: 1, 32>}, {pipeline_mode = #tpu.pipeline_mode<synchronous>, transform_indices = @transform_7, window_bounds = array<i64: 32, 128>}, {pipeline_mode = #tpu.pipeline_mode<synchronous>, transform_indices = @transform_8, window_bounds = array<i64: 1, 128>}, {pipeline_mode = #tpu.pipeline_mode<synchronous>, transform_indices = @transform_9, window_bounds = array<i64: 128, 32>}, {pipeline_mode = #tpu.pipeline_mode<synchronous>, transform_indices = @transform_10, window_bounds = array<i64: 1, 32>}, {pipeline_mode = #tpu.pipeline_mode<synchronous>, transform_indices = @transform_11, window_bounds = array<i64: 1, 32>}, {pipeline_mode = #tpu.pipeline_mode<synchronous>, transform_indices = @transform_12, window_bounds = array<i64: 1, 32>}, {pipeline_mode = #tpu.pipeline_mode<synchronous>, transform_indices = @transform_13, window_bounds = array<i64: 1, 32>}, {pipeline_mode = #tpu.pipeline_mode<synchronous>, transform_indices = @transform_14, window_bounds = array<i64: 1, 32>}, {transform_indices = @transform_15, window_bounds = array<i64: 1, 8, 32>}]} {
    %c0_i32 = arith.constant 0 : i32
    %0 = arith.cmpi eq, %arg1, %c0_i32 : i32
    %1 = arith.extui %0 : i1 to i32
    %c0_i32_0 = arith.constant 0 : i32
    %2 = arith.cmpi ne, %1, %c0_i32_0 : i32
    scf.if %2 {
      %c0_84 = arith.constant 0 : index
      %c0_85 = arith.constant 0 : index
      %c0_86 = arith.constant 0 : index
      %172 = vector.load %arg2[%c0_84, %c0_85, %c0_86] : memref<1x8x32xf32, #tpu.memory_space<vmem>>, vector<1x8x32xf32>
      %173 = vector.shape_cast %172 : vector<1x8x32xf32> to vector<8x32xf32>
      %174 = arith.truncf %173 : vector<8x32xf32> to vector<8x32xbf16>
      %c0_87 = arith.constant 0 : index
      %c0_88 = arith.constant 0 : index
      %175 = vector.load %arg5[%c0_87, %c0_88] : memref<32x64xbf16, #tpu.memory_space<vmem>>, vector<32x64xbf16>
      %cst_89 = arith.constant dense<0.000000e+00> : vector<8x64xf32>
      %176 = tpu.matmul %174, %175, %cst_89 {dimension_numbers = #tpu.dot_dimension_numbers<[1], [0], [0], [1], [0, 0, 1, 1], [], []>} : vector<8x32xbf16>, vector<32x64xbf16>, vector<8x64xf32> -> vector<8x64xf32>
      %c0_90 = arith.constant 0 : index
      %c0_91 = arith.constant 0 : index
      %177 = vector.load %arg6[%c0_90, %c0_91] : memref<1x64xf32, #tpu.memory_space<vmem>>, vector<1x64xf32>
      %178 = vector.broadcast %177 : vector<1x64xf32> to vector<8x64xf32>
      %179 = arith.addf %176, %178 : vector<8x64xf32>
      %180 = vector.extract_strided_slice %179 {offsets = [0, 0], sizes = [8, 8], strides = [1, 1]} : vector<8x64xf32> to vector<8x8xf32>
      %181 = arith.truncf %180 : vector<8x8xf32> to vector<8x8xbf16>
      %c0_92 = arith.constant 0 : index
      %c0_93 = arith.constant 0 : index
      %c0_94 = arith.constant 0 : index
      %182 = vector.load %arg18[%c0_92, %c0_93, %c0_94] : memref<4x8x8xbf16, #tpu.memory_space<vmem>>, vector<1x8x8xbf16>
      %183 = vector.shape_cast %182 : vector<1x8x8xbf16> to vector<8x8xbf16>
      %184 = vector.shape_cast %181 : vector<8x8xbf16> to vector<1x8x8xbf16>
      tpu.vector_store %arg18[%c0_92, %c0_93, %c0_94], %184 {strides = array<i32>} : memref<4x8x8xbf16, #tpu.memory_space<vmem>>, vector<1x8x8xbf16>,
      %185 = vector.extract_strided_slice %179 {offsets = [0, 32], sizes = [8, 8], strides = [1, 1]} : vector<8x64xf32> to vector<8x8xf32>
      %186 = arith.truncf %185 : vector<8x8xf32> to vector<8x8xbf16>
      %c0_95 = arith.constant 0 : index
      %c0_96 = arith.constant 0 : index
      %c0_97 = arith.constant 0 : index
      %187 = vector.load %arg19[%c0_95, %c0_96, %c0_97] : memref<4x8x8xbf16, #tpu.memory_space<vmem>>, vector<1x8x8xbf16>
      %188 = vector.shape_cast %187 : vector<1x8x8xbf16> to vector<8x8xbf16>
      %189 = vector.shape_cast %186 : vector<8x8xbf16> to vector<1x8x8xbf16>
      tpu.vector_store %arg19[%c0_95, %c0_96, %c0_97], %189 {strides = array<i32>} : memref<4x8x8xbf16, #tpu.memory_space<vmem>>, vector<1x8x8xbf16>,
      %190 = vector.extract_strided_slice %179 {offsets = [0, 8], sizes = [8, 8], strides = [1, 1]} : vector<8x64xf32> to vector<8x8xf32>
      %191 = arith.truncf %190 : vector<8x8xf32> to vector<8x8xbf16>
      %c1_98 = arith.constant 1 : index
      %c0_99 = arith.constant 0 : index
      %c0_100 = arith.constant 0 : index
      %192 = vector.load %arg18[%c1_98, %c0_99, %c0_100] : memref<4x8x8xbf16, #tpu.memory_space<vmem>>, vector<1x8x8xbf16>
      %193 = vector.shape_cast %192 : vector<1x8x8xbf16> to vector<8x8xbf16>
      %194 = vector.shape_cast %191 : vector<8x8xbf16> to vector<1x8x8xbf16>
      tpu.vector_store %arg18[%c1_98, %c0_99, %c0_100], %194 {strides = array<i32>} : memref<4x8x8xbf16, #tpu.memory_space<vmem>>, vector<1x8x8xbf16>,
      %195 = vector.extract_strided_slice %179 {offsets = [0, 40], sizes = [8, 8], strides = [1, 1]} : vector<8x64xf32> to vector<8x8xf32>
      %196 = arith.truncf %195 : vector<8x8xf32> to vector<8x8xbf16>
      %c1_101 = arith.constant 1 : index
      %c0_102 = arith.constant 0 : index
      %c0_103 = arith.constant 0 : index
      %197 = vector.load %arg19[%c1_101, %c0_102, %c0_103] : memref<4x8x8xbf16, #tpu.memory_space<vmem>>, vector<1x8x8xbf16>
      %198 = vector.shape_cast %197 : vector<1x8x8xbf16> to vector<8x8xbf16>
      %199 = vector.shape_cast %196 : vector<8x8xbf16> to vector<1x8x8xbf16>
      tpu.vector_store %arg19[%c1_101, %c0_102, %c0_103], %199 {strides = array<i32>} : memref<4x8x8xbf16, #tpu.memory_space<vmem>>, vector<1x8x8xbf16>,
      %200 = vector.extract_strided_slice %179 {offsets = [0, 16], sizes = [8, 8], strides = [1, 1]} : vector<8x64xf32> to vector<8x8xf32>
      %201 = arith.truncf %200 : vector<8x8xf32> to vector<8x8xbf16>
      %c2_104 = arith.constant 2 : index
      %c0_105 = arith.constant 0 : index
      %c0_106 = arith.constant 0 : index
      %202 = vector.load %arg18[%c2_104, %c0_105, %c0_106] : memref<4x8x8xbf16, #tpu.memory_space<vmem>>, vector<1x8x8xbf16>
      %203 = vector.shape_cast %202 : vector<1x8x8xbf16> to vector<8x8xbf16>
      %204 = vector.shape_cast %201 : vector<8x8xbf16> to vector<1x8x8xbf16>
      tpu.vector_store %arg18[%c2_104, %c0_105, %c0_106], %204 {strides = array<i32>} : memref<4x8x8xbf16, #tpu.memory_space<vmem>>, vector<1x8x8xbf16>,
      %205 = vector.extract_strided_slice %179 {offsets = [0, 48], sizes = [8, 8], strides = [1, 1]} : vector<8x64xf32> to vector<8x8xf32>
      %206 = arith.truncf %205 : vector<8x8xf32> to vector<8x8xbf16>
      %c2_107 = arith.constant 2 : index
      %c0_108 = arith.constant 0 : index
      %c0_109 = arith.constant 0 : index
      %207 = vector.load %arg19[%c2_107, %c0_108, %c0_109] : memref<4x8x8xbf16, #tpu.memory_space<vmem>>, vector<1x8x8xbf16>
      %208 = vector.shape_cast %207 : vector<1x8x8xbf16> to vector<8x8xbf16>
      %209 = vector.shape_cast %206 : vector<8x8xbf16> to vector<1x8x8xbf16>
      tpu.vector_store %arg19[%c2_107, %c0_108, %c0_109], %209 {strides = array<i32>} : memref<4x8x8xbf16, #tpu.memory_space<vmem>>, vector<1x8x8xbf16>,
      %210 = vector.extract_strided_slice %179 {offsets = [0, 24], sizes = [8, 8], strides = [1, 1]} : vector<8x64xf32> to vector<8x8xf32>
      %211 = arith.truncf %210 : vector<8x8xf32> to vector<8x8xbf16>
      %c3_110 = arith.constant 3 : index
      %c0_111 = arith.constant 0 : index
      %c0_112 = arith.constant 0 : index
      %212 = vector.load %arg18[%c3_110, %c0_111, %c0_112] : memref<4x8x8xbf16, #tpu.memory_space<vmem>>, vector<1x8x8xbf16>
      %213 = vector.shape_cast %212 : vector<1x8x8xbf16> to vector<8x8xbf16>
      %214 = vector.shape_cast %211 : vector<8x8xbf16> to vector<1x8x8xbf16>
      tpu.vector_store %arg18[%c3_110, %c0_111, %c0_112], %214 {strides = array<i32>} : memref<4x8x8xbf16, #tpu.memory_space<vmem>>, vector<1x8x8xbf16>,
      %215 = vector.extract_strided_slice %179 {offsets = [0, 56], sizes = [8, 8], strides = [1, 1]} : vector<8x64xf32> to vector<8x8xf32>
      %216 = arith.truncf %215 : vector<8x8xf32> to vector<8x8xbf16>
      %c3_113 = arith.constant 3 : index
      %c0_114 = arith.constant 0 : index
      %c0_115 = arith.constant 0 : index
      %217 = vector.load %arg19[%c3_113, %c0_114, %c0_115] : memref<4x8x8xbf16, #tpu.memory_space<vmem>>, vector<1x8x8xbf16>
      %218 = vector.shape_cast %217 : vector<1x8x8xbf16> to vector<8x8xbf16>
      %219 = vector.shape_cast %216 : vector<8x8xbf16> to vector<1x8x8xbf16>
      tpu.vector_store %arg19[%c3_113, %c0_114, %c0_115], %219 {strides = array<i32>} : memref<4x8x8xbf16, #tpu.memory_space<vmem>>, vector<1x8x8xbf16>,
    } else {
    }
    %c8_i32 = arith.constant 8 : i32
    %3 = arith.muli %arg1, %c8_i32 : i32
    %4 = tpu.assume_multiple %3, 8 : i32
    %c0 = arith.constant 0 : index
    %5 = arith.index_cast %4 : i32 to index
    %c0_1 = arith.constant 0 : index
    %6 = vector.load %arg2[%c0, %5, %c0_1] : memref<1x8x32xf32, #tpu.memory_space<vmem>>, vector<1x8x32xf32>
    %7 = vector.shape_cast %6 : vector<1x8x32xf32> to vector<8x32xf32>
    %8 = arith.truncf %7 : vector<8x32xf32> to vector<8x32xbf16>
    %c0_2 = arith.constant 0 : index
    %c0_3 = arith.constant 0 : index
    %9 = vector.load %arg3[%c0_2, %c0_3] : memref<32x32xbf16, #tpu.memory_space<vmem>>, vector<32x32xbf16>
    %cst = arith.constant dense<0.000000e+00> : vector<8x32xf32>
    %10 = tpu.matmul %8, %9, %cst {dimension_numbers = #tpu.dot_dimension_numbers<[1], [0], [0], [1], [0, 0, 1, 1], [], []>} : vector<8x32xbf16>, vector<32x32xbf16>, vector<8x32xf32> -> vector<8x32xf32>
    %c0_4 = arith.constant 0 : index
    %c0_5 = arith.constant 0 : index
    %11 = vector.load %arg4[%c0_4, %c0_5] : memref<1x32xf32, #tpu.memory_space<vmem>>, vector<1x32xf32>
    %12 = vector.broadcast %11 : vector<1x32xf32> to vector<8x32xf32>
    %13 = arith.addf %10, %12 : vector<8x32xf32>
    %14 = vector.extract_strided_slice %13 {offsets = [0, 0], sizes = [8, 8], strides = [1, 1]} : vector<8x32xf32> to vector<8x8xf32>
    %15 = arith.truncf %14 : vector<8x8xf32> to vector<8x8xbf16>
    %c0_6 = arith.constant 0 : index
    %c0_7 = arith.constant 0 : index
    %c0_8 = arith.constant 0 : index
    %16 = vector.load %arg18[%c0_6, %c0_7, %c0_8] : memref<4x8x8xbf16, #tpu.memory_space<vmem>>, vector<1x8x8xbf16>
    %17 = vector.shape_cast %16 : vector<1x8x8xbf16> to vector<8x8xbf16>
    %cst_9 = arith.constant dense<0.000000e+00> : vector<8x8xf32>
    %18 = tpu.matmul %15, %17, %cst_9 {dimension_numbers = #tpu.dot_dimension_numbers<[1], [1], [0], [0], [0, 0, 1, 0], [], []>} : vector<8x8xbf16>, vector<8x8xbf16>, vector<8x8xf32> -> vector<8x8xf32>
    %cst_10 = arith.constant 0.353553385 : f32
    %19 = vector.broadcast %cst_10 : f32 to vector<8x8xf32>
    %20 = arith.mulf %18, %19 : vector<8x8xf32>
    %cst_11 = arith.constant dense<0xFF800000> : vector<8xf32>
    %21 = vector.multi_reduction <maximumf>, %20, %cst_11 [1] : vector<8x8xf32> to vector<8xf32>
    %22 = vector.shape_cast %21 : vector<8xf32> to vector<8x1xf32>
    %23 = vector.broadcast %22 : vector<8x1xf32> to vector<8x8xf32>
    %24 = arith.subf %20, %23 : vector<8x8xf32>
    %25 = math.exp %24 : vector<8x8xf32>
    %cst_12 = arith.constant dense<0.000000e+00> : vector<8xf32>
    %26 = vector.multi_reduction <add>, %25, %cst_12 [1] : vector<8x8xf32> to vector<8xf32>
    %27 = vector.shape_cast %26 : vector<8xf32> to vector<8x1xf32>
    %28 = tpu.reciprocal %27 {approx = true} : vector<8x1xf32> -> vector<8x1xf32>
    %29 = vector.broadcast %28 : vector<8x1xf32> to vector<8x8xf32>
    %30 = arith.mulf %25, %29 : vector<8x8xf32>
    %31 = arith.truncf %30 : vector<8x8xf32> to vector<8x8xbf16>
    %c0_13 = arith.constant 0 : index
    %c0_14 = arith.constant 0 : index
    %c0_15 = arith.constant 0 : index
    %32 = vector.load %arg19[%c0_13, %c0_14, %c0_15] : memref<4x8x8xbf16, #tpu.memory_space<vmem>>, vector<1x8x8xbf16>
    %33 = vector.shape_cast %32 : vector<1x8x8xbf16> to vector<8x8xbf16>
    %cst_16 = arith.constant dense<0.000000e+00> : vector<8x8xf32>
    %34 = tpu.matmul %31, %33, %cst_16 {dimension_numbers = #tpu.dot_dimension_numbers<[1], [0], [0], [1], [0, 0, 1, 1], [], []>} : vector<8x8xbf16>, vector<8x8xbf16>, vector<8x8xf32> -> vector<8x8xf32>
    %35 = vector.extract_strided_slice %13 {offsets = [0, 8], sizes = [8, 8], strides = [1, 1]} : vector<8x32xf32> to vector<8x8xf32>
    %36 = arith.truncf %35 : vector<8x8xf32> to vector<8x8xbf16>
    %c1 = arith.constant 1 : index
    %c0_17 = arith.constant 0 : index
    %c0_18 = arith.constant 0 : index
    %37 = vector.load %arg18[%c1, %c0_17, %c0_18] : memref<4x8x8xbf16, #tpu.memory_space<vmem>>, vector<1x8x8xbf16>
    %38 = vector.shape_cast %37 : vector<1x8x8xbf16> to vector<8x8xbf16>
    %cst_19 = arith.constant dense<0.000000e+00> : vector<8x8xf32>
    %39 = tpu.matmul %36, %38, %cst_19 {dimension_numbers = #tpu.dot_dimension_numbers<[1], [1], [0], [0], [0, 0, 1, 0], [], []>} : vector<8x8xbf16>, vector<8x8xbf16>, vector<8x8xf32> -> vector<8x8xf32>
    %cst_20 = arith.constant 0.353553385 : f32
    %40 = vector.broadcast %cst_20 : f32 to vector<8x8xf32>
    %41 = arith.mulf %39, %40 : vector<8x8xf32>
    %cst_21 = arith.constant dense<0xFF800000> : vector<8xf32>
    %42 = vector.multi_reduction <maximumf>, %41, %cst_21 [1] : vector<8x8xf32> to vector<8xf32>
    %43 = vector.shape_cast %42 : vector<8xf32> to vector<8x1xf32>
    %44 = vector.broadcast %43 : vector<8x1xf32> to vector<8x8xf32>
    %45 = arith.subf %41, %44 : vector<8x8xf32>
    %46 = math.exp %45 : vector<8x8xf32>
    %cst_22 = arith.constant dense<0.000000e+00> : vector<8xf32>
    %47 = vector.multi_reduction <add>, %46, %cst_22 [1] : vector<8x8xf32> to vector<8xf32>
    %48 = vector.shape_cast %47 : vector<8xf32> to vector<8x1xf32>
    %49 = tpu.reciprocal %48 {approx = true} : vector<8x1xf32> -> vector<8x1xf32>
    %50 = vector.broadcast %49 : vector<8x1xf32> to vector<8x8xf32>
    %51 = arith.mulf %46, %50 : vector<8x8xf32>
    %52 = arith.truncf %51 : vector<8x8xf32> to vector<8x8xbf16>
    %c1_23 = arith.constant 1 : index
    %c0_24 = arith.constant 0 : index
    %c0_25 = arith.constant 0 : index
    %53 = vector.load %arg19[%c1_23, %c0_24, %c0_25] : memref<4x8x8xbf16, #tpu.memory_space<vmem>>, vector<1x8x8xbf16>
    %54 = vector.shape_cast %53 : vector<1x8x8xbf16> to vector<8x8xbf16>
    %cst_26 = arith.constant dense<0.000000e+00> : vector<8x8xf32>
    %55 = tpu.matmul %52, %54, %cst_26 {dimension_numbers = #tpu.dot_dimension_numbers<[1], [0], [0], [1], [0, 0, 1, 1], [], []>} : vector<8x8xbf16>, vector<8x8xbf16>, vector<8x8xf32> -> vector<8x8xf32>
    %56 = vector.extract_strided_slice %13 {offsets = [0, 16], sizes = [8, 8], strides = [1, 1]} : vector<8x32xf32> to vector<8x8xf32>
    %57 = arith.truncf %56 : vector<8x8xf32> to vector<8x8xbf16>
    %c2 = arith.constant 2 : index
    %c0_27 = arith.constant 0 : index
    %c0_28 = arith.constant 0 : index
    %58 = vector.load %arg18[%c2, %c0_27, %c0_28] : memref<4x8x8xbf16, #tpu.memory_space<vmem>>, vector<1x8x8xbf16>
    %59 = vector.shape_cast %58 : vector<1x8x8xbf16> to vector<8x8xbf16>
    %cst_29 = arith.constant dense<0.000000e+00> : vector<8x8xf32>
    %60 = tpu.matmul %57, %59, %cst_29 {dimension_numbers = #tpu.dot_dimension_numbers<[1], [1], [0], [0], [0, 0, 1, 0], [], []>} : vector<8x8xbf16>, vector<8x8xbf16>, vector<8x8xf32> -> vector<8x8xf32>
    %cst_30 = arith.constant 0.353553385 : f32
    %61 = vector.broadcast %cst_30 : f32 to vector<8x8xf32>
    %62 = arith.mulf %60, %61 : vector<8x8xf32>
    %cst_31 = arith.constant dense<0xFF800000> : vector<8xf32>
    %63 = vector.multi_reduction <maximumf>, %62, %cst_31 [1] : vector<8x8xf32> to vector<8xf32>
    %64 = vector.shape_cast %63 : vector<8xf32> to vector<8x1xf32>
    %65 = vector.broadcast %64 : vector<8x1xf32> to vector<8x8xf32>
    %66 = arith.subf %62, %65 : vector<8x8xf32>
    %67 = math.exp %66 : vector<8x8xf32>
    %cst_32 = arith.constant dense<0.000000e+00> : vector<8xf32>
    %68 = vector.multi_reduction <add>, %67, %cst_32 [1] : vector<8x8xf32> to vector<8xf32>
    %69 = vector.shape_cast %68 : vector<8xf32> to vector<8x1xf32>
    %70 = tpu.reciprocal %69 {approx = true} : vector<8x1xf32> -> vector<8x1xf32>
    %71 = vector.broadcast %70 : vector<8x1xf32> to vector<8x8xf32>
    %72 = arith.mulf %67, %71 : vector<8x8xf32>
    %73 = arith.truncf %72 : vector<8x8xf32> to vector<8x8xbf16>
    %c2_33 = arith.constant 2 : index
    %c0_34 = arith.constant 0 : index
    %c0_35 = arith.constant 0 : index
    %74 = vector.load %arg19[%c2_33, %c0_34, %c0_35] : memref<4x8x8xbf16, #tpu.memory_space<vmem>>, vector<1x8x8xbf16>
    %75 = vector.shape_cast %74 : vector<1x8x8xbf16> to vector<8x8xbf16>
    %cst_36 = arith.constant dense<0.000000e+00> : vector<8x8xf32>
    %76 = tpu.matmul %73, %75, %cst_36 {dimension_numbers = #tpu.dot_dimension_numbers<[1], [0], [0], [1], [0, 0, 1, 1], [], []>} : vector<8x8xbf16>, vector<8x8xbf16>, vector<8x8xf32> -> vector<8x8xf32>
    %77 = vector.extract_strided_slice %13 {offsets = [0, 24], sizes = [8, 8], strides = [1, 1]} : vector<8x32xf32> to vector<8x8xf32>
    %78 = arith.truncf %77 : vector<8x8xf32> to vector<8x8xbf16>
    %c3 = arith.constant 3 : index
    %c0_37 = arith.constant 0 : index
    %c0_38 = arith.constant 0 : index
    %79 = vector.load %arg18[%c3, %c0_37, %c0_38] : memref<4x8x8xbf16, #tpu.memory_space<vmem>>, vector<1x8x8xbf16>
    %80 = vector.shape_cast %79 : vector<1x8x8xbf16> to vector<8x8xbf16>
    %cst_39 = arith.constant dense<0.000000e+00> : vector<8x8xf32>
    %81 = tpu.matmul %78, %80, %cst_39 {dimension_numbers = #tpu.dot_dimension_numbers<[1], [1], [0], [0], [0, 0, 1, 0], [], []>} : vector<8x8xbf16>, vector<8x8xbf16>, vector<8x8xf32> -> vector<8x8xf32>
    %cst_40 = arith.constant 0.353553385 : f32
    %82 = vector.broadcast %cst_40 : f32 to vector<8x8xf32>
    %83 = arith.mulf %81, %82 : vector<8x8xf32>
    %cst_41 = arith.constant dense<0xFF800000> : vector<8xf32>
    %84 = vector.multi_reduction <maximumf>, %83, %cst_41 [1] : vector<8x8xf32> to vector<8xf32>
    %85 = vector.shape_cast %84 : vector<8xf32> to vector<8x1xf32>
    %86 = vector.broadcast %85 : vector<8x1xf32> to vector<8x8xf32>
    %87 = arith.subf %83, %86 : vector<8x8xf32>
    %88 = math.exp %87 : vector<8x8xf32>
    %cst_42 = arith.constant dense<0.000000e+00> : vector<8xf32>
    %89 = vector.multi_reduction <add>, %88, %cst_42 [1] : vector<8x8xf32> to vector<8xf32>
    %90 = vector.shape_cast %89 : vector<8xf32> to vector<8x1xf32>
    %91 = tpu.reciprocal %90 {approx = true} : vector<8x1xf32> -> vector<8x1xf32>
    %92 = vector.broadcast %91 : vector<8x1xf32> to vector<8x8xf32>
    %93 = arith.mulf %88, %92 : vector<8x8xf32>
    %94 = arith.truncf %93 : vector<8x8xf32> to vector<8x8xbf16>
    %c3_43 = arith.constant 3 : index
    %c0_44 = arith.constant 0 : index
    %c0_45 = arith.constant 0 : index
    %95 = vector.load %arg19[%c3_43, %c0_44, %c0_45] : memref<4x8x8xbf16, #tpu.memory_space<vmem>>, vector<1x8x8xbf16>
    %96 = vector.shape_cast %95 : vector<1x8x8xbf16> to vector<8x8xbf16>
    %cst_46 = arith.constant dense<0.000000e+00> : vector<8x8xf32>
    %97 = tpu.matmul %94, %96, %cst_46 {dimension_numbers = #tpu.dot_dimension_numbers<[1], [0], [0], [1], [0, 0, 1, 1], [], []>} : vector<8x8xbf16>, vector<8x8xbf16>, vector<8x8xf32> -> vector<8x8xf32>
    %98 = tpu.concatenate %34, %55, %76, %97 in 1 : vector<8x8xf32>, vector<8x8xf32>, vector<8x8xf32>, vector<8x8xf32> -> vector<8x32xf32>
    %99 = arith.truncf %98 : vector<8x32xf32> to vector<8x32xbf16>
    %c0_47 = arith.constant 0 : index
    %c0_48 = arith.constant 0 : index
    %100 = vector.load %arg7[%c0_47, %c0_48] : memref<32x32xbf16, #tpu.memory_space<vmem>>, vector<32x32xbf16>
    %cst_49 = arith.constant dense<0.000000e+00> : vector<8x32xf32>
    %101 = tpu.matmul %99, %100, %cst_49 {dimension_numbers = #tpu.dot_dimension_numbers<[1], [0], [0], [1], [0, 0, 1, 1], [], []>} : vector<8x32xbf16>, vector<32x32xbf16>, vector<8x32xf32> -> vector<8x32xf32>
    %c0_50 = arith.constant 0 : index
    %c0_51 = arith.constant 0 : index
    %102 = vector.load %arg8[%c0_50, %c0_51] : memref<1x32xf32, #tpu.memory_space<vmem>>, vector<1x32xf32>
    %103 = vector.broadcast %102 : vector<1x32xf32> to vector<8x32xf32>
    %104 = arith.addf %101, %103 : vector<8x32xf32>
    %105 = arith.addf %7, %104 : vector<8x32xf32>
    %c0_52 = arith.constant 0 : index
    %c0_53 = arith.constant 0 : index
    %106 = vector.load %arg13[%c0_52, %c0_53] : memref<1x32xf32, #tpu.memory_space<vmem>>, vector<1x32xf32>
    %c0_54 = arith.constant 0 : index
    %c0_55 = arith.constant 0 : index
    %107 = vector.load %arg14[%c0_54, %c0_55] : memref<1x32xf32, #tpu.memory_space<vmem>>, vector<1x32xf32>
    %cst_56 = arith.constant dense<0.000000e+00> : vector<8xf32>
    %108 = vector.multi_reduction <add>, %105, %cst_56 [1] : vector<8x32xf32> to vector<8xf32>
    %109 = vector.shape_cast %108 : vector<8xf32> to vector<8x1xf32>
    %cst_57 = arith.constant 3.200000e+01 : f32
    %110 = vector.broadcast %cst_57 : f32 to vector<8x1xf32>
    %111 = arith.divf %109, %110 : vector<8x1xf32>
    %112 = vector.broadcast %111 : vector<8x1xf32> to vector<8x32xf32>
    %113 = arith.subf %105, %112 : vector<8x32xf32>
    %114 = arith.mulf %113, %113 : vector<8x32xf32>
    %cst_58 = arith.constant dense<0.000000e+00> : vector<8xf32>
    %115 = vector.multi_reduction <add>, %114, %cst_58 [1] : vector<8x32xf32> to vector<8xf32>
    %116 = vector.shape_cast %115 : vector<8xf32> to vector<8x1xf32>
    %cst_59 = arith.constant 3.200000e+01 : f32
    %117 = vector.broadcast %cst_59 : f32 to vector<8x1xf32>
    %118 = arith.divf %116, %117 : vector<8x1xf32>
    %119 = vector.broadcast %111 : vector<8x1xf32> to vector<8x32xf32>
    %120 = arith.subf %105, %119 : vector<8x32xf32>
    %cst_60 = arith.constant 9.99999974E-6 : f32
    %121 = vector.broadcast %cst_60 : f32 to vector<8x1xf32>
    %122 = arith.addf %118, %121 : vector<8x1xf32>
    %123 = math.rsqrt %122 : vector<8x1xf32>
    %124 = vector.broadcast %123 : vector<8x1xf32> to vector<8x32xf32>
    %125 = arith.mulf %120, %124 : vector<8x32xf32>
    %126 = vector.broadcast %106 : vector<1x32xf32> to vector<8x32xf32>
    %127 = arith.mulf %125, %126 : vector<8x32xf32>
    %128 = vector.broadcast %107 : vector<1x32xf32> to vector<8x32xf32>
    %129 = arith.addf %127, %128 : vector<8x32xf32>
    %130 = arith.truncf %129 : vector<8x32xf32> to vector<8x32xbf16>
    %c0_61 = arith.constant 0 : index
    %c0_62 = arith.constant 0 : index
    %131 = vector.load %arg9[%c0_61, %c0_62] : memref<32x128xbf16, #tpu.memory_space<vmem>>, vector<32x128xbf16>
    %cst_63 = arith.constant dense<0.000000e+00> : vector<8x128xf32>
    %132 = tpu.matmul %130, %131, %cst_63 {dimension_numbers = #tpu.dot_dimension_numbers<[1], [0], [0], [1], [0, 0, 1, 1], [], []>} : vector<8x32xbf16>, vector<32x128xbf16>, vector<8x128xf32> -> vector<8x128xf32>
    %c0_64 = arith.constant 0 : index
    %c0_65 = arith.constant 0 : index
    %133 = vector.load %arg10[%c0_64, %c0_65] : memref<1x128xf32, #tpu.memory_space<vmem>>, vector<1x128xf32>
    %134 = vector.broadcast %133 : vector<1x128xf32> to vector<8x128xf32>
    %135 = arith.addf %132, %134 : vector<8x128xf32>
    %cst_66 = arith.constant 0.000000e+00 : f32
    %136 = vector.broadcast %cst_66 : f32 to vector<8x128xf32>
    %137 = arith.maximumf %135, %136 : vector<8x128xf32>
    %138 = arith.truncf %137 : vector<8x128xf32> to vector<8x128xbf16>
    %c0_67 = arith.constant 0 : index
    %c0_68 = arith.constant 0 : index
    %139 = vector.load %arg11[%c0_67, %c0_68] : memref<128x32xbf16, #tpu.memory_space<vmem>>, vector<128x32xbf16>
    %cst_69 = arith.constant dense<0.000000e+00> : vector<8x32xf32>
    %140 = tpu.matmul %138, %139, %cst_69 {dimension_numbers = #tpu.dot_dimension_numbers<[1], [0], [0], [1], [0, 0, 1, 1], [], []>} : vector<8x128xbf16>, vector<128x32xbf16>, vector<8x32xf32> -> vector<8x32xf32>
    %c0_70 = arith.constant 0 : index
    %c0_71 = arith.constant 0 : index
    %141 = vector.load %arg12[%c0_70, %c0_71] : memref<1x32xf32, #tpu.memory_space<vmem>>, vector<1x32xf32>
    %142 = vector.broadcast %141 : vector<1x32xf32> to vector<8x32xf32>
    %143 = arith.addf %140, %142 : vector<8x32xf32>
    %144 = arith.addf %129, %143 : vector<8x32xf32>
    %c0_72 = arith.constant 0 : index
    %c0_73 = arith.constant 0 : index
    %145 = vector.load %arg15[%c0_72, %c0_73] : memref<1x32xf32, #tpu.memory_space<vmem>>, vector<1x32xf32>
    %c0_74 = arith.constant 0 : index
    %c0_75 = arith.constant 0 : index
    %146 = vector.load %arg16[%c0_74, %c0_75] : memref<1x32xf32, #tpu.memory_space<vmem>>, vector<1x32xf32>
    %cst_76 = arith.constant dense<0.000000e+00> : vector<8xf32>
    %147 = vector.multi_reduction <add>, %144, %cst_76 [1] : vector<8x32xf32> to vector<8xf32>
    %148 = vector.shape_cast %147 : vector<8xf32> to vector<8x1xf32>
    %cst_77 = arith.constant 3.200000e+01 : f32
    %149 = vector.broadcast %cst_77 : f32 to vector<8x1xf32>
    %150 = arith.divf %148, %149 : vector<8x1xf32>
    %151 = vector.broadcast %150 : vector<8x1xf32> to vector<8x32xf32>
    %152 = arith.subf %144, %151 : vector<8x32xf32>
    %153 = arith.mulf %152, %152 : vector<8x32xf32>
    %cst_78 = arith.constant dense<0.000000e+00> : vector<8xf32>
    %154 = vector.multi_reduction <add>, %153, %cst_78 [1] : vector<8x32xf32> to vector<8xf32>
    %155 = vector.shape_cast %154 : vector<8xf32> to vector<8x1xf32>
    %cst_79 = arith.constant 3.200000e+01 : f32
    %156 = vector.broadcast %cst_79 : f32 to vector<8x1xf32>
    %157 = arith.divf %155, %156 : vector<8x1xf32>
    %158 = vector.broadcast %150 : vector<8x1xf32> to vector<8x32xf32>
    %159 = arith.subf %144, %158 : vector<8x32xf32>
    %cst_80 = arith.constant 9.99999974E-6 : f32
    %160 = vector.broadcast %cst_80 : f32 to vector<8x1xf32>
    %161 = arith.addf %157, %160 : vector<8x1xf32>
    %162 = math.rsqrt %161 : vector<8x1xf32>
    %163 = vector.broadcast %162 : vector<8x1xf32> to vector<8x32xf32>
    %164 = arith.mulf %159, %163 : vector<8x32xf32>
    %165 = vector.broadcast %145 : vector<1x32xf32> to vector<8x32xf32>
    %166 = arith.mulf %164, %165 : vector<8x32xf32>
    %167 = vector.broadcast %146 : vector<1x32xf32> to vector<8x32xf32>
    %168 = arith.addf %166, %167 : vector<8x32xf32>
    %c0_81 = arith.constant 0 : index
    %c0_82 = arith.constant 0 : index
    %c0_83 = arith.constant 0 : index
    %169 = vector.load %arg17[%c0_81, %c0_82, %c0_83] : memref<1x8x32xf32, #tpu.memory_space<vmem>>, vector<1x8x32xf32>
    %170 = vector.shape_cast %169 : vector<1x8x32xf32> to vector<8x32xf32>
    %171 = vector.shape_cast %168 : vector<8x32xf32> to vector<1x8x32xf32>
    tpu.vector_store %arg17[%c0_81, %c0_82, %c0_83], %171 {strides = array<i32>} : memref<1x8x32xf32, #tpu.memory_space<vmem>>, vector<1x8x32xf32>,
    return
  }
  func.func @transform_0(%arg0: i32, %arg1: i32) -> (i32, i32, i32) {
    %c0_i32 = arith.constant 0 : i32
    %c0_i32_0 = arith.constant 0 : i32
    %c0_i32_1 = arith.constant 0 : i32
    return %arg0, %c0_i32, %c0_i32_0 : i32, i32, i32
  }
  func.func @transform_1(%arg0: i32, %arg1: i32) -> (i32, i32) {
    %c0_i32 = arith.constant 0 : i32
    %c0_i32_0 = arith.constant 0 : i32
    %c0_i32_1 = arith.constant 0 : i32
    return %c0_i32, %c0_i32_0 : i32, i32
  }
  func.func @transform_2(%arg0: i32, %arg1: i32) -> (i32, i32) {
    %c0_i32 = arith.constant 0 : i32
    %c0_i32_0 = arith.constant 0 : i32
    %c0_i32_1 = arith.constant 0 : i32
    return %c0_i32, %c0_i32_0 : i32, i32
  }
  func.func @transform_3(%arg0: i32, %arg1: i32) -> (i32, i32) {
    %c0_i32 = arith.constant 0 : i32
    %c0_i32_0 = arith.constant 0 : i32
    %c0_i32_1 = arith.constant 0 : i32
    return %c0_i32, %c0_i32_0 : i32, i32
  }
  func.func @transform_4(%arg0: i32, %arg1: i32) -> (i32, i32) {
    %c0_i32 = arith.constant 0 : i32
    %c0_i32_0 = arith.constant 0 : i32
    %c0_i32_1 = arith.constant 0 : i32
    return %c0_i32, %c0_i32_0 : i32, i32
  }
  func.func @transform_5(%arg0: i32, %arg1: i32) -> (i32, i32) {
    %c0_i32 = arith.constant 0 : i32
    %c0_i32_0 = arith.constant 0 : i32
    %c0_i32_1 = arith.constant 0 : i32
    return %c0_i32, %c0_i32_0 : i32, i32
  }
  func.func @transform_6(%arg0: i32, %arg1: i32) -> (i32, i32) {
    %c0_i32 = arith.constant 0 : i32
    %c0_i32_0 = arith.constant 0 : i32
    %c0_i32_1 = arith.constant 0 : i32
    return %c0_i32, %c0_i32_0 : i32, i32
  }
  func.func @transform_7(%arg0: i32, %arg1: i32) -> (i32, i32) {
    %c0_i32 = arith.constant 0 : i32
    %c0_i32_0 = arith.constant 0 : i32
    %c0_i32_1 = arith.constant 0 : i32
    return %c0_i32, %c0_i32_0 : i32, i32
  }
  func.func @transform_8(%arg0: i32, %arg1: i32) -> (i32, i32) {
    %c0_i32 = arith.constant 0 : i32
    %c0_i32_0 = arith.constant 0 : i32
    %c0_i32_1 = arith.constant 0 : i32
    return %c0_i32, %c0_i32_0 : i32, i32
  }
  func.func @transform_9(%arg0: i32, %arg1: i32) -> (i32, i32) {
    %c0_i32 = arith.constant 0 : i32
    %c0_i32_0 = arith.constant 0 : i32
    %c0_i32_1 = arith.constant 0 : i32
    return %c0_i32, %c0_i32_0 : i32, i32
  }
  func.func @transform_10(%arg0: i32, %arg1: i32) -> (i32, i32) {
    %c0_i32 = arith.constant 0 : i32
    %c0_i32_0 = arith.constant 0 : i32
    %c0_i32_1 = arith.constant 0 : i32
    return %c0_i32, %c0_i32_0 : i32, i32
  }
  func.func @transform_11(%arg0: i32, %arg1: i32) -> (i32, i32) {
    %c0_i32 = arith.constant 0 : i32
    %c0_i32_0 = arith.constant 0 : i32
    %c0_i32_1 = arith.constant 0 : i32
    return %c0_i32, %c0_i32_0 : i32, i32
  }
  func.func @transform_12(%arg0: i32, %arg1: i32) -> (i32, i32) {
    %c0_i32 = arith.constant 0 : i32
    %c0_i32_0 = arith.constant 0 : i32
    %c0_i32_1 = arith.constant 0 : i32
    return %c0_i32, %c0_i32_0 : i32, i32
  }
  func.func @transform_13(%arg0: i32, %arg1: i32) -> (i32, i32) {
    %c0_i32 = arith.constant 0 : i32
    %c0_i32_0 = arith.constant 0 : i32
    %c0_i32_1 = arith.constant 0 : i32
    return %c0_i32, %c0_i32_0 : i32, i32
  }
  func.func @transform_14(%arg0: i32, %arg1: i32) -> (i32, i32) {
    %c0_i32 = arith.constant 0 : i32
    %c0_i32_0 = arith.constant 0 : i32
    %c0_i32_1 = arith.constant 0 : i32
    return %c0_i32, %c0_i32_0 : i32, i32
  }
  func.func @transform_15(%arg0: i32, %arg1: i32) -> (i32, i32, i32) {
    %c0_i32 = arith.constant 0 : i32
    %c0_i32_0 = arith.constant 0 : i32
    return %arg0, %arg1, %c0_i32 : i32, i32, i32
  }
}

module attributes {stable_mosaic.version = 11 : i64} {
  func.func @encoder_layer_kernel(%arg0: i32, %arg1: i32, %arg2: memref<1x8x32xf32, #tpu.memory_space<vmem>>, %arg3: memref<32x32xbf16, #tpu.memory_space<vmem>>, %arg4: memref<1x32xf32, #tpu.memory_space<vmem>>, %arg5: memref<32x64xbf16, #tpu.memory_space<vmem>>, %arg6: memref<1x64xf32, #tpu.memory_space<vmem>>, %arg7: memref<32x32xbf16, #tpu.memory_space<vmem>>, %arg8: memref<1x32xf32, #tpu.memory_space<vmem>>, %arg9: memref<32x128xbf16, #tpu.memory_space<vmem>>, %arg10: memref<1x128xf32, #tpu.memory_space<vmem>>, %arg11: memref<128x32xbf16, #tpu.memory_space<vmem>>, %arg12: memref<1x32xf32, #tpu.memory_space<vmem>>, %arg13: memref<1x32xf32, #tpu.memory_space<vmem>>, %arg14: memref<1x32xf32, #tpu.memory_space<vmem>>, %arg15: memref<1x32xf32, #tpu.memory_space<vmem>>, %arg16: memref<1x32xf32, #tpu.memory_space<vmem>>, %arg17: memref<1x8x32xf32, #tpu.memory_space<vmem>>, %arg18: memref<4x8x8xbf16, #tpu.memory_space<vmem>>, %arg19: memref<4x8x8xbf16, #tpu.memory_space<vmem>>) attributes {dimension_semantics = [#tpu.dimension_semantics<parallel>, #tpu.dimension_semantics<arbitrary>], iteration_bounds = array<i64: 2, 1>, scalar_prefetch = 0 : i64, scratch_operands = 2 : i64, tpu.core_type = #tpu.core_type<tc>, window_params = [{transform_indices = @transform_0, window_bounds = array<i64: 1, 8, 32>}, {pipeline_mode = #tpu.pipeline_mode<synchronous>, transform_indices = @transform_1, window_bounds = array<i64: 32, 32>}, {pipeline_mode = #tpu.pipeline_mode<synchronous>, transform_indices = @transform_2, window_bounds = array<i64: 1, 32>}, {pipeline_mode = #tpu.pipeline_mode<synchronous>, transform_indices = @transform_3, window_bounds = array<i64: 32, 64>}, {pipeline_mode = #tpu.pipeline_mode<synchronous>, transform_indices = @transform_4, window_bounds = array<i64: 1, 64>}, {pipeline_mode = #tpu.pipeline_mode<synchronous>, transform_indices = @transform_5, window_bounds = array<i64: 32, 32>}, {pipeline_mode = #tpu.pipeline_mode<synchronous>, transform_indices = @transform_6, window_bounds = array<i64: 1, 32>}, {pipeline_mode = #tpu.pipeline_mode<synchronous>, transform_indices = @transform_7, window_bounds = array<i64: 32, 128>}, {pipeline_mode = #tpu.pipeline_mode<synchronous>, transform_indices = @transform_8, window_bounds = array<i64: 1, 128>}, {pipeline_mode = #tpu.pipeline_mode<synchronous>, transform_indices = @transform_9, window_bounds = array<i64: 128, 32>}, {pipeline_mode = #tpu.pipeline_mode<synchronous>, transform_indices = @transform_10, window_bounds = array<i64: 1, 32>}, {pipeline_mode = #tpu.pipeline_mode<synchronous>, transform_indices = @transform_11, window_bounds = array<i64: 1, 32>}, {pipeline_mode = #tpu.pipeline_mode<synchronous>, transform_indices = @transform_12, window_bounds = array<i64: 1, 32>}, {pipeline_mode = #tpu.pipeline_mode<synchronous>, transform_indices = @transform_13, window_bounds = array<i64: 1, 32>}, {pipeline_mode = #tpu.pipeline_mode<synchronous>, transform_indices = @transform_14, window_bounds = array<i64: 1, 32>}, {transform_indices = @transform_15, window_bounds = array<i64: 1, 8, 32>}]} {
    %c0_i32 = arith.constant 0 : i32
    %0 = arith.cmpi eq, %arg1, %c0_i32 : i32
    %1 = arith.extui %0 : i1 to i32
    %c0_i32_0 = arith.constant 0 : i32
    %2 = arith.cmpi ne, %1, %c0_i32_0 : i32
    scf.if %2 {
      %c0_84 = arith.constant 0 : index
      %c0_85 = arith.constant 0 : index
      %c0_86 = arith.constant 0 : index
      %172 = vector.load %arg2[%c0_84, %c0_85, %c0_86] : memref<1x8x32xf32, #tpu.memory_space<vmem>>, vector<1x8x32xf32>
      %173 = vector.shape_cast %172 : vector<1x8x32xf32> to vector<8x32xf32>
      %174 = arith.truncf %173 : vector<8x32xf32> to vector<8x32xbf16>
      %c0_87 = arith.constant 0 : index
      %c0_88 = arith.constant 0 : index
      %175 = vector.load %arg5[%c0_87, %c0_88] : memref<32x64xbf16, #tpu.memory_space<vmem>>, vector<32x64xbf16>
      %cst_89 = arith.constant dense<0.000000e+00> : vector<8x64xf32>
      %176 = tpu.matmul %174, %175, %cst_89 {dimension_numbers = #tpu.dot_dimension_numbers<[1], [0], [0], [1], [0, 0, 1, 1], [], []>} : vector<8x32xbf16>, vector<32x64xbf16>, vector<8x64xf32> -> vector<8x64xf32>
      %c0_90 = arith.constant 0 : index
      %c0_91 = arith.constant 0 : index
      %177 = vector.load %arg6[%c0_90, %c0_91] : memref<1x64xf32, #tpu.memory_space<vmem>>, vector<1x64xf32>
      %178 = vector.broadcast %177 : vector<1x64xf32> to vector<8x64xf32>
      %179 = arith.addf %176, %178 : vector<8x64xf32>
      %180 = vector.extract_strided_slice %179 {offsets = [0, 0], sizes = [8, 8], strides = [1, 1]} : vector<8x64xf32> to vector<8x8xf32>
      %181 = arith.truncf %180 : vector<8x8xf32> to vector<8x8xbf16>
      %c0_92 = arith.constant 0 : index
      %c0_93 = arith.constant 0 : index
      %c0_94 = arith.constant 0 : index
      %182 = vector.load %arg18[%c0_92, %c0_93, %c0_94] : memref<4x8x8xbf16, #tpu.memory_space<vmem>>, vector<1x8x8xbf16>
      %183 = vector.shape_cast %182 : vector<1x8x8xbf16> to vector<8x8xbf16>
      %184 = vector.shape_cast %181 : vector<8x8xbf16> to vector<1x8x8xbf16>
      tpu.vector_store %arg18[%c0_92, %c0_93, %c0_94], %184 {strides = array<i32>} : memref<4x8x8xbf16, #tpu.memory_space<vmem>>, vector<1x8x8xbf16>,
      %185 = vector.extract_strided_slice %179 {offsets = [0, 32], sizes = [8, 8], strides = [1, 1]} : vector<8x64xf32> to vector<8x8xf32>
      %186 = arith.truncf %185 : vector<8x8xf32> to vector<8x8xbf16>
      %c0_95 = arith.constant 0 : index
      %c0_96 = arith.constant 0 : index
      %c0_97 = arith.constant 0 : index
      %187 = vector.load %arg19[%c0_95, %c0_96, %c0_97] : memref<4x8x8xbf16, #tpu.memory_space<vmem>>, vector<1x8x8xbf16>
      %188 = vector.shape_cast %187 : vector<1x8x8xbf16> to vector<8x8xbf16>
      %189 = vector.shape_cast %186 : vector<8x8xbf16> to vector<1x8x8xbf16>
      tpu.vector_store %arg19[%c0_95, %c0_96, %c0_97], %189 {strides = array<i32>} : memref<4x8x8xbf16, #tpu.memory_space<vmem>>, vector<1x8x8xbf16>,
      %190 = vector.extract_strided_slice %179 {offsets = [0, 8], sizes = [8, 8], strides = [1, 1]} : vector<8x64xf32> to vector<8x8xf32>
      %191 = arith.truncf %190 : vector<8x8xf32> to vector<8x8xbf16>
      %c1_98 = arith.constant 1 : index
      %c0_99 = arith.constant 0 : index
      %c0_100 = arith.constant 0 : index
      %192 = vector.load %arg18[%c1_98, %c0_99, %c0_100] : memref<4x8x8xbf16, #tpu.memory_space<vmem>>, vector<1x8x8xbf16>
      %193 = vector.shape_cast %192 : vector<1x8x8xbf16> to vector<8x8xbf16>
      %194 = vector.shape_cast %191 : vector<8x8xbf16> to vector<1x8x8xbf16>
      tpu.vector_store %arg18[%c1_98, %c0_99, %c0_100], %194 {strides = array<i32>} : memref<4x8x8xbf16, #tpu.memory_space<vmem>>, vector<1x8x8xbf16>,
      %195 = vector.extract_strided_slice %179 {offsets = [0, 40], sizes = [8, 8], strides = [1, 1]} : vector<8x64xf32> to vector<8x8xf32>
      %196 = arith.truncf %195 : vector<8x8xf32> to vector<8x8xbf16>
      %c1_101 = arith.constant 1 : index
      %c0_102 = arith.constant 0 : index
      %c0_103 = arith.constant 0 : index
      %197 = vector.load %arg19[%c1_101, %c0_102, %c0_103] : memref<4x8x8xbf16, #tpu.memory_space<vmem>>, vector<1x8x8xbf16>
      %198 = vector.shape_cast %197 : vector<1x8x8xbf16> to vector<8x8xbf16>
      %199 = vector.shape_cast %196 : vector<8x8xbf16> to vector<1x8x8xbf16>
      tpu.vector_store %arg19[%c1_101, %c0_102, %c0_103], %199 {strides = array<i32>} : memref<4x8x8xbf16, #tpu.memory_space<vmem>>, vector<1x8x8xbf16>,
      %200 = vector.extract_strided_slice %179 {offsets = [0, 16], sizes = [8, 8], strides = [1, 1]} : vector<8x64xf32> to vector<8x8xf32>
      %201 = arith.truncf %200 : vector<8x8xf32> to vector<8x8xbf16>
      %c2_104 = arith.constant 2 : index
      %c0_105 = arith.constant 0 : index
      %c0_106 = arith.constant 0 : index
      %202 = vector.load %arg18[%c2_104, %c0_105, %c0_106] : memref<4x8x8xbf16, #tpu.memory_space<vmem>>, vector<1x8x8xbf16>
      %203 = vector.shape_cast %202 : vector<1x8x8xbf16> to vector<8x8xbf16>
      %204 = vector.shape_cast %201 : vector<8x8xbf16> to vector<1x8x8xbf16>
      tpu.vector_store %arg18[%c2_104, %c0_105, %c0_106], %204 {strides = array<i32>} : memref<4x8x8xbf16, #tpu.memory_space<vmem>>, vector<1x8x8xbf16>,
      %205 = vector.extract_strided_slice %179 {offsets = [0, 48], sizes = [8, 8], strides = [1, 1]} : vector<8x64xf32> to vector<8x8xf32>
      %206 = arith.truncf %205 : vector<8x8xf32> to vector<8x8xbf16>
      %c2_107 = arith.constant 2 : index
      %c0_108 = arith.constant 0 : index
      %c0_109 = arith.constant 0 : index
      %207 = vector.load %arg19[%c2_107, %c0_108, %c0_109] : memref<4x8x8xbf16, #tpu.memory_space<vmem>>, vector<1x8x8xbf16>
      %208 = vector.shape_cast %207 : vector<1x8x8xbf16> to vector<8x8xbf16>
      %209 = vector.shape_cast %206 : vector<8x8xbf16> to vector<1x8x8xbf16>
      tpu.vector_store %arg19[%c2_107, %c0_108, %c0_109], %209 {strides = array<i32>} : memref<4x8x8xbf16, #tpu.memory_space<vmem>>, vector<1x8x8xbf16>,
      %210 = vector.extract_strided_slice %179 {offsets = [0, 24], sizes = [8, 8], strides = [1, 1]} : vector<8x64xf32> to vector<8x8xf32>
      %211 = arith.truncf %210 : vector<8x8xf32> to vector<8x8xbf16>
      %c3_110 = arith.constant 3 : index
      %c0_111 = arith.constant 0 : index
      %c0_112 = arith.constant 0 : index
      %212 = vector.load %arg18[%c3_110, %c0_111, %c0_112] : memref<4x8x8xbf16, #tpu.memory_space<vmem>>, vector<1x8x8xbf16>
      %213 = vector.shape_cast %212 : vector<1x8x8xbf16> to vector<8x8xbf16>
      %214 = vector.shape_cast %211 : vector<8x8xbf16> to vector<1x8x8xbf16>
      tpu.vector_store %arg18[%c3_110, %c0_111, %c0_112], %214 {strides = array<i32>} : memref<4x8x8xbf16, #tpu.memory_space<vmem>>, vector<1x8x8xbf16>,
      %215 = vector.extract_strided_slice %179 {offsets = [0, 56], sizes = [8, 8], strides = [1, 1]} : vector<8x64xf32> to vector<8x8xf32>
      %216 = arith.truncf %215 : vector<8x8xf32> to vector<8x8xbf16>
      %c3_113 = arith.constant 3 : index
      %c0_114 = arith.constant 0 : index
      %c0_115 = arith.constant 0 : index
      %217 = vector.load %arg19[%c3_113, %c0_114, %c0_115] : memref<4x8x8xbf16, #tpu.memory_space<vmem>>, vector<1x8x8xbf16>
      %218 = vector.shape_cast %217 : vector<1x8x8xbf16> to vector<8x8xbf16>
      %219 = vector.shape_cast %216 : vector<8x8xbf16> to vector<1x8x8xbf16>
      tpu.vector_store %arg19[%c3_113, %c0_114, %c0_115], %219 {strides = array<i32>} : memref<4x8x8xbf16, #tpu.memory_space<vmem>>, vector<1x8x8xbf16>,
    } else {
    }
    %c8_i32 = arith.constant 8 : i32
    %3 = arith.muli %arg1, %c8_i32 : i32
    %4 = tpu.assume_multiple %3, 8 : i32
    %c0 = arith.constant 0 : index
    %5 = arith.index_cast %4 : i32 to index
    %c0_1 = arith.constant 0 : index
    %6 = vector.load %arg2[%c0, %5, %c0_1] : memref<1x8x32xf32, #tpu.memory_space<vmem>>, vector<1x8x32xf32>
    %7 = vector.shape_cast %6 : vector<1x8x32xf32> to vector<8x32xf32>
    %8 = arith.truncf %7 : vector<8x32xf32> to vector<8x32xbf16>
    %c0_2 = arith.constant 0 : index
    %c0_3 = arith.constant 0 : index
    %9 = vector.load %arg3[%c0_2, %c0_3] : memref<32x32xbf16, #tpu.memory_space<vmem>>, vector<32x32xbf16>
    %cst = arith.constant dense<0.000000e+00> : vector<8x32xf32>
    %10 = tpu.matmul %8, %9, %cst {dimension_numbers = #tpu.dot_dimension_numbers<[1], [0], [0], [1], [0, 0, 1, 1], [], []>} : vector<8x32xbf16>, vector<32x32xbf16>, vector<8x32xf32> -> vector<8x32xf32>
    %c0_4 = arith.constant 0 : index
    %c0_5 = arith.constant 0 : index
    %11 = vector.load %arg4[%c0_4, %c0_5] : memref<1x32xf32, #tpu.memory_space<vmem>>, vector<1x32xf32>
    %12 = vector.broadcast %11 : vector<1x32xf32> to vector<8x32xf32>
    %13 = arith.addf %10, %12 : vector<8x32xf32>
    %14 = vector.extract_strided_slice %13 {offsets = [0, 0], sizes = [8, 8], strides = [1, 1]} : vector<8x32xf32> to vector<8x8xf32>
    %15 = arith.truncf %14 : vector<8x8xf32> to vector<8x8xbf16>
    %c0_6 = arith.constant 0 : index
    %c0_7 = arith.constant 0 : index
    %c0_8 = arith.constant 0 : index
    %16 = vector.load %arg18[%c0_6, %c0_7, %c0_8] : memref<4x8x8xbf16, #tpu.memory_space<vmem>>, vector<1x8x8xbf16>
    %17 = vector.shape_cast %16 : vector<1x8x8xbf16> to vector<8x8xbf16>
    %cst_9 = arith.constant dense<0.000000e+00> : vector<8x8xf32>
    %18 = tpu.matmul %15, %17, %cst_9 {dimension_numbers = #tpu.dot_dimension_numbers<[1], [1], [0], [0], [0, 0, 1, 0], [], []>} : vector<8x8xbf16>, vector<8x8xbf16>, vector<8x8xf32> -> vector<8x8xf32>
    %cst_10 = arith.constant 0.353553385 : f32
    %19 = vector.broadcast %cst_10 : f32 to vector<8x8xf32>
    %20 = arith.mulf %18, %19 : vector<8x8xf32>
    %cst_11 = arith.constant dense<0xFF800000> : vector<8xf32>
    %21 = vector.multi_reduction <maximumf>, %20, %cst_11 [1] : vector<8x8xf32> to vector<8xf32>
    %22 = vector.shape_cast %21 : vector<8xf32> to vector<8x1xf32>
    %23 = vector.broadcast %22 : vector<8x1xf32> to vector<8x8xf32>
    %24 = arith.subf %20, %23 : vector<8x8xf32>
    %25 = math.exp %24 : vector<8x8xf32>
    %cst_12 = arith.constant dense<0.000000e+00> : vector<8xf32>
    %26 = vector.multi_reduction <add>, %25, %cst_12 [1] : vector<8x8xf32> to vector<8xf32>
    %27 = vector.shape_cast %26 : vector<8xf32> to vector<8x1xf32>
    %28 = tpu.reciprocal %27 {approx = true} : vector<8x1xf32> -> vector<8x1xf32>
    %29 = vector.broadcast %28 : vector<8x1xf32> to vector<8x8xf32>
    %30 = arith.mulf %25, %29 : vector<8x8xf32>
    %31 = arith.truncf %30 : vector<8x8xf32> to vector<8x8xbf16>
    %c0_13 = arith.constant 0 : index
    %c0_14 = arith.constant 0 : index
    %c0_15 = arith.constant 0 : index
    %32 = vector.load %arg19[%c0_13, %c0_14, %c0_15] : memref<4x8x8xbf16, #tpu.memory_space<vmem>>, vector<1x8x8xbf16>
    %33 = vector.shape_cast %32 : vector<1x8x8xbf16> to vector<8x8xbf16>
    %cst_16 = arith.constant dense<0.000000e+00> : vector<8x8xf32>
    %34 = tpu.matmul %31, %33, %cst_16 {dimension_numbers = #tpu.dot_dimension_numbers<[1], [0], [0], [1], [0, 0, 1, 1], [], []>} : vector<8x8xbf16>, vector<8x8xbf16>, vector<8x8xf32> -> vector<8x8xf32>
    %35 = vector.extract_strided_slice %13 {offsets = [0, 8], sizes = [8, 8], strides = [1, 1]} : vector<8x32xf32> to vector<8x8xf32>
    %36 = arith.truncf %35 : vector<8x8xf32> to vector<8x8xbf16>
    %c1 = arith.constant 1 : index
    %c0_17 = arith.constant 0 : index
    %c0_18 = arith.constant 0 : index
    %37 = vector.load %arg18[%c1, %c0_17, %c0_18] : memref<4x8x8xbf16, #tpu.memory_space<vmem>>, vector<1x8x8xbf16>
    %38 = vector.shape_cast %37 : vector<1x8x8xbf16> to vector<8x8xbf16>
    %cst_19 = arith.constant dense<0.000000e+00> : vector<8x8xf32>
    %39 = tpu.matmul %36, %38, %cst_19 {dimension_numbers = #tpu.dot_dimension_numbers<[1], [1], [0], [0], [0, 0, 1, 0], [], []>} : vector<8x8xbf16>, vector<8x8xbf16>, vector<8x8xf32> -> vector<8x8xf32>
    %cst_20 = arith.constant 0.353553385 : f32
    %40 = vector.broadcast %cst_20 : f32 to vector<8x8xf32>
    %41 = arith.mulf %39, %40 : vector<8x8xf32>
    %cst_21 = arith.constant dense<0xFF800000> : vector<8xf32>
    %42 = vector.multi_reduction <maximumf>, %41, %cst_21 [1] : vector<8x8xf32> to vector<8xf32>
    %43 = vector.shape_cast %42 : vector<8xf32> to vector<8x1xf32>
    %44 = vector.broadcast %43 : vector<8x1xf32> to vector<8x8xf32>
    %45 = arith.subf %41, %44 : vector<8x8xf32>
    %46 = math.exp %45 : vector<8x8xf32>
    %cst_22 = arith.constant dense<0.000000e+00> : vector<8xf32>
    %47 = vector.multi_reduction <add>, %46, %cst_22 [1] : vector<8x8xf32> to vector<8xf32>
    %48 = vector.shape_cast %47 : vector<8xf32> to vector<8x1xf32>
    %49 = tpu.reciprocal %48 {approx = true} : vector<8x1xf32> -> vector<8x1xf32>
    %50 = vector.broadcast %49 : vector<8x1xf32> to vector<8x8xf32>
    %51 = arith.mulf %46, %50 : vector<8x8xf32>
    %52 = arith.truncf %51 : vector<8x8xf32> to vector<8x8xbf16>
    %c1_23 = arith.constant 1 : index
    %c0_24 = arith.constant 0 : index
    %c0_25 = arith.constant 0 : index
    %53 = vector.load %arg19[%c1_23, %c0_24, %c0_25] : memref<4x8x8xbf16, #tpu.memory_space<vmem>>, vector<1x8x8xbf16>
    %54 = vector.shape_cast %53 : vector<1x8x8xbf16> to vector<8x8xbf16>
    %cst_26 = arith.constant dense<0.000000e+00> : vector<8x8xf32>
    %55 = tpu.matmul %52, %54, %cst_26 {dimension_numbers = #tpu.dot_dimension_numbers<[1], [0], [0], [1], [0, 0, 1, 1], [], []>} : vector<8x8xbf16>, vector<8x8xbf16>, vector<8x8xf32> -> vector<8x8xf32>
    %56 = vector.extract_strided_slice %13 {offsets = [0, 16], sizes = [8, 8], strides = [1, 1]} : vector<8x32xf32> to vector<8x8xf32>
    %57 = arith.truncf %56 : vector<8x8xf32> to vector<8x8xbf16>
    %c2 = arith.constant 2 : index
    %c0_27 = arith.constant 0 : index
    %c0_28 = arith.constant 0 : index
    %58 = vector.load %arg18[%c2, %c0_27, %c0_28] : memref<4x8x8xbf16, #tpu.memory_space<vmem>>, vector<1x8x8xbf16>
    %59 = vector.shape_cast %58 : vector<1x8x8xbf16> to vector<8x8xbf16>
    %cst_29 = arith.constant dense<0.000000e+00> : vector<8x8xf32>
    %60 = tpu.matmul %57, %59, %cst_29 {dimension_numbers = #tpu.dot_dimension_numbers<[1], [1], [0], [0], [0, 0, 1, 0], [], []>} : vector<8x8xbf16>, vector<8x8xbf16>, vector<8x8xf32> -> vector<8x8xf32>
    %cst_30 = arith.constant 0.353553385 : f32
    %61 = vector.broadcast %cst_30 : f32 to vector<8x8xf32>
    %62 = arith.mulf %60, %61 : vector<8x8xf32>
    %cst_31 = arith.constant dense<0xFF800000> : vector<8xf32>
    %63 = vector.multi_reduction <maximumf>, %62, %cst_31 [1] : vector<8x8xf32> to vector<8xf32>
    %64 = vector.shape_cast %63 : vector<8xf32> to vector<8x1xf32>
    %65 = vector.broadcast %64 : vector<8x1xf32> to vector<8x8xf32>
    %66 = arith.subf %62, %65 : vector<8x8xf32>
    %67 = math.exp %66 : vector<8x8xf32>
    %cst_32 = arith.constant dense<0.000000e+00> : vector<8xf32>
    %68 = vector.multi_reduction <add>, %67, %cst_32 [1] : vector<8x8xf32> to vector<8xf32>
    %69 = vector.shape_cast %68 : vector<8xf32> to vector<8x1xf32>
    %70 = tpu.reciprocal %69 {approx = true} : vector<8x1xf32> -> vector<8x1xf32>
    %71 = vector.broadcast %70 : vector<8x1xf32> to vector<8x8xf32>
    %72 = arith.mulf %67, %71 : vector<8x8xf32>
    %73 = arith.truncf %72 : vector<8x8xf32> to vector<8x8xbf16>
    %c2_33 = arith.constant 2 : index
    %c0_34 = arith.constant 0 : index
    %c0_35 = arith.constant 0 : index
    %74 = vector.load %arg19[%c2_33, %c0_34, %c0_35] : memref<4x8x8xbf16, #tpu.memory_space<vmem>>, vector<1x8x8xbf16>
    %75 = vector.shape_cast %74 : vector<1x8x8xbf16> to vector<8x8xbf16>
    %cst_36 = arith.constant dense<0.000000e+00> : vector<8x8xf32>
    %76 = tpu.matmul %73, %75, %cst_36 {dimension_numbers = #tpu.dot_dimension_numbers<[1], [0], [0], [1], [0, 0, 1, 1], [], []>} : vector<8x8xbf16>, vector<8x8xbf16>, vector<8x8xf32> -> vector<8x8xf32>
    %77 = vector.extract_strided_slice %13 {offsets = [0, 24], sizes = [8, 8], strides = [1, 1]} : vector<8x32xf32> to vector<8x8xf32>
    %78 = arith.truncf %77 : vector<8x8xf32> to vector<8x8xbf16>
    %c3 = arith.constant 3 : index
    %c0_37 = arith.constant 0 : index
    %c0_38 = arith.constant 0 : index
    %79 = vector.load %arg18[%c3, %c0_37, %c0_38] : memref<4x8x8xbf16, #tpu.memory_space<vmem>>, vector<1x8x8xbf16>
    %80 = vector.shape_cast %79 : vector<1x8x8xbf16> to vector<8x8xbf16>
    %cst_39 = arith.constant dense<0.000000e+00> : vector<8x8xf32>
    %81 = tpu.matmul %78, %80, %cst_39 {dimension_numbers = #tpu.dot_dimension_numbers<[1], [1], [0], [0], [0, 0, 1, 0], [], []>} : vector<8x8xbf16>, vector<8x8xbf16>, vector<8x8xf32> -> vector<8x8xf32>
    %cst_40 = arith.constant 0.353553385 : f32
    %82 = vector.broadcast %cst_40 : f32 to vector<8x8xf32>
    %83 = arith.mulf %81, %82 : vector<8x8xf32>
    %cst_41 = arith.constant dense<0xFF800000> : vector<8xf32>
    %84 = vector.multi_reduction <maximumf>, %83, %cst_41 [1] : vector<8x8xf32> to vector<8xf32>
    %85 = vector.shape_cast %84 : vector<8xf32> to vector<8x1xf32>
    %86 = vector.broadcast %85 : vector<8x1xf32> to vector<8x8xf32>
    %87 = arith.subf %83, %86 : vector<8x8xf32>
    %88 = math.exp %87 : vector<8x8xf32>
    %cst_42 = arith.constant dense<0.000000e+00> : vector<8xf32>
    %89 = vector.multi_reduction <add>, %88, %cst_42 [1] : vector<8x8xf32> to vector<8xf32>
    %90 = vector.shape_cast %89 : vector<8xf32> to vector<8x1xf32>
    %91 = tpu.reciprocal %90 {approx = true} : vector<8x1xf32> -> vector<8x1xf32>
    %92 = vector.broadcast %91 : vector<8x1xf32> to vector<8x8xf32>
    %93 = arith.mulf %88, %92 : vector<8x8xf32>
    %94 = arith.truncf %93 : vector<8x8xf32> to vector<8x8xbf16>
    %c3_43 = arith.constant 3 : index
    %c0_44 = arith.constant 0 : index
    %c0_45 = arith.constant 0 : index
    %95 = vector.load %arg19[%c3_43, %c0_44, %c0_45] : memref<4x8x8xbf16, #tpu.memory_space<vmem>>, vector<1x8x8xbf16>
    %96 = vector.shape_cast %95 : vector<1x8x8xbf16> to vector<8x8xbf16>
    %cst_46 = arith.constant dense<0.000000e+00> : vector<8x8xf32>
    %97 = tpu.matmul %94, %96, %cst_46 {dimension_numbers = #tpu.dot_dimension_numbers<[1], [0], [0], [1], [0, 0, 1, 1], [], []>} : vector<8x8xbf16>, vector<8x8xbf16>, vector<8x8xf32> -> vector<8x8xf32>
    %98 = tpu.concatenate %34, %55, %76, %97 in 1 : vector<8x8xf32>, vector<8x8xf32>, vector<8x8xf32>, vector<8x8xf32> -> vector<8x32xf32>
    %99 = arith.truncf %98 : vector<8x32xf32> to vector<8x32xbf16>
    %c0_47 = arith.constant 0 : index
    %c0_48 = arith.constant 0 : index
    %100 = vector.load %arg7[%c0_47, %c0_48] : memref<32x32xbf16, #tpu.memory_space<vmem>>, vector<32x32xbf16>
    %cst_49 = arith.constant dense<0.000000e+00> : vector<8x32xf32>
    %101 = tpu.matmul %99, %100, %cst_49 {dimension_numbers = #tpu.dot_dimension_numbers<[1], [0], [0], [1], [0, 0, 1, 1], [], []>} : vector<8x32xbf16>, vector<32x32xbf16>, vector<8x32xf32> -> vector<8x32xf32>
    %c0_50 = arith.constant 0 : index
    %c0_51 = arith.constant 0 : index
    %102 = vector.load %arg8[%c0_50, %c0_51] : memref<1x32xf32, #tpu.memory_space<vmem>>, vector<1x32xf32>
    %103 = vector.broadcast %102 : vector<1x32xf32> to vector<8x32xf32>
    %104 = arith.addf %101, %103 : vector<8x32xf32>
    %105 = arith.addf %7, %104 : vector<8x32xf32>
    %c0_52 = arith.constant 0 : index
    %c0_53 = arith.constant 0 : index
    %106 = vector.load %arg13[%c0_52, %c0_53] : memref<1x32xf32, #tpu.memory_space<vmem>>, vector<1x32xf32>
    %c0_54 = arith.constant 0 : index
    %c0_55 = arith.constant 0 : index
    %107 = vector.load %arg14[%c0_54, %c0_55] : memref<1x32xf32, #tpu.memory_space<vmem>>, vector<1x32xf32>
    %cst_56 = arith.constant dense<0.000000e+00> : vector<8xf32>
    %108 = vector.multi_reduction <add>, %105, %cst_56 [1] : vector<8x32xf32> to vector<8xf32>
    %109 = vector.shape_cast %108 : vector<8xf32> to vector<8x1xf32>
    %cst_57 = arith.constant 3.200000e+01 : f32
    %110 = vector.broadcast %cst_57 : f32 to vector<8x1xf32>
    %111 = arith.divf %109, %110 : vector<8x1xf32>
    %112 = vector.broadcast %111 : vector<8x1xf32> to vector<8x32xf32>
    %113 = arith.subf %105, %112 : vector<8x32xf32>
    %114 = arith.mulf %113, %113 : vector<8x32xf32>
    %cst_58 = arith.constant dense<0.000000e+00> : vector<8xf32>
    %115 = vector.multi_reduction <add>, %114, %cst_58 [1] : vector<8x32xf32> to vector<8xf32>
    %116 = vector.shape_cast %115 : vector<8xf32> to vector<8x1xf32>
    %cst_59 = arith.constant 3.200000e+01 : f32
    %117 = vector.broadcast %cst_59 : f32 to vector<8x1xf32>
    %118 = arith.divf %116, %117 : vector<8x1xf32>
    %119 = vector.broadcast %111 : vector<8x1xf32> to vector<8x32xf32>
    %120 = arith.subf %105, %119 : vector<8x32xf32>
    %cst_60 = arith.constant 9.99999974E-6 : f32
    %121 = vector.broadcast %cst_60 : f32 to vector<8x1xf32>
    %122 = arith.addf %118, %121 : vector<8x1xf32>
    %123 = math.rsqrt %122 : vector<8x1xf32>
    %124 = vector.broadcast %123 : vector<8x1xf32> to vector<8x32xf32>
    %125 = arith.mulf %120, %124 : vector<8x32xf32>
    %126 = vector.broadcast %106 : vector<1x32xf32> to vector<8x32xf32>
    %127 = arith.mulf %125, %126 : vector<8x32xf32>
    %128 = vector.broadcast %107 : vector<1x32xf32> to vector<8x32xf32>
    %129 = arith.addf %127, %128 : vector<8x32xf32>
    %130 = arith.truncf %129 : vector<8x32xf32> to vector<8x32xbf16>
    %c0_61 = arith.constant 0 : index
    %c0_62 = arith.constant 0 : index
    %131 = vector.load %arg9[%c0_61, %c0_62] : memref<32x128xbf16, #tpu.memory_space<vmem>>, vector<32x128xbf16>
    %cst_63 = arith.constant dense<0.000000e+00> : vector<8x128xf32>
    %132 = tpu.matmul %130, %131, %cst_63 {dimension_numbers = #tpu.dot_dimension_numbers<[1], [0], [0], [1], [0, 0, 1, 1], [], []>} : vector<8x32xbf16>, vector<32x128xbf16>, vector<8x128xf32> -> vector<8x128xf32>
    %c0_64 = arith.constant 0 : index
    %c0_65 = arith.constant 0 : index
    %133 = vector.load %arg10[%c0_64, %c0_65] : memref<1x128xf32, #tpu.memory_space<vmem>>, vector<1x128xf32>
    %134 = vector.broadcast %133 : vector<1x128xf32> to vector<8x128xf32>
    %135 = arith.addf %132, %134 : vector<8x128xf32>
    %cst_66 = arith.constant 0.000000e+00 : f32
    %136 = vector.broadcast %cst_66 : f32 to vector<8x128xf32>
    %137 = arith.maximumf %135, %136 : vector<8x128xf32>
    %138 = arith.truncf %137 : vector<8x128xf32> to vector<8x128xbf16>
    %c0_67 = arith.constant 0 : index
    %c0_68 = arith.constant 0 : index
    %139 = vector.load %arg11[%c0_67, %c0_68] : memref<128x32xbf16, #tpu.memory_space<vmem>>, vector<128x32xbf16>
    %cst_69 = arith.constant dense<0.000000e+00> : vector<8x32xf32>
    %140 = tpu.matmul %138, %139, %cst_69 {dimension_numbers = #tpu.dot_dimension_numbers<[1], [0], [0], [1], [0, 0, 1, 1], [], []>} : vector<8x128xbf16>, vector<128x32xbf16>, vector<8x32xf32> -> vector<8x32xf32>
    %c0_70 = arith.constant 0 : index
    %c0_71 = arith.constant 0 : index
    %141 = vector.load %arg12[%c0_70, %c0_71] : memref<1x32xf32, #tpu.memory_space<vmem>>, vector<1x32xf32>
    %142 = vector.broadcast %141 : vector<1x32xf32> to vector<8x32xf32>
    %143 = arith.addf %140, %142 : vector<8x32xf32>
    %144 = arith.addf %129, %143 : vector<8x32xf32>
    %c0_72 = arith.constant 0 : index
    %c0_73 = arith.constant 0 : index
    %145 = vector.load %arg15[%c0_72, %c0_73] : memref<1x32xf32, #tpu.memory_space<vmem>>, vector<1x32xf32>
    %c0_74 = arith.constant 0 : index
    %c0_75 = arith.constant 0 : index
    %146 = vector.load %arg16[%c0_74, %c0_75] : memref<1x32xf32, #tpu.memory_space<vmem>>, vector<1x32xf32>
    %cst_76 = arith.constant dense<0.000000e+00> : vector<8xf32>
    %147 = vector.multi_reduction <add>, %144, %cst_76 [1] : vector<8x32xf32> to vector<8xf32>
    %148 = vector.shape_cast %147 : vector<8xf32> to vector<8x1xf32>
    %cst_77 = arith.constant 3.200000e+01 : f32
    %149 = vector.broadcast %cst_77 : f32 to vector<8x1xf32>
    %150 = arith.divf %148, %149 : vector<8x1xf32>
    %151 = vector.broadcast %150 : vector<8x1xf32> to vector<8x32xf32>
    %152 = arith.subf %144, %151 : vector<8x32xf32>
    %153 = arith.mulf %152, %152 : vector<8x32xf32>
    %cst_78 = arith.constant dense<0.000000e+00> : vector<8xf32>
    %154 = vector.multi_reduction <add>, %153, %cst_78 [1] : vector<8x32xf32> to vector<8xf32>
    %155 = vector.shape_cast %154 : vector<8xf32> to vector<8x1xf32>
    %cst_79 = arith.constant 3.200000e+01 : f32
    %156 = vector.broadcast %cst_79 : f32 to vector<8x1xf32>
    %157 = arith.divf %155, %156 : vector<8x1xf32>
    %158 = vector.broadcast %150 : vector<8x1xf32> to vector<8x32xf32>
    %159 = arith.subf %144, %158 : vector<8x32xf32>
    %cst_80 = arith.constant 9.99999974E-6 : f32
    %160 = vector.broadcast %cst_80 : f32 to vector<8x1xf32>
    %161 = arith.addf %157, %160 : vector<8x1xf32>
    %162 = math.rsqrt %161 : vector<8x1xf32>
    %163 = vector.broadcast %162 : vector<8x1xf32> to vector<8x32xf32>
    %164 = arith.mulf %159, %163 : vector<8x32xf32>
    %165 = vector.broadcast %145 : vector<1x32xf32> to vector<8x32xf32>
    %166 = arith.mulf %164, %165 : vector<8x32xf32>
    %167 = vector.broadcast %146 : vector<1x32xf32> to vector<8x32xf32>
    %168 = arith.addf %166, %167 : vector<8x32xf32>
    %c0_81 = arith.constant 0 : index
    %c0_82 = arith.constant 0 : index
    %c0_83 = arith.constant 0 : index
    %169 = vector.load %arg17[%c0_81, %c0_82, %c0_83] : memref<1x8x32xf32, #tpu.memory_space<vmem>>, vector<1x8x32xf32>
    %170 = vector.shape_cast %169 : vector<1x8x32xf32> to vector<8x32xf32>
    %171 = vector.shape_cast %168 : vector<8x32xf32> to vector<1x8x32xf32>
    tpu.vector_store %arg17[%c0_81, %c0_82, %c0_83], %171 {strides = array<i32>} : memref<1x8x32xf32, #tpu.memory_space<vmem>>, vector<1x8x32xf32>,
    return
  }
  func.func @transform_0(%arg0: i32, %arg1: i32) -> (i32, i32, i32) {
    %c0_i32 = arith.constant 0 : i32
    %c0_i32_0 = arith.constant 0 : i32
    %c0_i32_1 = arith.constant 0 : i32
    return %arg0, %c0_i32, %c0_i32_0 : i32, i32, i32
  }
  func.func @transform_1(%arg0: i32, %arg1: i32) -> (i32, i32) {
    %c0_i32 = arith.constant 0 : i32
    %c0_i32_0 = arith.constant 0 : i32
    %c0_i32_1 = arith.constant 0 : i32
    return %c0_i32, %c0_i32_0 : i32, i32
  }
  func.func @transform_2(%arg0: i32, %arg1: i32) -> (i32, i32) {
    %c0_i32 = arith.constant 0 : i32
    %c0_i32_0 = arith.constant 0 : i32
    %c0_i32_1 = arith.constant 0 : i32
    return %c0_i32, %c0_i32_0 : i32, i32
  }
  func.func @transform_3(%arg0: i32, %arg1: i32) -> (i32, i32) {
    %c0_i32 = arith.constant 0 : i32
    %c0_i32_0 = arith.constant 0 : i32
    %c0_i32_1 = arith.constant 0 : i32
    return %c0_i32, %c0_i32_0 : i32, i32
  }
  func.func @transform_4(%arg0: i32, %arg1: i32) -> (i32, i32) {
    %c0_i32 = arith.constant 0 : i32
    %c0_i32_0 = arith.constant 0 : i32
    %c0_i32_1 = arith.constant 0 : i32
    return %c0_i32, %c0_i32_0 : i32, i32
  }
  func.func @transform_5(%arg0: i32, %arg1: i32) -> (i32, i32) {
    %c0_i32 = arith.constant 0 : i32
    %c0_i32_0 = arith.constant 0 : i32
    %c0_i32_1 = arith.constant 0 : i32
    return %c0_i32, %c0_i32_0 : i32, i32
  }
  func.func @transform_6(%arg0: i32, %arg1: i32) -> (i32, i32) {
    %c0_i32 = arith.constant 0 : i32
    %c0_i32_0 = arith.constant 0 : i32
    %c0_i32_1 = arith.constant 0 : i32
    return %c0_i32, %c0_i32_0 : i32, i32
  }
  func.func @transform_7(%arg0: i32, %arg1: i32) -> (i32, i32) {
    %c0_i32 = arith.constant 0 : i32
    %c0_i32_0 = arith.constant 0 : i32
    %c0_i32_1 = arith.constant 0 : i32
    return %c0_i32, %c0_i32_0 : i32, i32
  }
  func.func @transform_8(%arg0: i32, %arg1: i32) -> (i32, i32) {
    %c0_i32 = arith.constant 0 : i32
    %c0_i32_0 = arith.constant 0 : i32
    %c0_i32_1 = arith.constant 0 : i32
    return %c0_i32, %c0_i32_0 : i32, i32
  }
  func.func @transform_9(%arg0: i32, %arg1: i32) -> (i32, i32) {
    %c0_i32 = arith.constant 0 : i32
    %c0_i32_0 = arith.constant 0 : i32
    %c0_i32_1 = arith.constant 0 : i32
    return %c0_i32, %c0_i32_0 : i32, i32
  }
  func.func @transform_10(%arg0: i32, %arg1: i32) -> (i32, i32) {
    %c0_i32 = arith.constant 0 : i32
    %c0_i32_0 = arith.constant 0 : i32
    %c0_i32_1 = arith.constant 0 : i32
    return %c0_i32, %c0_i32_0 : i32, i32
  }
  func.func @transform_11(%arg0: i32, %arg1: i32) -> (i32, i32) {
    %c0_i32 = arith.constant 0 : i32
    %c0_i32_0 = arith.constant 0 : i32
    %c0_i32_1 = arith.constant 0 : i32
    return %c0_i32, %c0_i32_0 : i32, i32
  }
  func.func @transform_12(%arg0: i32, %arg1: i32) -> (i32, i32) {
    %c0_i32 = arith.constant 0 : i32
    %c0_i32_0 = arith.constant 0 : i32
    %c0_i32_1 = arith.constant 0 : i32
    return %c0_i32, %c0_i32_0 : i32, i32
  }
  func.func @transform_13(%arg0: i32, %arg1: i32) -> (i32, i32) {
    %c0_i32 = arith.constant 0 : i32
    %c0_i32_0 = arith.constant 0 : i32
    %c0_i32_1 = arith.constant 0 : i32
    return %c0_i32, %c0_i32_0 : i32, i32
  }
  func.func @transform_14(%arg0: i32, %arg1: i32) -> (i32, i32) {
    %c0_i32 = arith.constant 0 : i32
    %c0_i32_0 = arith.constant 0 : i32
    %c0_i32_1 = arith.constant 0 : i32
    return %c0_i32, %c0_i32_0 : i32, i32
  }
  func.func @transform_15(%arg0: i32, %arg1: i32) -> (i32, i32, i32) {
    %c0_i32 = arith.constant 0 : i32
    %c0_i32_0 = arith.constant 0 : i32
    return %arg0, %arg1, %c0_i32 : i32, i32, i32
  }
}

</mosaic_0001>

<llo_original>
// kernel: tpu_custom_call.1
$region0: #{tpu_custom_call.1}
  #allocation0 [shape = 'u32[]', space=smem, size = 0x4, offset = 0x4, fixed_abs, tag = 'smem constant byte address 0x4 - core index']
  #allocation1 [shape = 'u32[144,128]{1,0:T(1,128)}', space=vmem, size = 0x12000, scoped, tag = 'internal scratch']
  #allocation2 [shape = 'bf16[4,8,8]{2,1,0:T(8,128)(2,1)}', space=vmem, size = 0x2000, scoped, tag = 'scratch operand']
  #allocation3 [shape = 'bf16[4,8,8]{2,1,0:T(8,128)(2,1)}', space=vmem, size = 0x2000, scoped, tag = 'scratch operand']
  %s0 = inlined_call_operand.vmem [shape: f32[2,8,32], index: 0, kind: input, shape index: {}]
  %s1 = inlined_call_operand.vmem [shape: bf16[32,32], index: 1, kind: input, shape index: {}]
  %s2 = inlined_call_operand.hbm [shape: f32[1,32], index: 2, kind: input, shape index: {}]
  %s3 = inlined_call_operand.vmem [shape: bf16[32,64], index: 3, kind: input, shape index: {}]
  %s4 = inlined_call_operand.hbm [shape: f32[1,64], index: 4, kind: input, shape index: {}]
  %s5 = inlined_call_operand.vmem [shape: bf16[32,32], index: 5, kind: input, shape index: {}]
  %s6 = inlined_call_operand.hbm [shape: f32[1,32], index: 6, kind: input, shape index: {}]
  %s7 = inlined_call_operand.vmem [shape: bf16[32,128], index: 7, kind: input, shape index: {}]
  %s8 = inlined_call_operand.hbm [shape: f32[1,128], index: 8, kind: input, shape index: {}]
  %s9 = inlined_call_operand.vmem [shape: bf16[128,32], index: 9, kind: input, shape index: {}]
  %s10 = inlined_call_operand.vmem [shape: f32[1,32], index: 10, kind: input, shape index: {}]
  %s11 = inlined_call_operand.vmem [shape: f32[1,32], index: 11, kind: input, shape index: {}]
  %s12 = inlined_call_operand.vmem [shape: f32[1,32], index: 12, kind: input, shape index: {}]
  %s13 = inlined_call_operand.vmem [shape: f32[1,32], index: 13, kind: input, shape index: {}]
  %s14 = inlined_call_operand.vmem [shape: f32[1,32], index: 14, kind: input, shape index: {}]
  %s15 = inlined_call_operand.hbm [shape: f32[2,8,32], index: 15, kind: output, shape index: {}]
  %s16 = sld [smem:[#allocation0]]
  $region113: #{tpu_custom_call.1} parent=0
    _
  %s18 = ssub.s32 1, %s16
  %s19 = scalar_select 0, %s18, %s16
  $region1: #{tpu_custom_call.1} parent=0
    #allocation4 [shape = 'u8[512]{0}', space=vmem, size = 0x400, scoped, tag = 'input window, operand 2, single buffered']
    #allocation5 [shape = 's32[2]{0}', space=sflag, size = 0x8, scoped, tag = 'scoped memory for tpu_custom_call.1']
    #allocation6 [shape = 's32[2]{0}', space=sflag, size = 0x8, scoped, tag = 'scoped memory for tpu_custom_call.1']
    #allocation7 [shape = 'u8[512]{0}', space=vmem, size = 0x400, scoped, tag = 'input window, operand 4, single buffered']
    #allocation8 [shape = 's32[1]{0}', space=sflag, size = 0x4, scoped, tag = 'scoped memory for tpu_custom_call.1']
    #allocation9 [shape = 'u8[512]{0}', space=vmem, size = 0x400, scoped, tag = 'input window, operand 6, single buffered']
    #allocation10 [shape = 'u8[512]{0}', space=vmem, size = 0x400, scoped, tag = 'input window, operand 8, single buffered']
    #allocation11 [shape = 's32[1]{0}', space=sflag, size = 0x4, scoped, tag = 'scoped memory for tpu_custom_call.1']
    #allocation12 [shape = 'u8[8192]{0}', space=vmem, size = 0x2000, scoped, tag = 'output window, operand 0']
    %20 = vsyncpa [#allocation5], 0
    %21 = vsyncpa [#allocation8], 0
    %22 = vsyncpa [#allocation11], 0
    %23 = vsyncpa [#allocation6], 0
    %s24 = scalar_lea.sflag [#allocation6], 1
    %25 = vsyncpa %s24, 0
    loop: start=0, step=1, limit=4
    $region2: #{tpu_custom_call.1} parent=1 // loop_pre_header
      _
    $region3: #{tpu_custom_call.1} parent=1 // loop_header
      %s27 = sphi 0, %s31
      %p28 = scmp.ge.s32.totalorder %s27, 4
      %s34 = sphi 0, %s46
      %s35 = sphi 0, %s42
      %s36 = sphi 0, %s34
      %s37 = sphi 0, %s35
      %s38 = sphi 0, %s36
      %s39 = sphi 0, %s37
      %s49 = sphi 0, %s51
      %s52 = sphi 0, %s49
      %s53 = sphi 0, %s52
      %s69 = sphi 0, %s53
      %s73 = sphi 0, %s73
      %s75 = sphi 0, %s73
      %s76 = sphi 0, %s75
      %s90 = sphi 0, %s76
      %s94 = sphi 0, %s94
      %s96 = sphi 0, %s94
      %s97 = sphi 0, %s96
      %s111 = sphi 0, %s97
      %s115 = sphi 0, %s115
      %s117 = sphi 0, %s115
      %s118 = sphi 0, %s117
      %s132 = sphi 0, %s118
      %s136 = sphi 0, %s136
      %s138 = sphi 0, %s136
      %s139 = sphi 0, %s138
      %s153 = sphi 0, %s139
      %s157 = sphi 0, %s157
      %s159 = sphi 0, %s157
      %s160 = sphi 0, %s159
      %s174 = sphi 0, %s160
      %s178 = sphi 0, %s178
      %s180 = sphi 0, %s178
      %s181 = sphi 0, %s180
      %s195 = sphi 0, %s181
      %s199 = sphi 0, %s199
      %s201 = sphi 0, %s199
      %s202 = sphi 0, %s201
      %s216 = sphi 0, %s202
      %s220 = sphi 0, %s220
      %s222 = sphi 0, %s220
      %s223 = sphi 0, %s222
      %s237 = sphi 0, %s223
      %s241 = sphi 0, %s241
      %s243 = sphi 0, %s241
      %s244 = sphi 0, %s243
      %s258 = sphi 0, %s244
      %s262 = sphi 0, %s262
      %s264 = sphi 0, %s262
      %s265 = sphi 0, %s264
      %s279 = sphi 0, %s265
      %s283 = sphi 0, %s283
      %s285 = sphi 0, %s283
      %s286 = sphi 0, %s285
      %s300 = sphi 0, %s286
      %s304 = sphi 0, %s304
      %s306 = sphi 0, %s304
      %s307 = sphi 0, %s306
      %s321 = sphi 0, %s307
      %s325 = sphi 0, %s325
      %s327 = sphi 0, %s325
      %s328 = sphi 0, %s327
      %s342 = sphi 0, %s328
      %s346 = sphi 0, %s346
      %s348 = sphi 0, %s346
      %s349 = sphi 0, %s348
      %s363 = sphi 0, %s349
      %s371 = sphi 0, %s373
      %s374 = sphi 0, %s371
      %s375 = sphi 0, %s374
      %s391 = sphi 0, %s375
    $region4: #{tpu_custom_call.1} parent=1 // loop_header_branch
      %30 = sbr.rel (%p28) target = $region8
    $region5: #{tpu_custom_call.1} parent=1 // loop_body
      %s32 = ssub.s32 %s27, 1
      %s33 = ssub.s32 %s27, 2
      %s40 = sadd.s32 1, %s35
      %p41 = scmp.ge.s32.totalorder %s40, 1
      %s42 = scalar_select %p41, 0, %s40
      %s43 = sadd.s32 1, %s34
      %s44 = scalar_select %p41, %s43, %s34
      %p45 = scmp.ge.s32.totalorder %s44, 2
      %s46 = scalar_select %p45, 0, %s44
      %s47 = ssub.s32 %s34, %s46
      %p48 = scmp.eq.s32.totalorder %s47, 0
      %s50 = sadd.s32 %s49, 1
      %s51 = scalar_select %p48, %s49, %s50
      %p54 = pneg %p48
      %p55 = scmp.eq.s32.totalorder %s27, 1
      %p56 = por %p54, %p55
      %p57 = scmp.ne.s32.totalorder %s49, %s52
      %p58 = scmp.eq.s32.totalorder %s27, 0
      %p59 = por %p57, %p58
      %p60 = scmp.ne.s32.totalorder %s49, %s52
      %p61 = scmp.eq.s32.totalorder %s32, 1
      %p62 = por %p60, %p61
      %p63 = scmp.ne.s32.totalorder %s52, %s53
      %p64 = scmp.eq.s32.totalorder %s32, 0
      %p65 = por %p63, %p64
      %p66 = scmp.ne.s32.totalorder %s52, %s53
      %p67 = scmp.eq.s32.totalorder %s33, 1
      %p68 = por %p66, %p67
      %p70 = scmp.ne.s32.totalorder %s53, %s69
      %p71 = scmp.eq.s32.totalorder %s33, 0
      %p72 = por %p70, %p71
      %s74 = sadd.s32 %s73, 1
      %p77 = scmp.eq.s32.totalorder %s27, 1
      %p78 = scmp.ne.s32.totalorder %s73, %s75
      %p79 = scmp.eq.s32.totalorder %s27, 0
      %p80 = por %p78, %p79
      %p81 = scmp.ne.s32.totalorder %s73, %s75
      %p82 = scmp.eq.s32.totalorder %s32, 1
      %p83 = por %p81, %p82
      %p84 = scmp.ne.s32.totalorder %s75, %s76
      %p85 = scmp.eq.s32.totalorder %s32, 0
      %p86 = por %p84, %p85
      %p87 = scmp.ne.s32.totalorder %s75, %s76
      %p88 = scmp.eq.s32.totalorder %s33, 1
      %p89 = por %p87, %p88
      %p91 = scmp.ne.s32.totalorder %s76, %s90
      %p92 = scmp.eq.s32.totalorder %s33, 0
      %p93 = por %p91, %p92
      %s95 = sadd.s32 %s94, 1
      %p98 = scmp.eq.s32.totalorder %s27, 1
      %p99 = scmp.ne.s32.totalorder %s94, %s96
      %p100 = scmp.eq.s32.totalorder %s27, 0
      %p101 = por %p99, %p100
      %p102 = scmp.ne.s32.totalorder %s94, %s96
      %p103 = scmp.eq.s32.totalorder %s32, 1
      %p104 = por %p102, %p103
      %p105 = scmp.ne.s32.totalorder %s96, %s97
      %p106 = scmp.eq.s32.totalorder %s32, 0
      %p107 = por %p105, %p106
      %p108 = scmp.ne.s32.totalorder %s96, %s97
      %p109 = scmp.eq.s32.totalorder %s33, 1
      %p110 = por %p108, %p109
      %p112 = scmp.ne.s32.totalorder %s97, %s111
      %p113 = scmp.eq.s32.totalorder %s33, 0
      %p114 = por %p112, %p113
      %s116 = sadd.s32 %s115, 1
      %p119 = scmp.eq.s32.totalorder %s27, 1
      %p120 = scmp.ne.s32.totalorder %s115, %s117
      %p121 = scmp.eq.s32.totalorder %s27, 0
      %p122 = por %p120, %p121
      %p123 = scmp.ne.s32.totalorder %s115, %s117
      %p124 = scmp.eq.s32.totalorder %s32, 1
      %p125 = por %p123, %p124
      %p126 = scmp.ne.s32.totalorder %s117, %s118
      %p127 = scmp.eq.s32.totalorder %s32, 0
      %p128 = por %p126, %p127
      %p129 = scmp.ne.s32.totalorder %s117, %s118
      %p130 = scmp.eq.s32.totalorder %s33, 1
      %p131 = por %p129, %p130
      %p133 = scmp.ne.s32.totalorder %s118, %s132
      %p134 = scmp.eq.s32.totalorder %s33, 0
      %p135 = por %p133, %p134
      %s137 = sadd.s32 %s136, 1
      %p140 = scmp.eq.s32.totalorder %s27, 1
      %p141 = scmp.ne.s32.totalorder %s136, %s138
      %p142 = scmp.eq.s32.totalorder %s27, 0
      %p143 = por %p141, %p142
      %p144 = scmp.ne.s32.totalorder %s136, %s138
      %p145 = scmp.eq.s32.totalorder %s32, 1
      %p146 = por %p144, %p145
      %p147 = scmp.ne.s32.totalorder %s138, %s139
      %p148 = scmp.eq.s32.totalorder %s32, 0
      %p149 = por %p147, %p148
      %p150 = scmp.ne.s32.totalorder %s138, %s139
      %p151 = scmp.eq.s32.totalorder %s33, 1
      %p152 = por %p150, %p151
      %p154 = scmp.ne.s32.totalorder %s139, %s153
      %p155 = scmp.eq.s32.totalorder %s33, 0
      %p156 = por %p154, %p155
      %s158 = sadd.s32 %s157, 1
      %p161 = scmp.eq.s32.totalorder %s27, 1
      %p162 = scmp.ne.s32.totalorder %s157, %s159
      %p163 = scmp.eq.s32.totalorder %s27, 0
      %p164 = por %p162, %p163
      %p165 = scmp.ne.s32.totalorder %s157, %s159
      %p166 = scmp.eq.s32.totalorder %s32, 1
      %p167 = por %p165, %p166
      %p168 = scmp.ne.s32.totalorder %s159, %s160
      %p169 = scmp.eq.s32.totalorder %s32, 0
      %p170 = por %p168, %p169
      %p171 = scmp.ne.s32.totalorder %s159, %s160
      %p172 = scmp.eq.s32.totalorder %s33, 1
      %p173 = por %p171, %p172
      %p175 = scmp.ne.s32.totalorder %s160, %s174
      %p176 = scmp.eq.s32.totalorder %s33, 0
      %p177 = por %p175, %p176
      %s179 = sadd.s32 %s178, 1
      %p182 = scmp.eq.s32.totalorder %s27, 1
      %p183 = scmp.ne.s32.totalorder %s178, %s180
      %p184 = scmp.eq.s32.totalorder %s27, 0
      %p185 = por %p183, %p184
      %p186 = scmp.ne.s32.totalorder %s178, %s180
      %p187 = scmp.eq.s32.totalorder %s32, 1
      %p188 = por %p186, %p187
      %p189 = scmp.ne.s32.totalorder %s180, %s181
      %p190 = scmp.eq.s32.totalorder %s32, 0
      %p191 = por %p189, %p190
      %p192 = scmp.ne.s32.totalorder %s180, %s181
      %p193 = scmp.eq.s32.totalorder %s33, 1
      %p194 = por %p192, %p193
      %p196 = scmp.ne.s32.totalorder %s181, %s195
      %p197 = scmp.eq.s32.totalorder %s33, 0
      %p198 = por %p196, %p197
      %s200 = sadd.s32 %s199, 1
      %p203 = scmp.eq.s32.totalorder %s27, 1
      %p204 = scmp.ne.s32.totalorder %s199, %s201
      %p205 = scmp.eq.s32.totalorder %s27, 0
      %p206 = por %p204, %p205
      %p207 = scmp.ne.s32.totalorder %s199, %s201
      %p208 = scmp.eq.s32.totalorder %s32, 1
      %p209 = por %p207, %p208
      %p210 = scmp.ne.s32.totalorder %s201, %s202
      %p211 = scmp.eq.s32.totalorder %s32, 0
      %p212 = por %p210, %p211
      %p213 = scmp.ne.s32.totalorder %s201, %s202
      %p214 = scmp.eq.s32.totalorder %s33, 1
      %p215 = por %p213, %p214
      %p217 = scmp.ne.s32.totalorder %s202, %s216
      %p218 = scmp.eq.s32.totalorder %s33, 0
      %p219 = por %p217, %p218
      %s221 = sadd.s32 %s220, 1
      %p224 = scmp.eq.s32.totalorder %s27, 1
      %p225 = scmp.ne.s32.totalorder %s220, %s222
      %p226 = scmp.eq.s32.totalorder %s27, 0
      %p227 = por %p225, %p226
      %p228 = scmp.ne.s32.totalorder %s220, %s222
      %p229 = scmp.eq.s32.totalorder %s32, 1
      %p230 = por %p228, %p229
      %p231 = scmp.ne.s32.totalorder %s222, %s223
      %p232 = scmp.eq.s32.totalorder %s32, 0
      %p233 = por %p231, %p232
      %p234 = scmp.ne.s32.totalorder %s222, %s223
      %p235 = scmp.eq.s32.totalorder %s33, 1
      %p236 = por %p234, %p235
      %p238 = scmp.ne.s32.totalorder %s223, %s237
      %p239 = scmp.eq.s32.totalorder %s33, 0
      %p240 = por %p238, %p239
      %s242 = sadd.s32 %s241, 1
      %p245 = scmp.eq.s32.totalorder %s27, 1
      %p246 = scmp.ne.s32.totalorder %s241, %s243
      %p247 = scmp.eq.s32.totalorder %s27, 0
      %p248 = por %p246, %p247
      %p249 = scmp.ne.s32.totalorder %s241, %s243
      %p250 = scmp.eq.s32.totalorder %s32, 1
      %p251 = por %p249, %p250
      %p252 = scmp.ne.s32.totalorder %s243, %s244
      %p253 = scmp.eq.s32.totalorder %s32, 0
      %p254 = por %p252, %p253
      %p255 = scmp.ne.s32.totalorder %s243, %s244
      %p256 = scmp.eq.s32.totalorder %s33, 1
      %p257 = por %p255, %p256
      %p259 = scmp.ne.s32.totalorder %s244, %s258
      %p260 = scmp.eq.s32.totalorder %s33, 0
      %p261 = por %p259, %p260
      %s263 = sadd.s32 %s262, 1
      %p266 = scmp.eq.s32.totalorder %s27, 1
      %p267 = scmp.ne.s32.totalorder %s262, %s264
      %p268 = scmp.eq.s32.totalorder %s27, 0
      %p269 = por %p267, %p268
      %p270 = scmp.ne.s32.totalorder %s262, %s264
      %p271 = scmp.eq.s32.totalorder %s32, 1
      %p272 = por %p270, %p271
      %p273 = scmp.ne.s32.totalorder %s264, %s265
      %p274 = scmp.eq.s32.totalorder %s32, 0
      %p275 = por %p273, %p274
      %p276 = scmp.ne.s32.totalorder %s264, %s265
      %p277 = scmp.eq.s32.totalorder %s33, 1
      %p278 = por %p276, %p277
      %p280 = scmp.ne.s32.totalorder %s265, %s279
      %p281 = scmp.eq.s32.totalorder %s33, 0
      %p282 = por %p280, %p281
      %s284 = sadd.s32 %s283, 1
      %p287 = scmp.eq.s32.totalorder %s27, 1
      %p288 = scmp.ne.s32.totalorder %s283, %s285
      %p289 = scmp.eq.s32.totalorder %s27, 0
      %p290 = por %p288, %p289
      %p291 = scmp.ne.s32.totalorder %s283, %s285
      %p292 = scmp.eq.s32.totalorder %s32, 1
      %p293 = por %p291, %p292
      %p294 = scmp.ne.s32.totalorder %s285, %s286
      %p295 = scmp.eq.s32.totalorder %s32, 0
      %p296 = por %p294, %p295
      %p297 = scmp.ne.s32.totalorder %s285, %s286
      %p298 = scmp.eq.s32.totalorder %s33, 1
      %p299 = por %p297, %p298
      %p301 = scmp.ne.s32.totalorder %s286, %s300
      %p302 = scmp.eq.s32.totalorder %s33, 0
      %p303 = por %p301, %p302
      %s305 = sadd.s32 %s304, 1
      %p308 = scmp.eq.s32.totalorder %s27, 1
      %p309 = scmp.ne.s32.totalorder %s304, %s306
      %p310 = scmp.eq.s32.totalorder %s27, 0
      %p311 = por %p309, %p310
      %p312 = scmp.ne.s32.totalorder %s304, %s306
      %p313 = scmp.eq.s32.totalorder %s32, 1
      %p314 = por %p312, %p313
      %p315 = scmp.ne.s32.totalorder %s306, %s307
      %p316 = scmp.eq.s32.totalorder %s32, 0
      %p317 = por %p315, %p316
      %p318 = scmp.ne.s32.totalorder %s306, %s307
      %p319 = scmp.eq.s32.totalorder %s33, 1
      %p320 = por %p318, %p319
      %p322 = scmp.ne.s32.totalorder %s307, %s321
      %p323 = scmp.eq.s32.totalorder %s33, 0
      %p324 = por %p322, %p323
      %s326 = sadd.s32 %s325, 1
      %p329 = scmp.eq.s32.totalorder %s27, 1
      %p330 = scmp.ne.s32.totalorder %s325, %s327
      %p331 = scmp.eq.s32.totalorder %s27, 0
      %p332 = por %p330, %p331
      %p333 = scmp.ne.s32.totalorder %s325, %s327
      %p334 = scmp.eq.s32.totalorder %s32, 1
      %p335 = por %p333, %p334
      %p336 = scmp.ne.s32.totalorder %s327, %s328
      %p337 = scmp.eq.s32.totalorder %s32, 0
      %p338 = por %p336, %p337
      %p339 = scmp.ne.s32.totalorder %s327, %s328
      %p340 = scmp.eq.s32.totalorder %s33, 1
      %p341 = por %p339, %p340
      %p343 = scmp.ne.s32.totalorder %s328, %s342
      %p344 = scmp.eq.s32.totalorder %s33, 0
      %p345 = por %p343, %p344
      %s347 = sadd.s32 %s346, 1
      %p350 = scmp.eq.s32.totalorder %s27, 1
      %p351 = scmp.ne.s32.totalorder %s346, %s348
      %p352 = scmp.eq.s32.totalorder %s27, 0
      %p353 = por %p351, %p352
      %p354 = scmp.ne.s32.totalorder %s346, %s348
      %p355 = scmp.eq.s32.totalorder %s32, 1
      %p356 = por %p354, %p355
      %p357 = scmp.ne.s32.totalorder %s348, %s349
      %p358 = scmp.eq.s32.totalorder %s32, 0
      %p359 = por %p357, %p358
      %p360 = scmp.ne.s32.totalorder %s348, %s349
      %p361 = scmp.eq.s32.totalorder %s33, 1
      %p362 = por %p360, %p361
      %p364 = scmp.ne.s32.totalorder %s349, %s363
      %p365 = scmp.eq.s32.totalorder %s33, 0
      %p366 = por %p364, %p365
      %s367 = ssub.s32 %s34, %s46
      %s368 = ssub.s32 %s35, %s42
      %s369 = sor.u32 %s367, %s368
      %p370 = scmp.eq.s32.totalorder %s369, 0
      %s372 = sadd.s32 %s371, 1
      %s373 = scalar_select %p370, %s371, %s372
      %p376 = pneg %p370
      %p377 = scmp.eq.s32.totalorder %s27, 1
      %p378 = por %p376, %p377
      %p379 = scmp.ne.s32.totalorder %s371, %s374
      %p380 = scmp.eq.s32.totalorder %s27, 0
      %p381 = por %p379, %p380
      %p382 = scmp.ne.s32.totalorder %s371, %s374
      %p383 = scmp.eq.s32.totalorder %s32, 1
      %p384 = por %p382, %p383
      %p385 = scmp.ne.s32.totalorder %s374, %s375
      %p386 = scmp.eq.s32.totalorder %s32, 0
      %p387 = por %p385, %p386
      %p388 = scmp.ne.s32.totalorder %s374, %s375
      %p389 = scmp.eq.s32.totalorder %s33, 1
      %p390 = por %p388, %p389
      %p392 = scmp.ne.s32.totalorder %s375, %s391
      %p393 = scmp.eq.s32.totalorder %s33, 0
      %p394 = por %p392, %p393
      %p395 = scmp.le.s32.totalorder 1, %s27
      %p396 = scmp.lt.s32.totalorder %s27, 3
      %p397 = pnand %p395, %p396
      %p398 = pneg %p397
      // Predicated region
      $region9: #{tpu_custom_call.1} parent=5 // pred_check
        _
      $region10: #{tpu_custom_call.1} parent=5 // pred_check_branch
        %400 = sbr.rel (%p397) target = $region12
      $region11: #{tpu_custom_call.1} parent=5 // pred_region
        %s401 = ssub.s32 %s27, 1
        // Predicated region
        $region13: #{tpu_custom_call.1} parent=11 // pred_check
          %p402 = pneg %p86
        $region14: #{tpu_custom_call.1} parent=11 // pred_check_branch
          %404 = sbr.rel (%p402) target = $region16
        $region15: #{tpu_custom_call.1} parent=11 // pred_region
          _
        $region16: #{tpu_custom_call.1} parent=11 // pred_fallthru
          _
        // Predicated region
        $region17: #{tpu_custom_call.1} parent=11 // pred_check
          %p405 = pneg %p107
        $region18: #{tpu_custom_call.1} parent=11 // pred_check_branch
          %407 = sbr.rel (%p405) target = $region20
        $region19: #{tpu_custom_call.1} parent=11 // pred_region
          %s409 = ssub.s32 16, 16
          %410 = vsyncadd [#allocation5], %s409
          %s412 = sshll.u32 [#allocation4], 4
          %s413 = int_to_ptr.vmem [resolvable:$true] %s412
          %415 = dma.hbm_to_vmem [thread:$0]  %s2, 16, %s413, [#allocation5]
        $region20: #{tpu_custom_call.1} parent=11 // pred_fallthru
          _
        // Predicated region
        $region21: #{tpu_custom_call.1} parent=11 // pred_check
          %p416 = pneg %p128
        $region22: #{tpu_custom_call.1} parent=11 // pred_check_branch
          %418 = sbr.rel (%p416) target = $region24
        $region23: #{tpu_custom_call.1} parent=11 // pred_region
          _
        $region24: #{tpu_custom_call.1} parent=11 // pred_fallthru
          _
        // Predicated region
        $region25: #{tpu_custom_call.1} parent=11 // pred_check
          %p419 = pneg %p149
        $region26: #{tpu_custom_call.1} parent=11 // pred_check_branch
          %421 = sbr.rel (%p419) target = $region28
        $region27: #{tpu_custom_call.1} parent=11 // pred_region
          %s423 = ssub.s32 16, 16
          %424 = vsyncadd [#allocation8], %s423
          %s426 = sshll.u32 [#allocation7], 4
          %s427 = int_to_ptr.vmem [resolvable:$true] %s426
          %429 = dma.hbm_to_vmem [thread:$0]  %s4, 16, %s427, [#allocation8]
        $region28: #{tpu_custom_call.1} parent=11 // pred_fallthru
          _
        // Predicated region
        $region29: #{tpu_custom_call.1} parent=11 // pred_check
          %p430 = pneg %p170
        $region30: #{tpu_custom_call.1} parent=11 // pred_check_branch
          %432 = sbr.rel (%p430) target = $region32
        $region31: #{tpu_custom_call.1} parent=11 // pred_region
          _
        $region32: #{tpu_custom_call.1} parent=11 // pred_fallthru
          _
        // Predicated region
        $region33: #{tpu_custom_call.1} parent=11 // pred_check
          %p433 = pneg %p191
        $region34: #{tpu_custom_call.1} parent=11 // pred_check_branch
          %435 = sbr.rel (%p433) target = $region36
        $region35: #{tpu_custom_call.1} parent=11 // pred_region
          %s437 = ssub.s32 16, 16
          %438 = vsyncadd [#allocation8], %s437
          %s440 = sshll.u32 [#allocation9], 4
          %s441 = int_to_ptr.vmem [resolvable:$true] %s440
          %443 = dma.hbm_to_vmem [thread:$0]  %s6, 16, %s441, [#allocation8]
        $region36: #{tpu_custom_call.1} parent=11 // pred_fallthru
          _
        // Predicated region
        $region37: #{tpu_custom_call.1} parent=11 // pred_check
          %p444 = pneg %p212
        $region38: #{tpu_custom_call.1} parent=11 // pred_check_branch
          %446 = sbr.rel (%p444) target = $region40
        $region39: #{tpu_custom_call.1} parent=11 // pred_region
          _
        $region40: #{tpu_custom_call.1} parent=11 // pred_fallthru
          _
        // Predicated region
        $region41: #{tpu_custom_call.1} parent=11 // pred_check
          %p447 = pneg %p233
        $region42: #{tpu_custom_call.1} parent=11 // pred_check_branch
          %449 = sbr.rel (%p447) target = $region44
        $region43: #{tpu_custom_call.1} parent=11 // pred_region
          %s451 = ssub.s32 16, 16
          %452 = vsyncadd [#allocation11], %s451
          %s454 = sshll.u32 [#allocation10], 4
          %s455 = int_to_ptr.vmem [resolvable:$true] %s454
          %457 = dma.hbm_to_vmem [thread:$0]  %s8, 16, %s455, [#allocation11]
        $region44: #{tpu_custom_call.1} parent=11 // pred_fallthru
          _
        // Predicated region
        $region45: #{tpu_custom_call.1} parent=11 // pred_check
          %p458 = pneg %p254
        $region46: #{tpu_custom_call.1} parent=11 // pred_check_branch
          %460 = sbr.rel (%p458) target = $region48
        $region47: #{tpu_custom_call.1} parent=11 // pred_region
          _
        $region48: #{tpu_custom_call.1} parent=11 // pred_fallthru
          _
        // Predicated region
        $region49: #{tpu_custom_call.1} parent=11 // pred_check
          %p461 = pneg %p275
        $region50: #{tpu_custom_call.1} parent=11 // pred_check_branch
          %463 = sbr.rel (%p461) target = $region52
        $region51: #{tpu_custom_call.1} parent=11 // pred_region
          _
        $region52: #{tpu_custom_call.1} parent=11 // pred_fallthru
          _
        // Predicated region
        $region53: #{tpu_custom_call.1} parent=11 // pred_check
          %p464 = pneg %p296
        $region54: #{tpu_custom_call.1} parent=11 // pred_check_branch
          %466 = sbr.rel (%p464) target = $region56
        $region55: #{tpu_custom_call.1} parent=11 // pred_region
          _
        $region56: #{tpu_custom_call.1} parent=11 // pred_fallthru
          _
        // Predicated region
        $region57: #{tpu_custom_call.1} parent=11 // pred_check
          %p467 = pneg %p317
        $region58: #{tpu_custom_call.1} parent=11 // pred_check_branch
          %469 = sbr.rel (%p467) target = $region60
        $region59: #{tpu_custom_call.1} parent=11 // pred_region
          _
        $region60: #{tpu_custom_call.1} parent=11 // pred_fallthru
          _
        // Predicated region
        $region61: #{tpu_custom_call.1} parent=11 // pred_check
          %p470 = pneg %p338
        $region62: #{tpu_custom_call.1} parent=11 // pred_check_branch
          %472 = sbr.rel (%p470) target = $region64
        $region63: #{tpu_custom_call.1} parent=11 // pred_region
          _
        $region64: #{tpu_custom_call.1} parent=11 // pred_fallthru
          _
        // Predicated region
        $region65: #{tpu_custom_call.1} parent=11 // pred_check
          %p473 = pneg %p359
        $region66: #{tpu_custom_call.1} parent=11 // pred_check_branch
          %475 = sbr.rel (%p473) target = $region68
        $region67: #{tpu_custom_call.1} parent=11 // pred_region
          _
        $region68: #{tpu_custom_call.1} parent=11 // pred_fallthru
          _
      $region12: #{tpu_custom_call.1} parent=5 // pred_fallthru
        _
      %p476 = scmp.lt.s32.totalorder %s27, 2
      // Predicated region
      $region69: #{tpu_custom_call.1} parent=5 // pred_check
        %p477 = pneg %p476
      $region70: #{tpu_custom_call.1} parent=5 // pred_check_branch
        %479 = sbr.rel (%p477) target = $region72
      $region71: #{tpu_custom_call.1} parent=5 // pred_region
        // Predicated region
        $region73: #{tpu_custom_call.1} parent=71 // pred_check
          %p480 = pneg %p59
        $region74: #{tpu_custom_call.1} parent=71 // pred_check_branch
          %482 = sbr.rel (%p480) target = $region76
        $region75: #{tpu_custom_call.1} parent=71 // pred_region
          %p483 = scmp.lt.s32.totalorder %s34, 1
          %s484 = scalar_select %p483, %s34, 1
          %s485 = smul.addr %s484, 8
          %s486 = scalar_lea.vmem %s0, %s485
        $region76: #{tpu_custom_call.1} parent=71 // pred_fallthru
          _
      $region72: #{tpu_custom_call.1} parent=5 // pred_fallthru
        _
      %p487 = scmp.le.s32.totalorder 1, %s27
      %p488 = scmp.lt.s32.totalorder %s27, 3
      %p489 = pnand %p487, %p488
      %p490 = pneg %p489
      // Predicated region
      $region77: #{tpu_custom_call.1} parent=5 // pred_check
        _
      $region78: #{tpu_custom_call.1} parent=5 // pred_check_branch
        %492 = sbr.rel (%p489) target = $region80
      $region79: #{tpu_custom_call.1} parent=5 // pred_region
        %s493 = ssub.s32 %s27, 1
        // Predicated region
        $region81: #{tpu_custom_call.1} parent=79 // pred_check
          %p494 = pneg %p107
        $region82: #{tpu_custom_call.1} parent=79 // pred_check_branch
          %496 = sbr.rel (%p494) target = $region84
        $region83: #{tpu_custom_call.1} parent=79 // pred_region
          %497 = dma.done [#allocation5], 16
        $region84: #{tpu_custom_call.1} parent=79 // pred_fallthru
          _
        // Predicated region
        $region85: #{tpu_custom_call.1} parent=79 // pred_check
          %p498 = pneg %p149
        $region86: #{tpu_custom_call.1} parent=79 // pred_check_branch
          %500 = sbr.rel (%p498) target = $region88
        $region87: #{tpu_custom_call.1} parent=79 // pred_region
          %501 = dma.done [#allocation8], 16
        $region88: #{tpu_custom_call.1} parent=79 // pred_fallthru
          _
        // Predicated region
        $region89: #{tpu_custom_call.1} parent=79 // pred_check
          %p502 = pneg %p191
        $region90: #{tpu_custom_call.1} parent=79 // pred_check_branch
          %504 = sbr.rel (%p502) target = $region92
        $region91: #{tpu_custom_call.1} parent=79 // pred_region
          %505 = dma.done [#allocation8], 16
        $region92: #{tpu_custom_call.1} parent=79 // pred_fallthru
          _
        // Predicated region
        $region93: #{tpu_custom_call.1} parent=79 // pred_check
          %p506 = pneg %p233
        $region94: #{tpu_custom_call.1} parent=79 // pred_check_branch
          %508 = sbr.rel (%p506) target = $region96
        $region95: #{tpu_custom_call.1} parent=79 // pred_region
          %509 = dma.done [#allocation11], 16
        $region96: #{tpu_custom_call.1} parent=79 // pred_fallthru
          _
        %p510 = scmp.lt.s32.totalorder %s36, 1
        %s511 = scalar_select %p510, %s36, 1
        %s512 = smul.addr %s511, 8
        %s513 = scalar_lea.vmem %s0, %s512
        %p514 = pneg %p65
        %p515 = pneg %p62
        %p516 = pneg %p86
        %p517 = pneg %p83
        %p518 = pneg %p107
        %p519 = pneg %p104
        %p520 = pneg %p128
        %p521 = pneg %p125
        %p522 = pneg %p149
        %p523 = pneg %p146
        %p524 = pneg %p170
        %p525 = pneg %p167
        %p526 = pneg %p191
        %p527 = pneg %p188
        %p528 = pneg %p212
        %p529 = pneg %p209
        %p530 = pneg %p233
        %p531 = pneg %p230
        %p532 = pneg %p254
        %p533 = pneg %p251
        %p534 = pneg %p275
        %p535 = pneg %p272
        %p536 = pneg %p296
        %p537 = pneg %p293
        %p538 = pneg %p317
        %p539 = pneg %p314
        %p540 = pneg %p338
        %p541 = pneg %p335
        %p542 = pneg %p359
        %p543 = pneg %p356
        %p544 = pneg %p387
        %p545 = pneg %p384
        %s546 = sand.u32 %s374, 1
        %s547 = scalar_lea.sflag [#allocation6], %s546
        %s548 = sand.u32 %s374, 1
        %s549 = smul.addr %s548, 8
        %s550 = scalar_lea.vmem [#allocation12], %s549
        %p551 = scmp.lt.s32.totalorder %s36, 1
        %s552 = scalar_select %p551, %s36, 1
        %s553 = smul.addr %s552, 8
        %s554 = scalar_lea.vmem %s0, %s553
        %p556 = scmp.eq.s32.totalorder %s37, 0
        // Predicated region
        $region97: #{tpu_custom_call.1} parent=79 // pred_check
          %p557 = pneg %p556
        $region98: #{tpu_custom_call.1} parent=79 // pred_check_branch
          %559 = sbr.rel (%p557) target = $region100
        $region99: #{tpu_custom_call.1} parent=79 // pred_region
          %v560 = vld [vmem:[%s554] sm:$0xff]
          %v561 = vpack.c.bf16 %v560, %v560
          %v562 = vld [vmem:[%s3] sm:$0xf]
          %v563 = vld [vmem:[%s3 + $0x4] sm:$0xf]
          %v564 = vld [vmem:[%s3 + $0x8] sm:$0xf]
          %v565 = vld [vmem:[%s3 + $0xc] sm:$0xf]
          %v566 = vld [vmem:[#allocation7] sm:$0x1]
          %v568 = vlaneseq
          %v569 = vshrl.u32 %v568, 7
          %v570 = vsub.s32 0, %v569
          %v571 = vrot.slane %v566, %v570
          %v577 = vunpack.c.l.b16 %v562
          %v578 = vunpack.c.l.b16 %v563
          %v579 = vunpack.c.l.b16 %v564
          %v580 = vunpack.c.l.b16 %v565
          %v581 = vpack.c.b16 %v578, %v577
          %v582 = vpack.c.b16 %v580, %v579
          %vm585 = vcmask 261120
          %v587 = vsel %vm585, %v561, 0
          %589 = vmatprep.subr.bf16.mxu0 0
          %590 = vmatpush1.bf16.msra.mxu0 0
          %591 = vmatprep.subr.bf16.mxu0 0
          %592 = vmatpush1.bf16.msra.mxu0 0
          %593 = vmatprep.subr.bf16.mxu0 0
          %594 = vmatpush1.bf16.msra.mxu0 0
          %595 = vmatprep.subr.bf16.mxu0 0
          %596 = vmatpush1.bf16.msra.mxu0 0
          %597 = vmatprep.subr.bf16.mxu0 0
          %598 = vmatpush1.bf16.msra.mxu0 0
          %599 = vmatprep.subr.bf16.mxu0 0
          %600 = vmatpush1.bf16.msra.mxu0 0
          %601 = vmatprep.subr.bf16.mxu0 0
          %602 = vmatpush1.bf16.msra.mxu0 %v582
          %603 = vmatprep.subr.bf16.mxu0 0
          %604 = vmatpush1.bf16.msra.mxu0 %v581
          %605 = vmatprep.subr.bf16.mxu0 0
          %606 = vmatpush2.bf16.msra.mxu0 0
          %607 = vmatprep.subr.bf16.mxu0 0
          %608 = vmatpush2.bf16.msra.mxu0 0
          %609 = vmatprep.subr.bf16.mxu0 0
          %610 = vmatpush2.bf16.msra.mxu0 0
          %611 = vmatprep.subr.bf16.mxu0 0
          %612 = vmatpush2.bf16.msra.mxu0 0
          %613 = vmatprep.subr.bf16.mxu0 0
          %614 = vmatpush2.bf16.msra.mxu0 0
          %615 = vmatprep.subr.bf16.mxu0 0
          %616 = vmatpush2.bf16.msra.mxu0 0
          %617 = vmatprep.subr.bf16.mxu0 0
          %618 = vmatpush2.bf16.msra.mxu0 0
          %619 = vmatprep.subr.bf16.mxu0 0
          %620 = vmatpush2.bf16.msra.mxu0 0
          %621 = vmatprep.mubr.bf16.mxu0 0
          %622 = vmatmul.mubr.bf16.gmra.mxu0 %v587
          %v623 = vpop.f32.mrf.mxu0
          %v624 = vadd.f32 %v571, %v623
          %v625 = vpop.f32.mrf.mxu0
          %v626 = vpop.f32.mrf.mxu0
          %v627 = vpop.f32.mrf.mxu0
          %628 = vdwg.mxu0
          %v629 = vpack.c.bf16 %v624, %v624
          %vm630 = vcmask 60416
          %631 = vst.msk [vmem:[#allocation2] sm:$0xf] %vm630, %v629
          %v633 = vunpack.c.l.b16 %v629
          %v634 = vpack.c.b16 %v633, %v633
          %635 = vrot.lane.b32.xlu0 %v634, 96
          %v636 = vpop.permute.xlu0 %635
          %638 = vst.msk [vmem:[#allocation3] sm:$0xf] %vm630, %v636
          %639 = vrot.lane.b32.xlu0 %v634, 120
          %v640 = vpop.permute.xlu0 %639
          %s642 = scalar_lea.vmem [#allocation2], 4
          %643 = vst.msk [vmem:[%s642] sm:$0xf] %vm630, %v640
          %644 = vrot.lane.b32.xlu0 %v634, 88
          %v645 = vpop.permute.xlu0 %644
          %s647 = scalar_lea.vmem [#allocation3], 4
          %648 = vst.msk [vmem:[%s647] sm:$0xf] %vm630, %v645
          %649 = vrot.lane.b32.xlu0 %v634, 112
          %v650 = vpop.permute.xlu0 %649
          %s652 = scalar_lea.vmem [#allocation2], 8
          %653 = vst.msk [vmem:[%s652] sm:$0xf] %vm630, %v650
          %654 = vrot.lane.b32.xlu0 %v634, 80
          %v655 = vpop.permute.xlu0 %654
          %s657 = scalar_lea.vmem [#allocation3], 8
          %658 = vst.msk [vmem:[%s657] sm:$0xf] %vm630, %v655
          %659 = vrot.lane.b32.xlu0 %v634, 104
          %v660 = vpop.permute.xlu0 %659
          %s662 = scalar_lea.vmem [#allocation2], 12
          %663 = vst.msk [vmem:[%s662] sm:$0xf] %vm630, %v660
          %664 = vrot.lane.b32.xlu0 %v634, 72
          %v665 = vpop.permute.xlu0 %664
          %s667 = scalar_lea.vmem [#allocation3], 12
          %668 = vst.msk [vmem:[%s667] sm:$0xf] %vm630, %v665
        $region100: #{tpu_custom_call.1} parent=79 // pred_fallthru
          _
        %s669 = smul.u32 %s37, 8
        %s670 = scalar_lea.vmem %s554, %s669
        %v671 = vld [vmem:[%s670] sm:$0xff]
        %v672 = vpack.c.bf16 %v671, %v671
        %v673 = vld [vmem:[%s1] sm:$0xf]
        %v674 = vld [vmem:[%s1 + $0x4] sm:$0xf]
        %v675 = vld [vmem:[%s1 + $0x8] sm:$0xf]
        %v676 = vld [vmem:[%s1 + $0xc] sm:$0xf]
        %v677 = vld [vmem:[#allocation4] sm:$0x1]
        %v679 = vlaneseq
        %v680 = vshrl.u32 %v679, 7
        %v681 = vsub.s32 0, %v680
        %v682 = vrot.slane %v677, %v681
        %v688 = vunpack.c.l.b16 %v673
        %v689 = vunpack.c.l.b16 %v674
        %v690 = vunpack.c.l.b16 %v675
        %v691 = vunpack.c.l.b16 %v676
        %v692 = vpack.c.b16 %v689, %v688
        %v693 = vpack.c.b16 %v691, %v690
        %vm696 = vcmask 261120
        %v698 = vsel %vm696, %v672, 0
        %700 = vmatprep.subr.bf16.mxu0 0
        %701 = vmatpush1.bf16.msra.mxu0 0
        %702 = vmatprep.subr.bf16.mxu0 0
        %703 = vmatpush1.bf16.msra.mxu0 0
        %704 = vmatprep.subr.bf16.mxu0 0
        %705 = vmatpush1.bf16.msra.mxu0 0
        %706 = vmatprep.subr.bf16.mxu0 0
        %707 = vmatpush1.bf16.msra.mxu0 0
        %708 = vmatprep.subr.bf16.mxu0 0
        %709 = vmatpush1.bf16.msra.mxu0 0
        %710 = vmatprep.subr.bf16.mxu0 0
        %711 = vmatpush1.bf16.msra.mxu0 0
        %712 = vmatprep.subr.bf16.mxu0 0
        %713 = vmatpush1.bf16.msra.mxu0 %v693
        %714 = vmatprep.subr.bf16.mxu0 0
        %715 = vmatpush1.bf16.msra.mxu0 %v692
        %716 = vmatprep.subr.bf16.mxu0 0
        %717 = vmatpush2.bf16.msra.mxu0 0
        %718 = vmatprep.subr.bf16.mxu0 0
        %719 = vmatpush2.bf16.msra.mxu0 0
        %720 = vmatprep.subr.bf16.mxu0 0
        %721 = vmatpush2.bf16.msra.mxu0 0
        %722 = vmatprep.subr.bf16.mxu0 0
        %723 = vmatpush2.bf16.msra.mxu0 0
        %724 = vmatprep.subr.bf16.mxu0 0
        %725 = vmatpush2.bf16.msra.mxu0 0
        %726 = vmatprep.subr.bf16.mxu0 0
        %727 = vmatpush2.bf16.msra.mxu0 0
        %728 = vmatprep.subr.bf16.mxu0 0
        %729 = vmatpush2.bf16.msra.mxu0 0
        %730 = vmatprep.subr.bf16.mxu0 0
        %731 = vmatpush2.bf16.msra.mxu0 0
        %732 = vmatprep.mubr.bf16.mxu0 0
        %733 = vmatmul.mubr.bf16.gmra.mxu0 %v698
        %v734 = vpop.f32.mrf.mxu0
        %v735 = vadd.f32 %v682, %v734
        %v736 = vpop.f32.mrf.mxu0
        %v737 = vpop.f32.mrf.mxu0
        %v738 = vpop.f32.mrf.mxu0
        %739 = vdwg.mxu0
        %v740 = vpack.c.bf16 %v735, %v735
        %v741 = vld [vmem:[#allocation2] sm:$0xf]
        %vm742 = vcmask 64512
        %v744 = vsel %vm742, %v740, 0
        %v747 = vsel %vm742, %v741, 0
        %749 = vmatprep.subr.bf16.mxu0 0
        %750 = vmatpush1.bf16.xpose.msra.mxu0 0
        %751 = vmatprep.subr.bf16.mxu0 0
        %752 = vmatpush1.bf16.xpose.msra.mxu0 0
        %753 = vmatprep.subr.bf16.mxu0 0
        %754 = vmatpush1.bf16.xpose.msra.mxu0 0
        %755 = vmatprep.subr.bf16.mxu0 0
        %756 = vmatpush1.bf16.xpose.msra.mxu0 0
        %757 = vmatprep.subr.bf16.mxu0 0
        %758 = vmatpush1.bf16.xpose.msra.mxu0 0
        %759 = vmatprep.subr.bf16.mxu0 0
        %760 = vmatpush1.bf16.xpose.msra.mxu0 0
        %761 = vmatprep.subr.bf16.mxu0 0
        %762 = vmatpush1.bf16.xpose.msra.mxu0 0
        %763 = vmatprep.subr.bf16.mxu0 0
        %764 = vmatpush1.bf16.xpose.msra.mxu0 %v747
        %765 = vmatprep.subr.bf16.mxu0 0
        %766 = vmatpush2.bf16.xpose.msra.mxu0 0
        %767 = vmatprep.subr.bf16.mxu0 0
        %768 = vmatpush2.bf16.xpose.msra.mxu0 0
        %769 = vmatprep.subr.bf16.mxu0 0
        %770 = vmatpush2.bf16.xpose.msra.mxu0 0
        %771 = vmatprep.subr.bf16.mxu0 0
        %772 = vmatpush2.bf16.xpose.msra.mxu0 0
        %773 = vmatprep.subr.bf16.mxu0 0
        %774 = vmatpush2.bf16.xpose.msra.mxu0 0
        %775 = vmatprep.subr.bf16.mxu0 0
        %776 = vmatpush2.bf16.xpose.msra.mxu0 0
        %777 = vmatprep.subr.bf16.mxu0 0
        %778 = vmatpush2.bf16.xpose.msra.mxu0 0
        %779 = vmatprep.subr.bf16.mxu0 0
        %780 = vmatpush2.bf16.xpose.msra.mxu0 0
        %781 = vmatprep.mubr.bf16.mxu0 0
        %782 = vmatmul.mubr.bf16.gmra.mxu0 %v744
        %v783 = vpop.f32.mrf.mxu0
        %v784 = vadd.f32 0.0, %v783
        %v785 = vpop.f32.mrf.mxu0
        %v786 = vpop.f32.mrf.mxu0
        %v787 = vpop.f32.mrf.mxu0
        %788 = vdwg.mxu0
        %v789 = vmul.f32 %v784, 0.35355338
        %v790 = vsel %vm742, %v789, -inf
        %791 = vmax.xlane.f32.xlu0 %v790
        %v792 = vpop.xlane.xlu0 %791
        %v793 = vsub.f32 %v789, %v792
        %v794 = vmul.f32 %v793, 1.442695
        %v795 = vpow.pop %v794
        %v796 = vsel %vm742, %v795, 0.0
        %797 = vadd.xlane.f32.xlu0 %v796
        %v798 = vpop.xlane.xlu0 %797
        %v799 = vrcp.pop %v798
        %v800 = vmul.f32 %v795, %v799
        %v801 = vpack.c.bf16 %v800, %v800
        %v802 = vld [vmem:[#allocation3] sm:$0xf]
        %v804 = vsel %vm742, %v801, 0
        %vm806 = vcmask 1043456
        %v808 = vsel %vm806, %v802, 0
        %810 = vmatprep.subr.bf16.mxu0 0
        %811 = vmatpush1.bf16.msra.mxu0 0
        %812 = vmatprep.subr.bf16.mxu0 0
        %813 = vmatpush1.bf16.msra.mxu0 0
        %814 = vmatprep.subr.bf16.mxu0 0
        %815 = vmatpush1.bf16.msra.mxu0 0
        %816 = vmatprep.subr.bf16.mxu0 0
        %817 = vmatpush1.bf16.msra.mxu0 0
        %818 = vmatprep.subr.bf16.mxu0 0
        %819 = vmatpush1.bf16.msra.mxu0 0
        %820 = vmatprep.subr.bf16.mxu0 0
        %821 = vmatpush1.bf16.msra.mxu0 0
        %822 = vmatprep.subr.bf16.mxu0 0
        %823 = vmatpush1.bf16.msra.mxu0 0
        %824 = vmatprep.subr.bf16.mxu0 0
        %825 = vmatpush1.bf16.msra.mxu0 %v808
        %826 = vmatprep.subr.bf16.mxu0 0
        %827 = vmatpush2.bf16.msra.mxu0 0
        %828 = vmatprep.subr.bf16.mxu0 0
        %829 = vmatpush2.bf16.msra.mxu0 0
        %830 = vmatprep.subr.bf16.mxu0 0
        %831 = vmatpush2.bf16.msra.mxu0 0
        %832 = vmatprep.subr.bf16.mxu0 0
        %833 = vmatpush2.bf16.msra.mxu0 0
        %834 = vmatprep.subr.bf16.mxu0 0
        %835 = vmatpush2.bf16.msra.mxu0 0
        %836 = vmatprep.subr.bf16.mxu0 0
        %837 = vmatpush2.bf16.msra.mxu0 0
        %838 = vmatprep.subr.bf16.mxu0 0
        %839 = vmatpush2.bf16.msra.mxu0 0
        %840 = vmatprep.subr.bf16.mxu0 0
        %841 = vmatpush2.bf16.msra.mxu0 0
        %842 = vmatprep.mubr.bf16.mxu0 0
        %843 = vmatmul.mubr.bf16.gmra.mxu0 %v804
        %v844 = vpop.f32.mrf.mxu0
        %v845 = vadd.f32 0.0, %v844
        %v846 = vpop.f32.mrf.mxu0
        %v847 = vpop.f32.mrf.mxu0
        %v848 = vpop.f32.mrf.mxu0
        %849 = vdwg.mxu0
        %s850 = scalar_lea.vmem [#allocation2], 4
        %v851 = vld [vmem:[%s850] sm:$0xf]
        %853 = vrot.lane.b32.xlu0 %v740, 120
        %v854 = vpop.permute.xlu0 %853
        %v856 = vsel %vm742, %v854, 0
        %v859 = vsel %vm742, %v851, 0
        %861 = vmatprep.subr.bf16.mxu0 0
        %862 = vmatpush1.bf16.xpose.msra.mxu0 0
        %863 = vmatprep.subr.bf16.mxu0 0
        %864 = vmatpush1.bf16.xpose.msra.mxu0 0
        %865 = vmatprep.subr.bf16.mxu0 0
        %866 = vmatpush1.bf16.xpose.msra.mxu0 0
        %867 = vmatprep.subr.bf16.mxu0 0
        %868 = vmatpush1.bf16.xpose.msra.mxu0 0
        %869 = vmatprep.subr.bf16.mxu0 0
        %870 = vmatpush1.bf16.xpose.msra.mxu0 0
        %871 = vmatprep.subr.bf16.mxu0 0
        %872 = vmatpush1.bf16.xpose.msra.mxu0 0
        %873 = vmatprep.subr.bf16.mxu0 0
        %874 = vmatpush1.bf16.xpose.msra.mxu0 0
        %875 = vmatprep.subr.bf16.mxu0 0
        %876 = vmatpush1.bf16.xpose.msra.mxu0 %v859
        %877 = vmatprep.subr.bf16.mxu0 0
        %878 = vmatpush2.bf16.xpose.msra.mxu0 0
        %879 = vmatprep.subr.bf16.mxu0 0
        %880 = vmatpush2.bf16.xpose.msra.mxu0 0
        %881 = vmatprep.subr.bf16.mxu0 0
        %882 = vmatpush2.bf16.xpose.msra.mxu0 0
        %883 = vmatprep.subr.bf16.mxu0 0
        %884 = vmatpush2.bf16.xpose.msra.mxu0 0
        %885 = vmatprep.subr.bf16.mxu0 0
        %886 = vmatpush2.bf16.xpose.msra.mxu0 0
        %887 = vmatprep.subr.bf16.mxu0 0
        %888 = vmatpush2.bf16.xpose.msra.mxu0 0
        %889 = vmatprep.subr.bf16.mxu0 0
        %890 = vmatpush2.bf16.xpose.msra.mxu0 0
        %891 = vmatprep.subr.bf16.mxu0 0
        %892 = vmatpush2.bf16.xpose.msra.mxu0 0
        %893 = vmatprep.mubr.bf16.mxu0 0
        %894 = vmatmul.mubr.bf16.gmra.mxu0 %v856
        %v895 = vpop.f32.mrf.mxu0
        %v896 = vadd.f32 0.0, %v895
        %v897 = vpop.f32.mrf.mxu0
        %v898 = vpop.f32.mrf.mxu0
        %v899 = vpop.f32.mrf.mxu0
        %900 = vdwg.mxu0
        %v901 = vmul.f32 %v896, 0.35355338
        %v902 = vsel %vm742, %v901, -inf
        %903 = vmax.xlane.f32.xlu0 %v902
        %v904 = vpop.xlane.xlu0 %903
        %v905 = vsub.f32 %v901, %v904
        %v906 = vmul.f32 %v905, 1.442695
        %v907 = vpow.pop %v906
        %v908 = vsel %vm742, %v907, 0.0
        %909 = vadd.xlane.f32.xlu0 %v908
        %v910 = vpop.xlane.xlu0 %909
        %v911 = vrcp.pop %v910
        %v912 = vmul.f32 %v907, %v911
        %v913 = vpack.c.bf16 %v912, %v912
        %s914 = scalar_lea.vmem [#allocation3], 4
        %v915 = vld [vmem:[%s914] sm:$0xf]
        %v917 = vsel %vm742, %v913, 0
        %v920 = vsel %vm806, %v915, 0
        %922 = vmatprep.subr.bf16.mxu0 0
        %923 = vmatpush1.bf16.msra.mxu0 0
        %924 = vmatprep.subr.bf16.mxu0 0
        %925 = vmatpush1.bf16.msra.mxu0 0
        %926 = vmatprep.subr.bf16.mxu0 0
        %927 = vmatpush1.bf16.msra.mxu0 0
        %928 = vmatprep.subr.bf16.mxu0 0
        %929 = vmatpush1.bf16.msra.mxu0 0
        %930 = vmatprep.subr.bf16.mxu0 0
        %931 = vmatpush1.bf16.msra.mxu0 0
        %932 = vmatprep.subr.bf16.mxu0 0
        %933 = vmatpush1.bf16.msra.mxu0 0
        %934 = vmatprep.subr.bf16.mxu0 0
        %935 = vmatpush1.bf16.msra.mxu0 0
        %936 = vmatprep.subr.bf16.mxu0 0
        %937 = vmatpush1.bf16.msra.mxu0 %v920
        %938 = vmatprep.subr.bf16.mxu0 0
        %939 = vmatpush2.bf16.msra.mxu0 0
        %940 = vmatprep.subr.bf16.mxu0 0
        %941 = vmatpush2.bf16.msra.mxu0 0
        %942 = vmatprep.subr.bf16.mxu0 0
        %943 = vmatpush2.bf16.msra.mxu0 0
        %944 = vmatprep.subr.bf16.mxu0 0
        %945 = vmatpush2.bf16.msra.mxu0 0
        %946 = vmatprep.subr.bf16.mxu0 0
        %947 = vmatpush2.bf16.msra.mxu0 0
        %948 = vmatprep.subr.bf16.mxu0 0
        %949 = vmatpush2.bf16.msra.mxu0 0
        %950 = vmatprep.subr.bf16.mxu0 0
        %951 = vmatpush2.bf16.msra.mxu0 0
        %952 = vmatprep.subr.bf16.mxu0 0
        %953 = vmatpush2.bf16.msra.mxu0 0
        %954 = vmatprep.mubr.bf16.mxu0 0
        %955 = vmatmul.mubr.bf16.gmra.mxu0 %v917
        %v956 = vpop.f32.mrf.mxu0
        %v957 = vadd.f32 0.0, %v956
        %v958 = vpop.f32.mrf.mxu0
        %v959 = vpop.f32.mrf.mxu0
        %v960 = vpop.f32.mrf.mxu0
        %961 = vdwg.mxu0
        %s962 = scalar_lea.vmem [#allocation2], 8
        %v963 = vld [vmem:[%s962] sm:$0xf]
        %964 = vrot.lane.b32.xlu0 %v740, 112
        %v965 = vpop.permute.xlu0 %964
        %v967 = vsel %vm742, %v965, 0
        %v970 = vsel %vm742, %v963, 0
        %972 = vmatprep.subr.bf16.mxu0 0
        %973 = vmatpush1.bf16.xpose.msra.mxu0 0
        %974 = vmatprep.subr.bf16.mxu0 0
        %975 = vmatpush1.bf16.xpose.msra.mxu0 0
        %976 = vmatprep.subr.bf16.mxu0 0
        %977 = vmatpush1.bf16.xpose.msra.mxu0 0
        %978 = vmatprep.subr.bf16.mxu0 0
        %979 = vmatpush1.bf16.xpose.msra.mxu0 0
        %980 = vmatprep.subr.bf16.mxu0 0
        %981 = vmatpush1.bf16.xpose.msra.mxu0 0
        %982 = vmatprep.subr.bf16.mxu0 0
        %983 = vmatpush1.bf16.xpose.msra.mxu0 0
        %984 = vmatprep.subr.bf16.mxu0 0
        %985 = vmatpush1.bf16.xpose.msra.mxu0 0
        %986 = vmatprep.subr.bf16.mxu0 0
        %987 = vmatpush1.bf16.xpose.msra.mxu0 %v970
        %988 = vmatprep.subr.bf16.mxu0 0
        %989 = vmatpush2.bf16.xpose.msra.mxu0 0
        %990 = vmatprep.subr.bf16.mxu0 0
        %991 = vmatpush2.bf16.xpose.msra.mxu0 0
        %992 = vmatprep.subr.bf16.mxu0 0
        %993 = vmatpush2.bf16.xpose.msra.mxu0 0
        %994 = vmatprep.subr.bf16.mxu0 0
        %995 = vmatpush2.bf16.xpose.msra.mxu0 0
        %996 = vmatprep.subr.bf16.mxu0 0
        %997 = vmatpush2.bf16.xpose.msra.mxu0 0
        %998 = vmatprep.subr.bf16.mxu0 0
        %999 = vmatpush2.bf16.xpose.msra.mxu0 0
        %1000 = vmatprep.subr.bf16.mxu0 0
        %1001 = vmatpush2.bf16.xpose.msra.mxu0 0
        %1002 = vmatprep.subr.bf16.mxu0 0
        %1003 = vmatpush2.bf16.xpose.msra.mxu0 0
        %1004 = vmatprep.mubr.bf16.mxu0 0
        %1005 = vmatmul.mubr.bf16.gmra.mxu0 %v967
        %v1006 = vpop.f32.mrf.mxu0
        %v1007 = vadd.f32 0.0, %v1006
        %v1008 = vpop.f32.mrf.mxu0
        %v1009 = vpop.f32.mrf.mxu0
        %v1010 = vpop.f32.mrf.mxu0
        %1011 = vdwg.mxu0
        %v1012 = vmul.f32 %v1007, 0.35355338
        %v1013 = vsel %vm742, %v1012, -inf
        %1014 = vmax.xlane.f32.xlu0 %v1013
        %v1015 = vpop.xlane.xlu0 %1014
        %v1016 = vsub.f32 %v1012, %v1015
        %v1017 = vmul.f32 %v1016, 1.442695
        %v1018 = vpow.pop %v1017
        %v1019 = vsel %vm742, %v1018, 0.0
        %1020 = vadd.xlane.f32.xlu0 %v1019
        %v1021 = vpop.xlane.xlu0 %1020
        %v1022 = vrcp.pop %v1021
        %v1023 = vmul.f32 %v1018, %v1022
        %v1024 = vpack.c.bf16 %v1023, %v1023
        %s1025 = scalar_lea.vmem [#allocation3], 8
        %v1026 = vld [vmem:[%s1025] sm:$0xf]
        %v1028 = vsel %vm742, %v1024, 0
        %v1031 = vsel %vm806, %v1026, 0
        %1033 = vmatprep.subr.bf16.mxu0 0
        %1034 = vmatpush1.bf16.msra.mxu0 0
        %1035 = vmatprep.subr.bf16.mxu0 0
        %1036 = vmatpush1.bf16.msra.mxu0 0
        %1037 = vmatprep.subr.bf16.mxu0 0
        %1038 = vmatpush1.bf16.msra.mxu0 0
        %1039 = vmatprep.subr.bf16.mxu0 0
        %1040 = vmatpush1.bf16.msra.mxu0 0
        %1041 = vmatprep.subr.bf16.mxu0 0
        %1042 = vmatpush1.bf16.msra.mxu0 0
        %1043 = vmatprep.subr.bf16.mxu0 0
        %1044 = vmatpush1.bf16.msra.mxu0 0
        %1045 = vmatprep.subr.bf16.mxu0 0
        %1046 = vmatpush1.bf16.msra.mxu0 0
        %1047 = vmatprep.subr.bf16.mxu0 0
        %1048 = vmatpush1.bf16.msra.mxu0 %v1031
        %1049 = vmatprep.subr.bf16.mxu0 0
        %1050 = vmatpush2.bf16.msra.mxu0 0
        %1051 = vmatprep.subr.bf16.mxu0 0
        %1052 = vmatpush2.bf16.msra.mxu0 0
        %1053 = vmatprep.subr.bf16.mxu0 0
        %1054 = vmatpush2.bf16.msra.mxu0 0
        %1055 = vmatprep.subr.bf16.mxu0 0
        %1056 = vmatpush2.bf16.msra.mxu0 0
        %1057 = vmatprep.subr.bf16.mxu0 0
        %1058 = vmatpush2.bf16.msra.mxu0 0
        %1059 = vmatprep.subr.bf16.mxu0 0
        %1060 = vmatpush2.bf16.msra.mxu0 0
        %1061 = vmatprep.subr.bf16.mxu0 0
        %1062 = vmatpush2.bf16.msra.mxu0 0
        %1063 = vmatprep.subr.bf16.mxu0 0
        %1064 = vmatpush2.bf16.msra.mxu0 0
        %1065 = vmatprep.mubr.bf16.mxu0 0
        %1066 = vmatmul.mubr.bf16.gmra.mxu0 %v1028
        %v1067 = vpop.f32.mrf.mxu0
        %v1068 = vadd.f32 0.0, %v1067
        %v1069 = vpop.f32.mrf.mxu0
        %v1070 = vpop.f32.mrf.mxu0
        %v1071 = vpop.f32.mrf.mxu0
        %1072 = vdwg.mxu0
        %s1073 = scalar_lea.vmem [#allocation2], 12
        %v1074 = vld [vmem:[%s1073] sm:$0xf]
        %1075 = vrot.lane.b32.xlu0 %v740, 104
        %v1076 = vpop.permute.xlu0 %1075
        %v1078 = vsel %vm742, %v1076, 0
        %v1081 = vsel %vm742, %v1074, 0
        %1083 = vmatprep.subr.bf16.mxu0 0
        %1084 = vmatpush1.bf16.xpose.msra.mxu0 0
        %1085 = vmatprep.subr.bf16.mxu0 0
        %1086 = vmatpush1.bf16.xpose.msra.mxu0 0
        %1087 = vmatprep.subr.bf16.mxu0 0
        %1088 = vmatpush1.bf16.xpose.msra.mxu0 0
        %1089 = vmatprep.subr.bf16.mxu0 0
        %1090 = vmatpush1.bf16.xpose.msra.mxu0 0
        %1091 = vmatprep.subr.bf16.mxu0 0
        %1092 = vmatpush1.bf16.xpose.msra.mxu0 0
        %1093 = vmatprep.subr.bf16.mxu0 0
        %1094 = vmatpush1.bf16.xpose.msra.mxu0 0
        %1095 = vmatprep.subr.bf16.mxu0 0
        %1096 = vmatpush1.bf16.xpose.msra.mxu0 0
        %1097 = vmatprep.subr.bf16.mxu0 0
        %1098 = vmatpush1.bf16.xpose.msra.mxu0 %v1081
        %1099 = vmatprep.subr.bf16.mxu0 0
        %1100 = vmatpush2.bf16.xpose.msra.mxu0 0
        %1101 = vmatprep.subr.bf16.mxu0 0
        %1102 = vmatpush2.bf16.xpose.msra.mxu0 0
        %1103 = vmatprep.subr.bf16.mxu0 0
        %1104 = vmatpush2.bf16.xpose.msra.mxu0 0
        %1105 = vmatprep.subr.bf16.mxu0 0
        %1106 = vmatpush2.bf16.xpose.msra.mxu0 0
        %1107 = vmatprep.subr.bf16.mxu0 0
        %1108 = vmatpush2.bf16.xpose.msra.mxu0 0
        %1109 = vmatprep.subr.bf16.mxu0 0
        %1110 = vmatpush2.bf16.xpose.msra.mxu0 0
        %1111 = vmatprep.subr.bf16.mxu0 0
        %1112 = vmatpush2.bf16.xpose.msra.mxu0 0
        %1113 = vmatprep.subr.bf16.mxu0 0
        %1114 = vmatpush2.bf16.xpose.msra.mxu0 0
        %1115 = vmatprep.mubr.bf16.mxu0 0
        %1116 = vmatmul.mubr.bf16.gmra.mxu0 %v1078
        %v1117 = vpop.f32.mrf.mxu0
        %v1118 = vadd.f32 0.0, %v1117
        %v1119 = vpop.f32.mrf.mxu0
        %v1120 = vpop.f32.mrf.mxu0
        %v1121 = vpop.f32.mrf.mxu0
        %1122 = vdwg.mxu0
        %v1123 = vmul.f32 %v1118, 0.35355338
        %v1124 = vsel %vm742, %v1123, -inf
        %1125 = vmax.xlane.f32.xlu0 %v1124
        %v1126 = vpop.xlane.xlu0 %1125
        %v1127 = vsub.f32 %v1123, %v1126
        %v1128 = vmul.f32 %v1127, 1.442695
        %v1129 = vpow.pop %v1128
        %v1130 = vsel %vm742, %v1129, 0.0
        %1131 = vadd.xlane.f32.xlu0 %v1130
        %v1132 = vpop.xlane.xlu0 %1131
        %v1133 = vrcp.pop %v1132
        %v1134 = vmul.f32 %v1129, %v1133
        %v1135 = vpack.c.bf16 %v1134, %v1134
        %s1136 = scalar_lea.vmem [#allocation3], 12
        %v1137 = vld [vmem:[%s1136] sm:$0xf]
        %v1139 = vsel %vm742, %v1135, 0
        %v1142 = vsel %vm806, %v1137, 0
        %1144 = vmatprep.subr.bf16.mxu0 0
        %1145 = vmatpush1.bf16.msra.mxu0 0
        %1146 = vmatprep.subr.bf16.mxu0 0
        %1147 = vmatpush1.bf16.msra.mxu0 0
        %1148 = vmatprep.subr.bf16.mxu0 0
        %1149 = vmatpush1.bf16.msra.mxu0 0
        %1150 = vmatprep.subr.bf16.mxu0 0
        %1151 = vmatpush1.bf16.msra.mxu0 0
        %1152 = vmatprep.subr.bf16.mxu0 0
        %1153 = vmatpush1.bf16.msra.mxu0 0
        %1154 = vmatprep.subr.bf16.mxu0 0
        %1155 = vmatpush1.bf16.msra.mxu0 0
        %1156 = vmatprep.subr.bf16.mxu0 0
        %1157 = vmatpush1.bf16.msra.mxu0 0
        %1158 = vmatprep.subr.bf16.mxu0 0
        %1159 = vmatpush1.bf16.msra.mxu0 %v1142
        %1160 = vmatprep.subr.bf16.mxu0 0
        %1161 = vmatpush2.bf16.msra.mxu0 0
        %1162 = vmatprep.subr.bf16.mxu0 0
        %1163 = vmatpush2.bf16.msra.mxu0 0
        %1164 = vmatprep.subr.bf16.mxu0 0
        %1165 = vmatpush2.bf16.msra.mxu0 0
        %1166 = vmatprep.subr.bf16.mxu0 0
        %1167 = vmatpush2.bf16.msra.mxu0 0
        %1168 = vmatprep.subr.bf16.mxu0 0
        %1169 = vmatpush2.bf16.msra.mxu0 0
        %1170 = vmatprep.subr.bf16.mxu0 0
        %1171 = vmatpush2.bf16.msra.mxu0 0
        %1172 = vmatprep.subr.bf16.mxu0 0
        %1173 = vmatpush2.bf16.msra.mxu0 0
        %1174 = vmatprep.subr.bf16.mxu0 0
        %1175 = vmatpush2.bf16.msra.mxu0 0
        %1176 = vmatprep.mubr.bf16.mxu0 0
        %1177 = vmatmul.mubr.bf16.gmra.mxu0 %v1139
        %v1178 = vpop.f32.mrf.mxu0
        %v1179 = vadd.f32 0.0, %v1178
        %v1180 = vpop.f32.mrf.mxu0
        %v1181 = vpop.f32.mrf.mxu0
        %v1182 = vpop.f32.mrf.mxu0
        %1183 = vdwg.mxu0
        %1185 = vrot.lane.b32.xlu0 %v957, 8
        %v1186 = vpop.permute.xlu0 %1185
        %1189 = vrot.lane.b32.xlu0 %v1068, 16
        %v1190 = vpop.permute.xlu0 %1189
        %1193 = vrot.lane.b32.xlu0 %v1179, 24
        %v1194 = vpop.permute.xlu0 %1193
        %v1196 = vsel %vm742, %v845, %v1186
        %vm1197 = vcmask 130048
        %v1198 = vsel %vm1197, %v1196, %v1190
        %vm1199 = vcmask 195584
        %v1200 = vsel %vm1199, %v1198, %v1194
        %v1201 = vpack.c.bf16 %v1200, %v1200
        %v1202 = vld [vmem:[%s5] sm:$0xf]
        %v1203 = vld [vmem:[%s5 + $0x4] sm:$0xf]
        %v1204 = vld [vmem:[%s5 + $0x8] sm:$0xf]
        %v1205 = vld [vmem:[%s5 + $0xc] sm:$0xf]
        %v1206 = vld [vmem:[#allocation9] sm:$0x1]
        %v1208 = vlaneseq
        %v1209 = vshrl.u32 %v1208, 7
        %v1210 = vsub.s32 0, %v1209
        %v1211 = vrot.slane %v1206, %v1210
        %v1217 = vunpack.c.l.b16 %v1202
        %v1218 = vunpack.c.l.b16 %v1203
        %v1219 = vunpack.c.l.b16 %v1204
        %v1220 = vunpack.c.l.b16 %v1205
        %v1221 = vpack.c.b16 %v1218, %v1217
        %v1222 = vpack.c.b16 %v1220, %v1219
        %v1226 = vsel %vm696, %v1201, 0
        %1228 = vmatprep.subr.bf16.mxu0 0
        %1229 = vmatpush1.bf16.msra.mxu0 0
        %1230 = vmatprep.subr.bf16.mxu0 0
        %1231 = vmatpush1.bf16.msra.mxu0 0
        %1232 = vmatprep.subr.bf16.mxu0 0
        %1233 = vmatpush1.bf16.msra.mxu0 0
        %1234 = vmatprep.subr.bf16.mxu0 0
        %1235 = vmatpush1.bf16.msra.mxu0 0
        %1236 = vmatprep.subr.bf16.mxu0 0
        %1237 = vmatpush1.bf16.msra.mxu0 0
        %1238 = vmatprep.subr.bf16.mxu0 0
        %1239 = vmatpush1.bf16.msra.mxu0 0
        %1240 = vmatprep.subr.bf16.mxu0 0
        %1241 = vmatpush1.bf16.msra.mxu0 %v1222
        %1242 = vmatprep.subr.bf16.mxu0 0
        %1243 = vmatpush1.bf16.msra.mxu0 %v1221
        %1244 = vmatprep.subr.bf16.mxu0 0
        %1245 = vmatpush2.bf16.msra.mxu0 0
        %1246 = vmatprep.subr.bf16.mxu0 0
        %1247 = vmatpush2.bf16.msra.mxu0 0
        %1248 = vmatprep.subr.bf16.mxu0 0
        %1249 = vmatpush2.bf16.msra.mxu0 0
        %1250 = vmatprep.subr.bf16.mxu0 0
        %1251 = vmatpush2.bf16.msra.mxu0 0
        %1252 = vmatprep.subr.bf16.mxu0 0
        %1253 = vmatpush2.bf16.msra.mxu0 0
        %1254 = vmatprep.subr.bf16.mxu0 0
        %1255 = vmatpush2.bf16.msra.mxu0 0
        %1256 = vmatprep.subr.bf16.mxu0 0
        %1257 = vmatpush2.bf16.msra.mxu0 0
        %1258 = vmatprep.subr.bf16.mxu0 0
        %1259 = vmatpush2.bf16.msra.mxu0 0
        %1260 = vmatprep.mubr.bf16.mxu0 0
        %1261 = vmatmul.mubr.bf16.gmra.mxu0 %v1226
        %v1262 = vpop.f32.mrf.mxu0
        %v1263 = vadd.f32 %v1211, %v1262
        %v1264 = vpop.f32.mrf.mxu0
        %v1265 = vpop.f32.mrf.mxu0
        %v1266 = vpop.f32.mrf.mxu0
        %1267 = vdwg.mxu0
        %v1268 = vadd.f32 %v671, %v1263
        %v1269 = vld [vmem:[%s11] sm:$0x1]
        %v1270 = vld [vmem:[%s12] sm:$0x1]
        %v1271 = vsel %vm696, %v1268, 0.0
        %1272 = vadd.xlane.f32.xlu0 %v1271
        %v1273 = vpop.xlane.xlu0 %1272
        %v1274 = vrcp.pop 32.0
        %v1275 = vmul.f32 %v1273, %v1274
        %v1276 = vsub.f32 %v1268, %v1275
        %v1277 = vmul.f32 %v1276, %v1276
        %v1278 = vsel %vm696, %v1277, 0.0
        %1279 = vadd.xlane.f32.xlu0 %v1278
        %v1280 = vpop.xlane.xlu0 %1279
        %v1281 = vmul.f32 %v1280, %v1274
        %v1282 = vadd.f32 %v1281, 1e-05
        %v1283 = vrsqrt.pop %v1282
        %v1284 = vmul.f32 %v1276, %v1283
        %v1286 = vlaneseq
        %v1287 = vshrl.u32 %v1286, 7
        %v1288 = vsub.s32 0, %v1287
        %v1289 = vrot.slane %v1269, %v1288
        %v1291 = vmul.f32 %v1284, %v1289
        %v1293 = vlaneseq
        %v1294 = vshrl.u32 %v1293, 7
        %v1295 = vsub.s32 0, %v1294
        %v1296 = vrot.slane %v1270, %v1295
        %v1298 = vadd.f32 %v1291, %v1296
        %v1299 = vpack.c.bf16 %v1298, %v1298
        %v1300 = vld [vmem:[%s7] sm:$0xf]
        %v1301 = vld [vmem:[%s7 + $0x4] sm:$0xf]
        %v1302 = vld [vmem:[%s7 + $0x8] sm:$0xf]
        %v1303 = vld [vmem:[%s7 + $0xc] sm:$0xf]
        %v1304 = vld [vmem:[#allocation10] sm:$0x1]
        %v1306 = vlaneseq
        %v1307 = vshrl.u32 %v1306, 7
        %v1308 = vsub.s32 0, %v1307
        %v1309 = vrot.slane %v1304, %v1308
        %v1315 = vunpack.c.l.b16 %v1300
        %v1316 = vunpack.c.l.b16 %v1301
        %v1317 = vunpack.c.l.b16 %v1302
        %v1318 = vunpack.c.l.b16 %v1303
        %v1319 = vpack.c.b16 %v1316, %v1315
        %v1320 = vpack.c.b16 %v1318, %v1317
        %v1324 = vsel %vm696, %v1299, 0
        %1326 = vmatprep.subr.bf16.mxu0 0
        %1327 = vmatpush1.bf16.msra.mxu0 0
        %1328 = vmatprep.subr.bf16.mxu0 0
        %1329 = vmatpush1.bf16.msra.mxu0 0
        %1330 = vmatprep.subr.bf16.mxu0 0
        %1331 = vmatpush1.bf16.msra.mxu0 0
        %1332 = vmatprep.subr.bf16.mxu0 0
        %1333 = vmatpush1.bf16.msra.mxu0 0
        %1334 = vmatprep.subr.bf16.mxu0 0
        %1335 = vmatpush1.bf16.msra.mxu0 0
        %1336 = vmatprep.subr.bf16.mxu0 0
        %1337 = vmatpush1.bf16.msra.mxu0 0
        %1338 = vmatprep.subr.bf16.mxu0 0
        %1339 = vmatpush1.bf16.msra.mxu0 %v1320
        %1340 = vmatprep.subr.bf16.mxu0 0
        %1341 = vmatpush1.bf16.msra.mxu0 %v1319
        %1342 = vmatprep.subr.bf16.mxu0 0
        %1343 = vmatpush2.bf16.msra.mxu0 0
        %1344 = vmatprep.subr.bf16.mxu0 0
        %1345 = vmatpush2.bf16.msra.mxu0 0
        %1346 = vmatprep.subr.bf16.mxu0 0
        %1347 = vmatpush2.bf16.msra.mxu0 0
        %1348 = vmatprep.subr.bf16.mxu0 0
        %1349 = vmatpush2.bf16.msra.mxu0 0
        %1350 = vmatprep.subr.bf16.mxu0 0
        %1351 = vmatpush2.bf16.msra.mxu0 0
        %1352 = vmatprep.subr.bf16.mxu0 0
        %1353 = vmatpush2.bf16.msra.mxu0 0
        %1354 = vmatprep.subr.bf16.mxu0 0
        %1355 = vmatpush2.bf16.msra.mxu0 0
        %1356 = vmatprep.subr.bf16.mxu0 0
        %1357 = vmatpush2.bf16.msra.mxu0 0
        %1358 = vmatprep.mubr.bf16.mxu0 0
        %1359 = vmatmul.mubr.bf16.gmra.mxu0 %v1324
        %v1360 = vpop.f32.mrf.mxu0
        %v1361 = vadd.f32 %v1309, %v1360
        %v1362 = vpop.f32.mrf.mxu0
        %v1363 = vpop.f32.mrf.mxu0
        %v1364 = vpop.f32.mrf.mxu0
        %1365 = vdwg.mxu0
        %v1366 = vmax.f32 %v1361, 0.0
        %v1367 = vpack.c.bf16 %v1366, %v1366
        %v1368 = vld [vmem:[%s9] sm:$0xf]
        %v1369 = vld [vmem:[%s9 + $0x4] sm:$0xf]
        %v1370 = vld [vmem:[%s9 + $0x8] sm:$0xf]
        %v1371 = vld [vmem:[%s9 + $0xc] sm:$0xf]
        %v1372 = vld [vmem:[%s9 + $0x10] sm:$0xf]
        %v1373 = vld [vmem:[%s9 + $0x14] sm:$0xf]
        %v1374 = vld [vmem:[%s9 + $0x18] sm:$0xf]
        %v1375 = vld [vmem:[%s9 + $0x1c] sm:$0xf]
        %v1376 = vld [vmem:[%s9 + $0x20] sm:$0xf]
        %v1377 = vld [vmem:[%s9 + $0x24] sm:$0xf]
        %v1378 = vld [vmem:[%s9 + $0x28] sm:$0xf]
        %v1379 = vld [vmem:[%s9 + $0x2c] sm:$0xf]
        %v1380 = vld [vmem:[%s9 + $0x30] sm:$0xf]
        %v1381 = vld [vmem:[%s9 + $0x34] sm:$0xf]
        %v1382 = vld [vmem:[%s9 + $0x38] sm:$0xf]
        %v1383 = vld [vmem:[%s9 + $0x3c] sm:$0xf]
        %v1384 = vld [vmem:[%s10] sm:$0x1]
        %v1386 = vlaneseq
        %v1387 = vshrl.u32 %v1386, 7
        %v1388 = vsub.s32 0, %v1387
        %v1389 = vrot.slane %v1384, %v1388
        %v1407 = vunpack.c.l.b16 %v1368
        %v1408 = vunpack.c.l.b16 %v1369
        %v1409 = vunpack.c.l.b16 %v1370
        %v1410 = vunpack.c.l.b16 %v1371
        %v1411 = vunpack.c.l.b16 %v1372
        %v1412 = vunpack.c.l.b16 %v1373
        %v1413 = vunpack.c.l.b16 %v1374
        %v1414 = vunpack.c.l.b16 %v1375
        %v1415 = vunpack.c.l.b16 %v1376
        %v1416 = vunpack.c.l.b16 %v1377
        %v1417 = vunpack.c.l.b16 %v1378
        %v1418 = vunpack.c.l.b16 %v1379
        %v1419 = vunpack.c.l.b16 %v1380
        %v1420 = vunpack.c.l.b16 %v1381
        %v1421 = vunpack.c.l.b16 %v1382
        %v1422 = vunpack.c.l.b16 %v1383
        %v1423 = vpack.c.b16 %v1408, %v1407
        %v1424 = vpack.c.b16 %v1410, %v1409
        %v1425 = vpack.c.b16 %v1412, %v1411
        %v1426 = vpack.c.b16 %v1414, %v1413
        %v1427 = vpack.c.b16 %v1416, %v1415
        %v1428 = vpack.c.b16 %v1418, %v1417
        %v1429 = vpack.c.b16 %v1420, %v1419
        %v1430 = vpack.c.b16 %v1422, %v1421
        %1439 = vmatprep.subr.bf16.mxu0 0
        %1440 = vmatpush1.bf16.msra.mxu0 %v1430
        %1441 = vmatprep.subr.bf16.mxu0 0
        %1442 = vmatpush1.bf16.msra.mxu0 %v1429
        %1443 = vmatprep.subr.bf16.mxu0 0
        %1444 = vmatpush1.bf16.msra.mxu0 %v1428
        %1445 = vmatprep.subr.bf16.mxu0 0
        %1446 = vmatpush1.bf16.msra.mxu0 %v1427
        %1447 = vmatprep.subr.bf16.mxu0 0
        %1448 = vmatpush1.bf16.msra.mxu0 %v1426
        %1449 = vmatprep.subr.bf16.mxu0 0
        %1450 = vmatpush1.bf16.msra.mxu0 %v1425
        %1451 = vmatprep.subr.bf16.mxu0 0
        %1452 = vmatpush1.bf16.msra.mxu0 %v1424
        %1453 = vmatprep.subr.bf16.mxu0 0
        %1454 = vmatpush1.bf16.msra.mxu0 %v1423
        %1455 = vmatprep.subr.bf16.mxu0 0
        %1456 = vmatpush2.bf16.msra.mxu0 0
        %1457 = vmatprep.subr.bf16.mxu0 0
        %1458 = vmatpush2.bf16.msra.mxu0 0
        %1459 = vmatprep.subr.bf16.mxu0 0
        %1460 = vmatpush2.bf16.msra.mxu0 0
        %1461 = vmatprep.subr.bf16.mxu0 0
        %1462 = vmatpush2.bf16.msra.mxu0 0
        %1463 = vmatprep.subr.bf16.mxu0 0
        %1464 = vmatpush2.bf16.msra.mxu0 0
        %1465 = vmatprep.subr.bf16.mxu0 0
        %1466 = vmatpush2.bf16.msra.mxu0 0
        %1467 = vmatprep.subr.bf16.mxu0 0
        %1468 = vmatpush2.bf16.msra.mxu0 0
        %1469 = vmatprep.subr.bf16.mxu0 0
        %1470 = vmatpush2.bf16.msra.mxu0 0
        %1471 = vmatprep.mubr.bf16.mxu0 0
        %1472 = vmatmul.mubr.bf16.gmra.mxu0 %v1367
        %v1473 = vpop.f32.mrf.mxu0
        %v1474 = vadd.f32 %v1389, %v1473
        %v1475 = vpop.f32.mrf.mxu0
        %v1476 = vpop.f32.mrf.mxu0
        %v1477 = vpop.f32.mrf.mxu0
        %1478 = vdwg.mxu0
        %v1479 = vadd.f32 %v1298, %v1474
        %v1480 = vld [vmem:[%s13] sm:$0x1]
        %v1481 = vld [vmem:[%s14] sm:$0x1]
        %v1482 = vsel %vm696, %v1479, 0.0
        %1483 = vadd.xlane.f32.xlu0 %v1482
        %v1484 = vpop.xlane.xlu0 %1483
        %v1485 = vmul.f32 %v1484, %v1274
        %v1486 = vsub.f32 %v1479, %v1485
        %v1487 = vmul.f32 %v1486, %v1486
        %v1488 = vsel %vm696, %v1487, 0.0
        %1489 = vadd.xlane.f32.xlu0 %v1488
        %v1490 = vpop.xlane.xlu0 %1489
        %v1491 = vmul.f32 %v1490, %v1274
        %v1492 = vadd.f32 %v1491, 1e-05
        %v1493 = vrsqrt.pop %v1492
        %v1494 = vmul.f32 %v1486, %v1493
        %v1496 = vlaneseq
        %v1497 = vshrl.u32 %v1496, 7
        %v1498 = vsub.s32 0, %v1497
        %v1499 = vrot.slane %v1480, %v1498
        %v1501 = vmul.f32 %v1494, %v1499
        %v1503 = vlaneseq
        %v1504 = vshrl.u32 %v1503, 7
        %v1505 = vsub.s32 0, %v1504
        %v1506 = vrot.slane %v1481, %v1505
        %v1508 = vadd.f32 %v1501, %v1506
        %1509 = vst.msk [vmem:[%s550] sm:$0xff] %vm696, %v1508
        %s1510 = sand.u32 %s374, 1
        %s1511 = scalar_lea.sflag [#allocation6], %s1510
        %s1512 = sand.u32 %s374, 1
        %s1513 = smul.addr %s1512, 8
        %s1514 = scalar_lea.vmem [#allocation12], %s1513
        // Predicated region
        $region101: #{tpu_custom_call.1} parent=79 // pred_check
          %p1515 = pneg %p384
        $region102: #{tpu_custom_call.1} parent=79 // pred_check_branch
          %1517 = sbr.rel (%p1515) target = $region104
        $region103: #{tpu_custom_call.1} parent=79 // pred_region
          %s1519 = ssub.s32 128, 128
          %1520 = vsyncadd %s1511, %s1519
          %s1521 = sadd.s32 %s37, %s36
          %s1522 = smul.addr %s1521, 128
          %s1523 = scalar_lea.hbm %s15, %s1522
          %s1525 = sshll.u32 %s1514, 4
          %s1526 = int_to_ptr.vmem [resolvable:$true] %s1525
          %1528 = dma.vmem_to_hbm [thread:$0]  %s1526, 128, %s1523, %s1511
        $region104: #{tpu_custom_call.1} parent=79 // pred_fallthru
          _
      $region80: #{tpu_custom_call.1} parent=5 // pred_fallthru
        _
      %p1529 = scmp.le.s32.totalorder 2, %s27
      // Predicated region
      $region105: #{tpu_custom_call.1} parent=5 // pred_check
        %p1530 = pneg %p1529
      $region106: #{tpu_custom_call.1} parent=5 // pred_check_branch
        %1532 = sbr.rel (%p1530) target = $region108
      $region107: #{tpu_custom_call.1} parent=5 // pred_region
        %s1533 = ssub.s32 %s27, 2
        // Predicated region
        $region109: #{tpu_custom_call.1} parent=107 // pred_check
          %p1534 = pneg %p390
        $region110: #{tpu_custom_call.1} parent=107 // pred_check_branch
          %1536 = sbr.rel (%p1534) target = $region112
        $region111: #{tpu_custom_call.1} parent=107 // pred_region
          %s1537 = sand.u32 %s375, 1
          %s1538 = scalar_lea.sflag [#allocation6], %s1537
          %s1539 = sand.u32 %s375, 1
          %s1540 = smul.addr %s1539, 8
          %s1541 = scalar_lea.vmem [#allocation12], %s1540
          %1542 = dma.done %s1538, 128
        $region112: #{tpu_custom_call.1} parent=107 // pred_fallthru
          _
      $region108: #{tpu_custom_call.1} parent=5 // pred_fallthru
        _
    $region6: #{tpu_custom_call.1} parent=1 // loop_footer
      %s31 = sadd.s32 1, %s27
    $region7: #{tpu_custom_call.1} parent=1 // loop_footer_branch
      %26 = sbr.rel target = $region3
    $region8: #{tpu_custom_call.1} parent=1 // loop_exit
      _
    %1543 = vsyncpa [#allocation5], 1
    %s1544 = scalar_lea.sflag [#allocation5], 1
    %1545 = vsyncpa %s1544, 1
    %1546 = vsyncpa [#allocation8], 1
    %1547 = vsyncpa [#allocation11], 1
    %1548 = vsyncpa [#allocation6], 1
    %s1549 = scalar_lea.sflag [#allocation6], 1
    %1550 = vsyncpa %s1549, 1

// kernel: tpu_custom_call.1
$region0: #{tpu_custom_call.1}
  #allocation0 [shape = 'u32[]', space=smem, size = 0x4, offset = 0x4, fixed_abs, tag = 'smem constant byte address 0x4 - core index']
  #allocation1 [shape = 'u32[144,128]{1,0:T(1,128)}', space=vmem, size = 0x12000, scoped, tag = 'internal scratch']
  #allocation2 [shape = 'bf16[4,8,8]{2,1,0:T(8,128)(2,1)}', space=vmem, size = 0x2000, scoped, tag = 'scratch operand']
  #allocation3 [shape = 'bf16[4,8,8]{2,1,0:T(8,128)(2,1)}', space=vmem, size = 0x2000, scoped, tag = 'scratch operand']
  %s0 = inlined_call_operand.vmem [shape: f32[2,8,32], index: 0, kind: input, shape index: {}]
  %s1 = inlined_call_operand.vmem [shape: bf16[32,32], index: 1, kind: input, shape index: {}]
  %s2 = inlined_call_operand.hbm [shape: f32[1,32], index: 2, kind: input, shape index: {}]
  %s3 = inlined_call_operand.vmem [shape: bf16[32,64], index: 3, kind: input, shape index: {}]
  %s4 = inlined_call_operand.hbm [shape: f32[1,64], index: 4, kind: input, shape index: {}]
  %s5 = inlined_call_operand.vmem [shape: bf16[32,32], index: 5, kind: input, shape index: {}]
  %s6 = inlined_call_operand.hbm [shape: f32[1,32], index: 6, kind: input, shape index: {}]
  %s7 = inlined_call_operand.vmem [shape: bf16[32,128], index: 7, kind: input, shape index: {}]
  %s8 = inlined_call_operand.hbm [shape: f32[1,128], index: 8, kind: input, shape index: {}]
  %s9 = inlined_call_operand.vmem [shape: bf16[128,32], index: 9, kind: input, shape index: {}]
  %s10 = inlined_call_operand.vmem [shape: f32[1,32], index: 10, kind: input, shape index: {}]
  %s11 = inlined_call_operand.vmem [shape: f32[1,32], index: 11, kind: input, shape index: {}]
  %s12 = inlined_call_operand.vmem [shape: f32[1,32], index: 12, kind: input, shape index: {}]
  %s13 = inlined_call_operand.vmem [shape: f32[1,32], index: 13, kind: input, shape index: {}]
  %s14 = inlined_call_operand.vmem [shape: f32[1,32], index: 14, kind: input, shape index: {}]
  %s15 = inlined_call_operand.hbm [shape: f32[2,8,32], index: 15, kind: output, shape index: {}]
  %s16 = sld [smem:[#allocation0]]
  $region113: #{tpu_custom_call.1} parent=0
    _
  %s18 = ssub.s32 1, %s16
  %s19 = scalar_select 0, %s18, %s16
  $region1: #{tpu_custom_call.1} parent=0
    #allocation4 [shape = 'u8[512]{0}', space=vmem, size = 0x400, scoped, tag = 'input window, operand 2, single buffered']
    #allocation5 [shape = 's32[2]{0}', space=sflag, size = 0x8, scoped, tag = 'scoped memory for tpu_custom_call.1']
    #allocation6 [shape = 's32[2]{0}', space=sflag, size = 0x8, scoped, tag = 'scoped memory for tpu_custom_call.1']
    #allocation7 [shape = 'u8[512]{0}', space=vmem, size = 0x400, scoped, tag = 'input window, operand 4, single buffered']
    #allocation8 [shape = 's32[1]{0}', space=sflag, size = 0x4, scoped, tag = 'scoped memory for tpu_custom_call.1']
    #allocation9 [shape = 'u8[512]{0}', space=vmem, size = 0x400, scoped, tag = 'input window, operand 6, single buffered']
    #allocation10 [shape = 'u8[512]{0}', space=vmem, size = 0x400, scoped, tag = 'input window, operand 8, single buffered']
    #allocation11 [shape = 's32[1]{0}', space=sflag, size = 0x4, scoped, tag = 'scoped memory for tpu_custom_call.1']
    #allocation12 [shape = 'u8[8192]{0}', space=vmem, size = 0x2000, scoped, tag = 'output window, operand 0']
    %20 = vsyncpa [#allocation5], 0
    %21 = vsyncpa [#allocation8], 0
    %22 = vsyncpa [#allocation11], 0
    %23 = vsyncpa [#allocation6], 0
    %s24 = scalar_lea.sflag [#allocation6], 1
    %25 = vsyncpa %s24, 0
    loop: start=0, step=1, limit=4
    $region2: #{tpu_custom_call.1} parent=1 // loop_pre_header
      _
    $region3: #{tpu_custom_call.1} parent=1 // loop_header
      %s27 = sphi 0, %s31
      %p28 = scmp.ge.s32.totalorder %s27, 4
      %s34 = sphi 0, %s46
      %s35 = sphi 0, %s42
      %s36 = sphi 0, %s34
      %s37 = sphi 0, %s35
      %s38 = sphi 0, %s36
      %s39 = sphi 0, %s37
      %s49 = sphi 0, %s51
      %s52 = sphi 0, %s49
      %s53 = sphi 0, %s52
      %s69 = sphi 0, %s53
      %s73 = sphi 0, %s73
      %s75 = sphi 0, %s73
      %s76 = sphi 0, %s75
      %s90 = sphi 0, %s76
      %s94 = sphi 0, %s94
      %s96 = sphi 0, %s94
      %s97 = sphi 0, %s96
      %s111 = sphi 0, %s97
      %s115 = sphi 0, %s115
      %s117 = sphi 0, %s115
      %s118 = sphi 0, %s117
      %s132 = sphi 0, %s118
      %s136 = sphi 0, %s136
      %s138 = sphi 0, %s136
      %s139 = sphi 0, %s138
      %s153 = sphi 0, %s139
      %s157 = sphi 0, %s157
      %s159 = sphi 0, %s157
      %s160 = sphi 0, %s159
      %s174 = sphi 0, %s160
      %s178 = sphi 0, %s178
      %s180 = sphi 0, %s178
      %s181 = sphi 0, %s180
      %s195 = sphi 0, %s181
      %s199 = sphi 0, %s199
      %s201 = sphi 0, %s199
      %s202 = sphi 0, %s201
      %s216 = sphi 0, %s202
      %s220 = sphi 0, %s220
      %s222 = sphi 0, %s220
      %s223 = sphi 0, %s222
      %s237 = sphi 0, %s223
      %s241 = sphi 0, %s241
      %s243 = sphi 0, %s241
      %s244 = sphi 0, %s243
      %s258 = sphi 0, %s244
      %s262 = sphi 0, %s262
      %s264 = sphi 0, %s262
      %s265 = sphi 0, %s264
      %s279 = sphi 0, %s265
      %s283 = sphi 0, %s283
      %s285 = sphi 0, %s283
      %s286 = sphi 0, %s285
      %s300 = sphi 0, %s286
      %s304 = sphi 0, %s304
      %s306 = sphi 0, %s304
      %s307 = sphi 0, %s306
      %s321 = sphi 0, %s307
      %s325 = sphi 0, %s325
      %s327 = sphi 0, %s325
      %s328 = sphi 0, %s327
      %s342 = sphi 0, %s328
      %s346 = sphi 0, %s346
      %s348 = sphi 0, %s346
      %s349 = sphi 0, %s348
      %s363 = sphi 0, %s349
      %s371 = sphi 0, %s373
      %s374 = sphi 0, %s371
      %s375 = sphi 0, %s374
      %s391 = sphi 0, %s375
    $region4: #{tpu_custom_call.1} parent=1 // loop_header_branch
      %30 = sbr.rel (%p28) target = $region8
    $region5: #{tpu_custom_call.1} parent=1 // loop_body
      %s32 = ssub.s32 %s27, 1
      %s33 = ssub.s32 %s27, 2
      %s40 = sadd.s32 1, %s35
      %p41 = scmp.ge.s32.totalorder %s40, 1
      %s42 = scalar_select %p41, 0, %s40
      %s43 = sadd.s32 1, %s34
      %s44 = scalar_select %p41, %s43, %s34
      %p45 = scmp.ge.s32.totalorder %s44, 2
      %s46 = scalar_select %p45, 0, %s44
      %s47 = ssub.s32 %s34, %s46
      %p48 = scmp.eq.s32.totalorder %s47, 0
      %s50 = sadd.s32 %s49, 1
      %s51 = scalar_select %p48, %s49, %s50
      %p54 = pneg %p48
      %p55 = scmp.eq.s32.totalorder %s27, 1
      %p56 = por %p54, %p55
      %p57 = scmp.ne.s32.totalorder %s49, %s52
      %p58 = scmp.eq.s32.totalorder %s27, 0
      %p59 = por %p57, %p58
      %p60 = scmp.ne.s32.totalorder %s49, %s52
      %p61 = scmp.eq.s32.totalorder %s32, 1
      %p62 = por %p60, %p61
      %p63 = scmp.ne.s32.totalorder %s52, %s53
      %p64 = scmp.eq.s32.totalorder %s32, 0
      %p65 = por %p63, %p64
      %p66 = scmp.ne.s32.totalorder %s52, %s53
      %p67 = scmp.eq.s32.totalorder %s33, 1
      %p68 = por %p66, %p67
      %p70 = scmp.ne.s32.totalorder %s53, %s69
      %p71 = scmp.eq.s32.totalorder %s33, 0
      %p72 = por %p70, %p71
      %s74 = sadd.s32 %s73, 1
      %p77 = scmp.eq.s32.totalorder %s27, 1
      %p78 = scmp.ne.s32.totalorder %s73, %s75
      %p79 = scmp.eq.s32.totalorder %s27, 0
      %p80 = por %p78, %p79
      %p81 = scmp.ne.s32.totalorder %s73, %s75
      %p82 = scmp.eq.s32.totalorder %s32, 1
      %p83 = por %p81, %p82
      %p84 = scmp.ne.s32.totalorder %s75, %s76
      %p85 = scmp.eq.s32.totalorder %s32, 0
      %p86 = por %p84, %p85
      %p87 = scmp.ne.s32.totalorder %s75, %s76
      %p88 = scmp.eq.s32.totalorder %s33, 1
      %p89 = por %p87, %p88
      %p91 = scmp.ne.s32.totalorder %s76, %s90
      %p92 = scmp.eq.s32.totalorder %s33, 0
      %p93 = por %p91, %p92
      %s95 = sadd.s32 %s94, 1
      %p98 = scmp.eq.s32.totalorder %s27, 1
      %p99 = scmp.ne.s32.totalorder %s94, %s96
      %p100 = scmp.eq.s32.totalorder %s27, 0
      %p101 = por %p99, %p100
      %p102 = scmp.ne.s32.totalorder %s94, %s96
      %p103 = scmp.eq.s32.totalorder %s32, 1
      %p104 = por %p102, %p103
      %p105 = scmp.ne.s32.totalorder %s96, %s97
      %p106 = scmp.eq.s32.totalorder %s32, 0
      %p107 = por %p105, %p106
      %p108 = scmp.ne.s32.totalorder %s96, %s97
      %p109 = scmp.eq.s32.totalorder %s33, 1
      %p110 = por %p108, %p109
      %p112 = scmp.ne.s32.totalorder %s97, %s111
      %p113 = scmp.eq.s32.totalorder %s33, 0
      %p114 = por %p112, %p113
      %s116 = sadd.s32 %s115, 1
      %p119 = scmp.eq.s32.totalorder %s27, 1
      %p120 = scmp.ne.s32.totalorder %s115, %s117
      %p121 = scmp.eq.s32.totalorder %s27, 0
      %p122 = por %p120, %p121
      %p123 = scmp.ne.s32.totalorder %s115, %s117
      %p124 = scmp.eq.s32.totalorder %s32, 1
      %p125 = por %p123, %p124
      %p126 = scmp.ne.s32.totalorder %s117, %s118
      %p127 = scmp.eq.s32.totalorder %s32, 0
      %p128 = por %p126, %p127
      %p129 = scmp.ne.s32.totalorder %s117, %s118
      %p130 = scmp.eq.s32.totalorder %s33, 1
      %p131 = por %p129, %p130
      %p133 = scmp.ne.s32.totalorder %s118, %s132
      %p134 = scmp.eq.s32.totalorder %s33, 0
      %p135 = por %p133, %p134
      %s137 = sadd.s32 %s136, 1
      %p140 = scmp.eq.s32.totalorder %s27, 1
      %p141 = scmp.ne.s32.totalorder %s136, %s138
      %p142 = scmp.eq.s32.totalorder %s27, 0
      %p143 = por %p141, %p142
      %p144 = scmp.ne.s32.totalorder %s136, %s138
      %p145 = scmp.eq.s32.totalorder %s32, 1
      %p146 = por %p144, %p145
      %p147 = scmp.ne.s32.totalorder %s138, %s139
      %p148 = scmp.eq.s32.totalorder %s32, 0
      %p149 = por %p147, %p148
      %p150 = scmp.ne.s32.totalorder %s138, %s139
      %p151 = scmp.eq.s32.totalorder %s33, 1
      %p152 = por %p150, %p151
      %p154 = scmp.ne.s32.totalorder %s139, %s153
      %p155 = scmp.eq.s32.totalorder %s33, 0
      %p156 = por %p154, %p155
      %s158 = sadd.s32 %s157, 1
      %p161 = scmp.eq.s32.totalorder %s27, 1
      %p162 = scmp.ne.s32.totalorder %s157, %s159
      %p163 = scmp.eq.s32.totalorder %s27, 0
      %p164 = por %p162, %p163
      %p165 = scmp.ne.s32.totalorder %s157, %s159
      %p166 = scmp.eq.s32.totalorder %s32, 1
      %p167 = por %p165, %p166
      %p168 = scmp.ne.s32.totalorder %s159, %s160
      %p169 = scmp.eq.s32.totalorder %s32, 0
      %p170 = por %p168, %p169
      %p171 = scmp.ne.s32.totalorder %s159, %s160
      %p172 = scmp.eq.s32.totalorder %s33, 1
      %p173 = por %p171, %p172
      %p175 = scmp.ne.s32.totalorder %s160, %s174
      %p176 = scmp.eq.s32.totalorder %s33, 0
      %p177 = por %p175, %p176
      %s179 = sadd.s32 %s178, 1
      %p182 = scmp.eq.s32.totalorder %s27, 1
      %p183 = scmp.ne.s32.totalorder %s178, %s180
      %p184 = scmp.eq.s32.totalorder %s27, 0
      %p185 = por %p183, %p184
      %p186 = scmp.ne.s32.totalorder %s178, %s180
      %p187 = scmp.eq.s32.totalorder %s32, 1
      %p188 = por %p186, %p187
      %p189 = scmp.ne.s32.totalorder %s180, %s181
      %p190 = scmp.eq.s32.totalorder %s32, 0
      %p191 = por %p189, %p190
      %p192 = scmp.ne.s32.totalorder %s180, %s181
      %p193 = scmp.eq.s32.totalorder %s33, 1
      %p194 = por %p192, %p193
      %p196 = scmp.ne.s32.totalorder %s181, %s195
      %p197 = scmp.eq.s32.totalorder %s33, 0
      %p198 = por %p196, %p197
      %s200 = sadd.s32 %s199, 1
      %p203 = scmp.eq.s32.totalorder %s27, 1
      %p204 = scmp.ne.s32.totalorder %s199, %s201
      %p205 = scmp.eq.s32.totalorder %s27, 0
      %p206 = por %p204, %p205
      %p207 = scmp.ne.s32.totalorder %s199, %s201
      %p208 = scmp.eq.s32.totalorder %s32, 1
      %p209 = por %p207, %p208
      %p210 = scmp.ne.s32.totalorder %s201, %s202
      %p211 = scmp.eq.s32.totalorder %s32, 0
      %p212 = por %p210, %p211
      %p213 = scmp.ne.s32.totalorder %s201, %s202
      %p214 = scmp.eq.s32.totalorder %s33, 1
      %p215 = por %p213, %p214
      %p217 = scmp.ne.s32.totalorder %s202, %s216
      %p218 = scmp.eq.s32.totalorder %s33, 0
      %p219 = por %p217, %p218
      %s221 = sadd.s32 %s220, 1
      %p224 = scmp.eq.s32.totalorder %s27, 1
      %p225 = scmp.ne.s32.totalorder %s220, %s222
      %p226 = scmp.eq.s32.totalorder %s27, 0
      %p227 = por %p225, %p226
      %p228 = scmp.ne.s32.totalorder %s220, %s222
      %p229 = scmp.eq.s32.totalorder %s32, 1
      %p230 = por %p228, %p229
      %p231 = scmp.ne.s32.totalorder %s222, %s223
      %p232 = scmp.eq.s32.totalorder %s32, 0
      %p233 = por %p231, %p232
      %p234 = scmp.ne.s32.totalorder %s222, %s223
      %p235 = scmp.eq.s32.totalorder %s33, 1
      %p236 = por %p234, %p235
      %p238 = scmp.ne.s32.totalorder %s223, %s237
      %p239 = scmp.eq.s32.totalorder %s33, 0
      %p240 = por %p238, %p239
      %s242 = sadd.s32 %s241, 1
      %p245 = scmp.eq.s32.totalorder %s27, 1
      %p246 = scmp.ne.s32.totalorder %s241, %s243
      %p247 = scmp.eq.s32.totalorder %s27, 0
      %p248 = por %p246, %p247
      %p249 = scmp.ne.s32.totalorder %s241, %s243
      %p250 = scmp.eq.s32.totalorder %s32, 1
      %p251 = por %p249, %p250
      %p252 = scmp.ne.s32.totalorder %s243, %s244
      %p253 = scmp.eq.s32.totalorder %s32, 0
      %p254 = por %p252, %p253
      %p255 = scmp.ne.s32.totalorder %s243, %s244
      %p256 = scmp.eq.s32.totalorder %s33, 1
      %p257 = por %p255, %p256
      %p259 = scmp.ne.s32.totalorder %s244, %s258
      %p260 = scmp.eq.s32.totalorder %s33, 0
      %p261 = por %p259, %p260
      %s263 = sadd.s32 %s262, 1
      %p266 = scmp.eq.s32.totalorder %s27, 1
      %p267 = scmp.ne.s32.totalorder %s262, %s264
      %p268 = scmp.eq.s32.totalorder %s27, 0
      %p269 = por %p267, %p268
      %p270 = scmp.ne.s32.totalorder %s262, %s264
      %p271 = scmp.eq.s32.totalorder %s32, 1
      %p272 = por %p270, %p271
      %p273 = scmp.ne.s32.totalorder %s264, %s265
      %p274 = scmp.eq.s32.totalorder %s32, 0
      %p275 = por %p273, %p274
      %p276 = scmp.ne.s32.totalorder %s264, %s265
      %p277 = scmp.eq.s32.totalorder %s33, 1
      %p278 = por %p276, %p277
      %p280 = scmp.ne.s32.totalorder %s265, %s279
      %p281 = scmp.eq.s32.totalorder %s33, 0
      %p282 = por %p280, %p281
      %s284 = sadd.s32 %s283, 1
      %p287 = scmp.eq.s32.totalorder %s27, 1
      %p288 = scmp.ne.s32.totalorder %s283, %s285
      %p289 = scmp.eq.s32.totalorder %s27, 0
      %p290 = por %p288, %p289
      %p291 = scmp.ne.s32.totalorder %s283, %s285
      %p292 = scmp.eq.s32.totalorder %s32, 1
      %p293 = por %p291, %p292
      %p294 = scmp.ne.s32.totalorder %s285, %s286
      %p295 = scmp.eq.s32.totalorder %s32, 0
      %p296 = por %p294, %p295
      %p297 = scmp.ne.s32.totalorder %s285, %s286
      %p298 = scmp.eq.s32.totalorder %s33, 1
      %p299 = por %p297, %p298
      %p301 = scmp.ne.s32.totalorder %s286, %s300
      %p302 = scmp.eq.s32.totalorder %s33, 0
      %p303 = por %p301, %p302
      %s305 = sadd.s32 %s304, 1
      %p308 = scmp.eq.s32.totalorder %s27, 1
      %p309 = scmp.ne.s32.totalorder %s304, %s306
      %p310 = scmp.eq.s32.totalorder %s27, 0
      %p311 = por %p309, %p310
      %p312 = scmp.ne.s32.totalorder %s304, %s306
      %p313 = scmp.eq.s32.totalorder %s32, 1
      %p314 = por %p312, %p313
      %p315 = scmp.ne.s32.totalorder %s306, %s307
      %p316 = scmp.eq.s32.totalorder %s32, 0
      %p317 = por %p315, %p316
      %p318 = scmp.ne.s32.totalorder %s306, %s307
      %p319 = scmp.eq.s32.totalorder %s33, 1
      %p320 = por %p318, %p319
      %p322 = scmp.ne.s32.totalorder %s307, %s321
      %p323 = scmp.eq.s32.totalorder %s33, 0
      %p324 = por %p322, %p323
      %s326 = sadd.s32 %s325, 1
      %p329 = scmp.eq.s32.totalorder %s27, 1
      %p330 = scmp.ne.s32.totalorder %s325, %s327
      %p331 = scmp.eq.s32.totalorder %s27, 0
      %p332 = por %p330, %p331
      %p333 = scmp.ne.s32.totalorder %s325, %s327
      %p334 = scmp.eq.s32.totalorder %s32, 1
      %p335 = por %p333, %p334
      %p336 = scmp.ne.s32.totalorder %s327, %s328
      %p337 = scmp.eq.s32.totalorder %s32, 0
      %p338 = por %p336, %p337
      %p339 = scmp.ne.s32.totalorder %s327, %s328
      %p340 = scmp.eq.s32.totalorder %s33, 1
      %p341 = por %p339, %p340
      %p343 = scmp.ne.s32.totalorder %s328, %s342
      %p344 = scmp.eq.s32.totalorder %s33, 0
      %p345 = por %p343, %p344
      %s347 = sadd.s32 %s346, 1
      %p350 = scmp.eq.s32.totalorder %s27, 1
      %p351 = scmp.ne.s32.totalorder %s346, %s348
      %p352 = scmp.eq.s32.totalorder %s27, 0
      %p353 = por %p351, %p352
      %p354 = scmp.ne.s32.totalorder %s346, %s348
      %p355 = scmp.eq.s32.totalorder %s32, 1
      %p356 = por %p354, %p355
      %p357 = scmp.ne.s32.totalorder %s348, %s349
      %p358 = scmp.eq.s32.totalorder %s32, 0
      %p359 = por %p357, %p358
      %p360 = scmp.ne.s32.totalorder %s348, %s349
      %p361 = scmp.eq.s32.totalorder %s33, 1
      %p362 = por %p360, %p361
      %p364 = scmp.ne.s32.totalorder %s349, %s363
      %p365 = scmp.eq.s32.totalorder %s33, 0
      %p366 = por %p364, %p365
      %s367 = ssub.s32 %s34, %s46
      %s368 = ssub.s32 %s35, %s42
      %s369 = sor.u32 %s367, %s368
      %p370 = scmp.eq.s32.totalorder %s369, 0
      %s372 = sadd.s32 %s371, 1
      %s373 = scalar_select %p370, %s371, %s372
      %p376 = pneg %p370
      %p377 = scmp.eq.s32.totalorder %s27, 1
      %p378 = por %p376, %p377
      %p379 = scmp.ne.s32.totalorder %s371, %s374
      %p380 = scmp.eq.s32.totalorder %s27, 0
      %p381 = por %p379, %p380
      %p382 = scmp.ne.s32.totalorder %s371, %s374
      %p383 = scmp.eq.s32.totalorder %s32, 1
      %p384 = por %p382, %p383
      %p385 = scmp.ne.s32.totalorder %s374, %s375
      %p386 = scmp.eq.s32.totalorder %s32, 0
      %p387 = por %p385, %p386
      %p388 = scmp.ne.s32.totalorder %s374, %s375
      %p389 = scmp.eq.s32.totalorder %s33, 1
      %p390 = por %p388, %p389
      %p392 = scmp.ne.s32.totalorder %s375, %s391
      %p393 = scmp.eq.s32.totalorder %s33, 0
      %p394 = por %p392, %p393
      %p395 = scmp.le.s32.totalorder 1, %s27
      %p396 = scmp.lt.s32.totalorder %s27, 3
      %p397 = pnand %p395, %p396
      %p398 = pneg %p397
      // Predicated region
      $region9: #{tpu_custom_call.1} parent=5 // pred_check
        _
      $region10: #{tpu_custom_call.1} parent=5 // pred_check_branch
        %400 = sbr.rel (%p397) target = $region12
      $region11: #{tpu_custom_call.1} parent=5 // pred_region
        %s401 = ssub.s32 %s27, 1
        // Predicated region
        $region13: #{tpu_custom_call.1} parent=11 // pred_check
          %p402 = pneg %p86
        $region14: #{tpu_custom_call.1} parent=11 // pred_check_branch
          %404 = sbr.rel (%p402) target = $region16
        $region15: #{tpu_custom_call.1} parent=11 // pred_region
          _
        $region16: #{tpu_custom_call.1} parent=11 // pred_fallthru
          _
        // Predicated region
        $region17: #{tpu_custom_call.1} parent=11 // pred_check
          %p405 = pneg %p107
        $region18: #{tpu_custom_call.1} parent=11 // pred_check_branch
          %407 = sbr.rel (%p405) target = $region20
        $region19: #{tpu_custom_call.1} parent=11 // pred_region
          %s409 = ssub.s32 16, 16
          %410 = vsyncadd [#allocation5], %s409
          %s412 = sshll.u32 [#allocation4], 4
          %s413 = int_to_ptr.vmem [resolvable:$true] %s412
          %415 = dma.hbm_to_vmem [thread:$0]  %s2, 16, %s413, [#allocation5]
        $region20: #{tpu_custom_call.1} parent=11 // pred_fallthru
          _
        // Predicated region
        $region21: #{tpu_custom_call.1} parent=11 // pred_check
          %p416 = pneg %p128
        $region22: #{tpu_custom_call.1} parent=11 // pred_check_branch
          %418 = sbr.rel (%p416) target = $region24
        $region23: #{tpu_custom_call.1} parent=11 // pred_region
          _
        $region24: #{tpu_custom_call.1} parent=11 // pred_fallthru
          _
        // Predicated region
        $region25: #{tpu_custom_call.1} parent=11 // pred_check
          %p419 = pneg %p149
        $region26: #{tpu_custom_call.1} parent=11 // pred_check_branch
          %421 = sbr.rel (%p419) target = $region28
        $region27: #{tpu_custom_call.1} parent=11 // pred_region
          %s423 = ssub.s32 16, 16
          %424 = vsyncadd [#allocation8], %s423
          %s426 = sshll.u32 [#allocation7], 4
          %s427 = int_to_ptr.vmem [resolvable:$true] %s426
          %429 = dma.hbm_to_vmem [thread:$0]  %s4, 16, %s427, [#allocation8]
        $region28: #{tpu_custom_call.1} parent=11 // pred_fallthru
          _
        // Predicated region
        $region29: #{tpu_custom_call.1} parent=11 // pred_check
          %p430 = pneg %p170
        $region30: #{tpu_custom_call.1} parent=11 // pred_check_branch
          %432 = sbr.rel (%p430) target = $region32
        $region31: #{tpu_custom_call.1} parent=11 // pred_region
          _
        $region32: #{tpu_custom_call.1} parent=11 // pred_fallthru
          _
        // Predicated region
        $region33: #{tpu_custom_call.1} parent=11 // pred_check
          %p433 = pneg %p191
        $region34: #{tpu_custom_call.1} parent=11 // pred_check_branch
          %435 = sbr.rel (%p433) target = $region36
        $region35: #{tpu_custom_call.1} parent=11 // pred_region
          %s437 = ssub.s32 16, 16
          %438 = vsyncadd [#allocation8], %s437
          %s440 = sshll.u32 [#allocation9], 4
          %s441 = int_to_ptr.vmem [resolvable:$true] %s440
          %443 = dma.hbm_to_vmem [thread:$0]  %s6, 16, %s441, [#allocation8]
        $region36: #{tpu_custom_call.1} parent=11 // pred_fallthru
          _
        // Predicated region
        $region37: #{tpu_custom_call.1} parent=11 // pred_check
          %p444 = pneg %p212
        $region38: #{tpu_custom_call.1} parent=11 // pred_check_branch
          %446 = sbr.rel (%p444) target = $region40
        $region39: #{tpu_custom_call.1} parent=11 // pred_region
          _
        $region40: #{tpu_custom_call.1} parent=11 // pred_fallthru
          _
        // Predicated region
        $region41: #{tpu_custom_call.1} parent=11 // pred_check
          %p447 = pneg %p233
        $region42: #{tpu_custom_call.1} parent=11 // pred_check_branch
          %449 = sbr.rel (%p447) target = $region44
        $region43: #{tpu_custom_call.1} parent=11 // pred_region
          %s451 = ssub.s32 16, 16
          %452 = vsyncadd [#allocation11], %s451
          %s454 = sshll.u32 [#allocation10], 4
          %s455 = int_to_ptr.vmem [resolvable:$true] %s454
          %457 = dma.hbm_to_vmem [thread:$0]  %s8, 16, %s455, [#allocation11]
        $region44: #{tpu_custom_call.1} parent=11 // pred_fallthru
          _
        // Predicated region
        $region45: #{tpu_custom_call.1} parent=11 // pred_check
          %p458 = pneg %p254
        $region46: #{tpu_custom_call.1} parent=11 // pred_check_branch
          %460 = sbr.rel (%p458) target = $region48
        $region47: #{tpu_custom_call.1} parent=11 // pred_region
          _
        $region48: #{tpu_custom_call.1} parent=11 // pred_fallthru
          _
        // Predicated region
        $region49: #{tpu_custom_call.1} parent=11 // pred_check
          %p461 = pneg %p275
        $region50: #{tpu_custom_call.1} parent=11 // pred_check_branch
          %463 = sbr.rel (%p461) target = $region52
        $region51: #{tpu_custom_call.1} parent=11 // pred_region
          _
        $region52: #{tpu_custom_call.1} parent=11 // pred_fallthru
          _
        // Predicated region
        $region53: #{tpu_custom_call.1} parent=11 // pred_check
          %p464 = pneg %p296
        $region54: #{tpu_custom_call.1} parent=11 // pred_check_branch
          %466 = sbr.rel (%p464) target = $region56
        $region55: #{tpu_custom_call.1} parent=11 // pred_region
          _
        $region56: #{tpu_custom_call.1} parent=11 // pred_fallthru
          _
        // Predicated region
        $region57: #{tpu_custom_call.1} parent=11 // pred_check
          %p467 = pneg %p317
        $region58: #{tpu_custom_call.1} parent=11 // pred_check_branch
          %469 = sbr.rel (%p467) target = $region60
        $region59: #{tpu_custom_call.1} parent=11 // pred_region
          _
        $region60: #{tpu_custom_call.1} parent=11 // pred_fallthru
          _
        // Predicated region
        $region61: #{tpu_custom_call.1} parent=11 // pred_check
          %p470 = pneg %p338
        $region62: #{tpu_custom_call.1} parent=11 // pred_check_branch
          %472 = sbr.rel (%p470) target = $region64
        $region63: #{tpu_custom_call.1} parent=11 // pred_region
          _
        $region64: #{tpu_custom_call.1} parent=11 // pred_fallthru
          _
        // Predicated region
        $region65: #{tpu_custom_call.1} parent=11 // pred_check
          %p473 = pneg %p359
        $region66: #{tpu_custom_call.1} parent=11 // pred_check_branch
          %475 = sbr.rel (%p473) target = $region68
        $region67: #{tpu_custom_call.1} parent=11 // pred_region
          _
        $region68: #{tpu_custom_call.1} parent=11 // pred_fallthru
          _
      $region12: #{tpu_custom_call.1} parent=5 // pred_fallthru
        _
      %p476 = scmp.lt.s32.totalorder %s27, 2
      // Predicated region
      $region69: #{tpu_custom_call.1} parent=5 // pred_check
        %p477 = pneg %p476
      $region70: #{tpu_custom_call.1} parent=5 // pred_check_branch
        %479 = sbr.rel (%p477) target = $region72
      $region71: #{tpu_custom_call.1} parent=5 // pred_region
        // Predicated region
        $region73: #{tpu_custom_call.1} parent=71 // pred_check
          %p480 = pneg %p59
        $region74: #{tpu_custom_call.1} parent=71 // pred_check_branch
          %482 = sbr.rel (%p480) target = $region76
        $region75: #{tpu_custom_call.1} parent=71 // pred_region
          %p483 = scmp.lt.s32.totalorder %s34, 1
          %s484 = scalar_select %p483, %s34, 1
          %s485 = smul.addr %s484, 8
          %s486 = scalar_lea.vmem %s0, %s485
        $region76: #{tpu_custom_call.1} parent=71 // pred_fallthru
          _
      $region72: #{tpu_custom_call.1} parent=5 // pred_fallthru
        _
      %p487 = scmp.le.s32.totalorder 1, %s27
      %p488 = scmp.lt.s32.totalorder %s27, 3
      %p489 = pnand %p487, %p488
      %p490 = pneg %p489
      // Predicated region
      $region77: #{tpu_custom_call.1} parent=5 // pred_check
        _
      $region78: #{tpu_custom_call.1} parent=5 // pred_check_branch
        %492 = sbr.rel (%p489) target = $region80
      $region79: #{tpu_custom_call.1} parent=5 // pred_region
        %s493 = ssub.s32 %s27, 1
        // Predicated region
        $region81: #{tpu_custom_call.1} parent=79 // pred_check
          %p494 = pneg %p107
        $region82: #{tpu_custom_call.1} parent=79 // pred_check_branch
          %496 = sbr.rel (%p494) target = $region84
        $region83: #{tpu_custom_call.1} parent=79 // pred_region
          %497 = dma.done [#allocation5], 16
        $region84: #{tpu_custom_call.1} parent=79 // pred_fallthru
          _
        // Predicated region
        $region85: #{tpu_custom_call.1} parent=79 // pred_check
          %p498 = pneg %p149
        $region86: #{tpu_custom_call.1} parent=79 // pred_check_branch
          %500 = sbr.rel (%p498) target = $region88
        $region87: #{tpu_custom_call.1} parent=79 // pred_region
          %501 = dma.done [#allocation8], 16
        $region88: #{tpu_custom_call.1} parent=79 // pred_fallthru
          _
        // Predicated region
        $region89: #{tpu_custom_call.1} parent=79 // pred_check
          %p502 = pneg %p191
        $region90: #{tpu_custom_call.1} parent=79 // pred_check_branch
          %504 = sbr.rel (%p502) target = $region92
        $region91: #{tpu_custom_call.1} parent=79 // pred_region
          %505 = dma.done [#allocation8], 16
        $region92: #{tpu_custom_call.1} parent=79 // pred_fallthru
          _
        // Predicated region
        $region93: #{tpu_custom_call.1} parent=79 // pred_check
          %p506 = pneg %p233
        $region94: #{tpu_custom_call.1} parent=79 // pred_check_branch
          %508 = sbr.rel (%p506) target = $region96
        $region95: #{tpu_custom_call.1} parent=79 // pred_region
          %509 = dma.done [#allocation11], 16
        $region96: #{tpu_custom_call.1} parent=79 // pred_fallthru
          _
        %p510 = scmp.lt.s32.totalorder %s36, 1
        %s511 = scalar_select %p510, %s36, 1
        %s512 = smul.addr %s511, 8
        %s513 = scalar_lea.vmem %s0, %s512
        %p514 = pneg %p65
        %p515 = pneg %p62
        %p516 = pneg %p86
        %p517 = pneg %p83
        %p518 = pneg %p107
        %p519 = pneg %p104
        %p520 = pneg %p128
        %p521 = pneg %p125
        %p522 = pneg %p149
        %p523 = pneg %p146
        %p524 = pneg %p170
        %p525 = pneg %p167
        %p526 = pneg %p191
        %p527 = pneg %p188
        %p528 = pneg %p212
        %p529 = pneg %p209
        %p530 = pneg %p233
        %p531 = pneg %p230
        %p532 = pneg %p254
        %p533 = pneg %p251
        %p534 = pneg %p275
        %p535 = pneg %p272
        %p536 = pneg %p296
        %p537 = pneg %p293
        %p538 = pneg %p317
        %p539 = pneg %p314
        %p540 = pneg %p338
        %p541 = pneg %p335
        %p542 = pneg %p359
        %p543 = pneg %p356
        %p544 = pneg %p387
        %p545 = pneg %p384
        %s546 = sand.u32 %s374, 1
        %s547 = scalar_lea.sflag [#allocation6], %s546
        %s548 = sand.u32 %s374, 1
        %s549 = smul.addr %s548, 8
        %s550 = scalar_lea.vmem [#allocation12], %s549
        %p551 = scmp.lt.s32.totalorder %s36, 1
        %s552 = scalar_select %p551, %s36, 1
        %s553 = smul.addr %s552, 8
        %s554 = scalar_lea.vmem %s0, %s553
        %p556 = scmp.eq.s32.totalorder %s37, 0
        // Predicated region
        $region97: #{tpu_custom_call.1} parent=79 // pred_check
          %p557 = pneg %p556
        $region98: #{tpu_custom_call.1} parent=79 // pred_check_branch
          %559 = sbr.rel (%p557) target = $region100
        $region99: #{tpu_custom_call.1} parent=79 // pred_region
          %v560 = vld [vmem:[%s554] sm:$0xff]
          %v561 = vpack.c.bf16 %v560, %v560
          %v562 = vld [vmem:[%s3] sm:$0xf]
          %v563 = vld [vmem:[%s3 + $0x4] sm:$0xf]
          %v564 = vld [vmem:[%s3 + $0x8] sm:$0xf]
          %v565 = vld [vmem:[%s3 + $0xc] sm:$0xf]
          %v566 = vld [vmem:[#allocation7] sm:$0x1]
          %v568 = vlaneseq
          %v569 = vshrl.u32 %v568, 7
          %v570 = vsub.s32 0, %v569
          %v571 = vrot.slane %v566, %v570
          %v577 = vunpack.c.l.b16 %v562
          %v578 = vunpack.c.l.b16 %v563
          %v579 = vunpack.c.l.b16 %v564
          %v580 = vunpack.c.l.b16 %v565
          %v581 = vpack.c.b16 %v578, %v577
          %v582 = vpack.c.b16 %v580, %v579
          %vm585 = vcmask 261120
          %v587 = vsel %vm585, %v561, 0
          %589 = vmatprep.subr.bf16.mxu0 0
          %590 = vmatpush1.bf16.msra.mxu0 0
          %591 = vmatprep.subr.bf16.mxu0 0
          %592 = vmatpush1.bf16.msra.mxu0 0
          %593 = vmatprep.subr.bf16.mxu0 0
          %594 = vmatpush1.bf16.msra.mxu0 0
          %595 = vmatprep.subr.bf16.mxu0 0
          %596 = vmatpush1.bf16.msra.mxu0 0
          %597 = vmatprep.subr.bf16.mxu0 0
          %598 = vmatpush1.bf16.msra.mxu0 0
          %599 = vmatprep.subr.bf16.mxu0 0
          %600 = vmatpush1.bf16.msra.mxu0 0
          %601 = vmatprep.subr.bf16.mxu0 0
          %602 = vmatpush1.bf16.msra.mxu0 %v582
          %603 = vmatprep.subr.bf16.mxu0 0
          %604 = vmatpush1.bf16.msra.mxu0 %v581
          %605 = vmatprep.subr.bf16.mxu0 0
          %606 = vmatpush2.bf16.msra.mxu0 0
          %607 = vmatprep.subr.bf16.mxu0 0
          %608 = vmatpush2.bf16.msra.mxu0 0
          %609 = vmatprep.subr.bf16.mxu0 0
          %610 = vmatpush2.bf16.msra.mxu0 0
          %611 = vmatprep.subr.bf16.mxu0 0
          %612 = vmatpush2.bf16.msra.mxu0 0
          %613 = vmatprep.subr.bf16.mxu0 0
          %614 = vmatpush2.bf16.msra.mxu0 0
          %615 = vmatprep.subr.bf16.mxu0 0
          %616 = vmatpush2.bf16.msra.mxu0 0
          %617 = vmatprep.subr.bf16.mxu0 0
          %618 = vmatpush2.bf16.msra.mxu0 0
          %619 = vmatprep.subr.bf16.mxu0 0
          %620 = vmatpush2.bf16.msra.mxu0 0
          %621 = vmatprep.mubr.bf16.mxu0 0
          %622 = vmatmul.mubr.bf16.gmra.mxu0 %v587
          %v623 = vpop.f32.mrf.mxu0
          %v624 = vadd.f32 %v571, %v623
          %v625 = vpop.f32.mrf.mxu0
          %v626 = vpop.f32.mrf.mxu0
          %v627 = vpop.f32.mrf.mxu0
          %628 = vdwg.mxu0
          %v629 = vpack.c.bf16 %v624, %v624
          %vm630 = vcmask 60416
          %631 = vst.msk [vmem:[#allocation2] sm:$0xf] %vm630, %v629
          %v633 = vunpack.c.l.b16 %v629
          %v634 = vpack.c.b16 %v633, %v633
          %635 = vrot.lane.b32.xlu0 %v634, 96
          %v636 = vpop.permute.xlu0 %635
          %638 = vst.msk [vmem:[#allocation3] sm:$0xf] %vm630, %v636
          %639 = vrot.lane.b32.xlu0 %v634, 120
          %v640 = vpop.permute.xlu0 %639
          %s642 = scalar_lea.vmem [#allocation2], 4
          %643 = vst.msk [vmem:[%s642] sm:$0xf] %vm630, %v640
          %644 = vrot.lane.b32.xlu0 %v634, 88
          %v645 = vpop.permute.xlu0 %644
          %s647 = scalar_lea.vmem [#allocation3], 4
          %648 = vst.msk [vmem:[%s647] sm:$0xf] %vm630, %v645
          %649 = vrot.lane.b32.xlu0 %v634, 112
          %v650 = vpop.permute.xlu0 %649
          %s652 = scalar_lea.vmem [#allocation2], 8
          %653 = vst.msk [vmem:[%s652] sm:$0xf] %vm630, %v650
          %654 = vrot.lane.b32.xlu0 %v634, 80
          %v655 = vpop.permute.xlu0 %654
          %s657 = scalar_lea.vmem [#allocation3], 8
          %658 = vst.msk [vmem:[%s657] sm:$0xf] %vm630, %v655
          %659 = vrot.lane.b32.xlu0 %v634, 104
          %v660 = vpop.permute.xlu0 %659
          %s662 = scalar_lea.vmem [#allocation2], 12
          %663 = vst.msk [vmem:[%s662] sm:$0xf] %vm630, %v660
          %664 = vrot.lane.b32.xlu0 %v634, 72
          %v665 = vpop.permute.xlu0 %664
          %s667 = scalar_lea.vmem [#allocation3], 12
          %668 = vst.msk [vmem:[%s667] sm:$0xf] %vm630, %v665
        $region100: #{tpu_custom_call.1} parent=79 // pred_fallthru
          _
        %s669 = smul.u32 %s37, 8
        %s670 = scalar_lea.vmem %s554, %s669
        %v671 = vld [vmem:[%s670] sm:$0xff]
        %v672 = vpack.c.bf16 %v671, %v671
        %v673 = vld [vmem:[%s1] sm:$0xf]
        %v674 = vld [vmem:[%s1 + $0x4] sm:$0xf]
        %v675 = vld [vmem:[%s1 + $0x8] sm:$0xf]
        %v676 = vld [vmem:[%s1 + $0xc] sm:$0xf]
        %v677 = vld [vmem:[#allocation4] sm:$0x1]
        %v679 = vlaneseq
        %v680 = vshrl.u32 %v679, 7
        %v681 = vsub.s32 0, %v680
        %v682 = vrot.slane %v677, %v681
        %v688 = vunpack.c.l.b16 %v673
        %v689 = vunpack.c.l.b16 %v674
        %v690 = vunpack.c.l.b16 %v675
        %v691 = vunpack.c.l.b16 %v676
        %v692 = vpack.c.b16 %v689, %v688
        %v693 = vpack.c.b16 %v691, %v690
        %vm696 = vcmask 261120
        %v698 = vsel %vm696, %v672, 0
        %700 = vmatprep.subr.bf16.mxu0 0
        %701 = vmatpush1.bf16.msra.mxu0 0
        %702 = vmatprep.subr.bf16.mxu0 0
        %703 = vmatpush1.bf16.msra.mxu0 0
        %704 = vmatprep.subr.bf16.mxu0 0
        %705 = vmatpush1.bf16.msra.mxu0 0
        %706 = vmatprep.subr.bf16.mxu0 0
        %707 = vmatpush1.bf16.msra.mxu0 0
        %708 = vmatprep.subr.bf16.mxu0 0
        %709 = vmatpush1.bf16.msra.mxu0 0
        %710 = vmatprep.subr.bf16.mxu0 0
        %711 = vmatpush1.bf16.msra.mxu0 0
        %712 = vmatprep.subr.bf16.mxu0 0
        %713 = vmatpush1.bf16.msra.mxu0 %v693
        %714 = vmatprep.subr.bf16.mxu0 0
        %715 = vmatpush1.bf16.msra.mxu0 %v692
        %716 = vmatprep.subr.bf16.mxu0 0
        %717 = vmatpush2.bf16.msra.mxu0 0
        %718 = vmatprep.subr.bf16.mxu0 0
        %719 = vmatpush2.bf16.msra.mxu0 0
        %720 = vmatprep.subr.bf16.mxu0 0
        %721 = vmatpush2.bf16.msra.mxu0 0
        %722 = vmatprep.subr.bf16.mxu0 0
        %723 = vmatpush2.bf16.msra.mxu0 0
        %724 = vmatprep.subr.bf16.mxu0 0
        %725 = vmatpush2.bf16.msra.mxu0 0
        %726 = vmatprep.subr.bf16.mxu0 0
        %727 = vmatpush2.bf16.msra.mxu0 0
        %728 = vmatprep.subr.bf16.mxu0 0
        %729 = vmatpush2.bf16.msra.mxu0 0
        %730 = vmatprep.subr.bf16.mxu0 0
        %731 = vmatpush2.bf16.msra.mxu0 0
        %732 = vmatprep.mubr.bf16.mxu0 0
        %733 = vmatmul.mubr.bf16.gmra.mxu0 %v698
        %v734 = vpop.f32.mrf.mxu0
        %v735 = vadd.f32 %v682, %v734
        %v736 = vpop.f32.mrf.mxu0
        %v737 = vpop.f32.mrf.mxu0
        %v738 = vpop.f32.mrf.mxu0
        %739 = vdwg.mxu0
        %v740 = vpack.c.bf16 %v735, %v735
        %v741 = vld [vmem:[#allocation2] sm:$0xf]
        %vm742 = vcmask 64512
        %v744 = vsel %vm742, %v740, 0
        %v747 = vsel %vm742, %v741, 0
        %749 = vmatprep.subr.bf16.mxu0 0
        %750 = vmatpush1.bf16.xpose.msra.mxu0 0
        %751 = vmatprep.subr.bf16.mxu0 0
        %752 = vmatpush1.bf16.xpose.msra.mxu0 0
        %753 = vmatprep.subr.bf16.mxu0 0
        %754 = vmatpush1.bf16.xpose.msra.mxu0 0
        %755 = vmatprep.subr.bf16.mxu0 0
        %756 = vmatpush1.bf16.xpose.msra.mxu0 0
        %757 = vmatprep.subr.bf16.mxu0 0
        %758 = vmatpush1.bf16.xpose.msra.mxu0 0
        %759 = vmatprep.subr.bf16.mxu0 0
        %760 = vmatpush1.bf16.xpose.msra.mxu0 0
        %761 = vmatprep.subr.bf16.mxu0 0
        %762 = vmatpush1.bf16.xpose.msra.mxu0 0
        %763 = vmatprep.subr.bf16.mxu0 0
        %764 = vmatpush1.bf16.xpose.msra.mxu0 %v747
        %765 = vmatprep.subr.bf16.mxu0 0
        %766 = vmatpush2.bf16.xpose.msra.mxu0 0
        %767 = vmatprep.subr.bf16.mxu0 0
        %768 = vmatpush2.bf16.xpose.msra.mxu0 0
        %769 = vmatprep.subr.bf16.mxu0 0
        %770 = vmatpush2.bf16.xpose.msra.mxu0 0
        %771 = vmatprep.subr.bf16.mxu0 0
        %772 = vmatpush2.bf16.xpose.msra.mxu0 0
        %773 = vmatprep.subr.bf16.mxu0 0
        %774 = vmatpush2.bf16.xpose.msra.mxu0 0
        %775 = vmatprep.subr.bf16.mxu0 0
        %776 = vmatpush2.bf16.xpose.msra.mxu0 0
        %777 = vmatprep.subr.bf16.mxu0 0
        %778 = vmatpush2.bf16.xpose.msra.mxu0 0
        %779 = vmatprep.subr.bf16.mxu0 0
        %780 = vmatpush2.bf16.xpose.msra.mxu0 0
        %781 = vmatprep.mubr.bf16.mxu0 0
        %782 = vmatmul.mubr.bf16.gmra.mxu0 %v744
        %v783 = vpop.f32.mrf.mxu0
        %v784 = vadd.f32 0.0, %v783
        %v785 = vpop.f32.mrf.mxu0
        %v786 = vpop.f32.mrf.mxu0
        %v787 = vpop.f32.mrf.mxu0
        %788 = vdwg.mxu0
        %v789 = vmul.f32 %v784, 0.35355338
        %v790 = vsel %vm742, %v789, -inf
        %791 = vmax.xlane.f32.xlu0 %v790
        %v792 = vpop.xlane.xlu0 %791
        %v793 = vsub.f32 %v789, %v792
        %v794 = vmul.f32 %v793, 1.442695
        %v795 = vpow.pop %v794
        %v796 = vsel %vm742, %v795, 0.0
        %797 = vadd.xlane.f32.xlu0 %v796
        %v798 = vpop.xlane.xlu0 %797
        %v799 = vrcp.pop %v798
        %v800 = vmul.f32 %v795, %v799
        %v801 = vpack.c.bf16 %v800, %v800
        %v802 = vld [vmem:[#allocation3] sm:$0xf]
        %v804 = vsel %vm742, %v801, 0
        %vm806 = vcmask 1043456
        %v808 = vsel %vm806, %v802, 0
        %810 = vmatprep.subr.bf16.mxu0 0
        %811 = vmatpush1.bf16.msra.mxu0 0
        %812 = vmatprep.subr.bf16.mxu0 0
        %813 = vmatpush1.bf16.msra.mxu0 0
        %814 = vmatprep.subr.bf16.mxu0 0
        %815 = vmatpush1.bf16.msra.mxu0 0
        %816 = vmatprep.subr.bf16.mxu0 0
        %817 = vmatpush1.bf16.msra.mxu0 0
        %818 = vmatprep.subr.bf16.mxu0 0
        %819 = vmatpush1.bf16.msra.mxu0 0
        %820 = vmatprep.subr.bf16.mxu0 0
        %821 = vmatpush1.bf16.msra.mxu0 0
        %822 = vmatprep.subr.bf16.mxu0 0
        %823 = vmatpush1.bf16.msra.mxu0 0
        %824 = vmatprep.subr.bf16.mxu0 0
        %825 = vmatpush1.bf16.msra.mxu0 %v808
        %826 = vmatprep.subr.bf16.mxu0 0
        %827 = vmatpush2.bf16.msra.mxu0 0
        %828 = vmatprep.subr.bf16.mxu0 0
        %829 = vmatpush2.bf16.msra.mxu0 0
        %830 = vmatprep.subr.bf16.mxu0 0
        %831 = vmatpush2.bf16.msra.mxu0 0
        %832 = vmatprep.subr.bf16.mxu0 0
        %833 = vmatpush2.bf16.msra.mxu0 0
        %834 = vmatprep.subr.bf16.mxu0 0
        %835 = vmatpush2.bf16.msra.mxu0 0
        %836 = vmatprep.subr.bf16.mxu0 0
        %837 = vmatpush2.bf16.msra.mxu0 0
        %838 = vmatprep.subr.bf16.mxu0 0
        %839 = vmatpush2.bf16.msra.mxu0 0
        %840 = vmatprep.subr.bf16.mxu0 0
        %841 = vmatpush2.bf16.msra.mxu0 0
        %842 = vmatprep.mubr.bf16.mxu0 0
        %843 = vmatmul.mubr.bf16.gmra.mxu0 %v804
        %v844 = vpop.f32.mrf.mxu0
        %v845 = vadd.f32 0.0, %v844
        %v846 = vpop.f32.mrf.mxu0
        %v847 = vpop.f32.mrf.mxu0
        %v848 = vpop.f32.mrf.mxu0
        %849 = vdwg.mxu0
        %s850 = scalar_lea.vmem [#allocation2], 4
        %v851 = vld [vmem:[%s850] sm:$0xf]
        %853 = vrot.lane.b32.xlu0 %v740, 120
        %v854 = vpop.permute.xlu0 %853
        %v856 = vsel %vm742, %v854, 0
        %v859 = vsel %vm742, %v851, 0
        %861 = vmatprep.subr.bf16.mxu0 0
        %862 = vmatpush1.bf16.xpose.msra.mxu0 0
        %863 = vmatprep.subr.bf16.mxu0 0
        %864 = vmatpush1.bf16.xpose.msra.mxu0 0
        %865 = vmatprep.subr.bf16.mxu0 0
        %866 = vmatpush1.bf16.xpose.msra.mxu0 0
        %867 = vmatprep.subr.bf16.mxu0 0
        %868 = vmatpush1.bf16.xpose.msra.mxu0 0
        %869 = vmatprep.subr.bf16.mxu0 0
        %870 = vmatpush1.bf16.xpose.msra.mxu0 0
        %871 = vmatprep.subr.bf16.mxu0 0
        %872 = vmatpush1.bf16.xpose.msra.mxu0 0
        %873 = vmatprep.subr.bf16.mxu0 0
        %874 = vmatpush1.bf16.xpose.msra.mxu0 0
        %875 = vmatprep.subr.bf16.mxu0 0
        %876 = vmatpush1.bf16.xpose.msra.mxu0 %v859
        %877 = vmatprep.subr.bf16.mxu0 0
        %878 = vmatpush2.bf16.xpose.msra.mxu0 0
        %879 = vmatprep.subr.bf16.mxu0 0
        %880 = vmatpush2.bf16.xpose.msra.mxu0 0
        %881 = vmatprep.subr.bf16.mxu0 0
        %882 = vmatpush2.bf16.xpose.msra.mxu0 0
        %883 = vmatprep.subr.bf16.mxu0 0
        %884 = vmatpush2.bf16.xpose.msra.mxu0 0
        %885 = vmatprep.subr.bf16.mxu0 0
        %886 = vmatpush2.bf16.xpose.msra.mxu0 0
        %887 = vmatprep.subr.bf16.mxu0 0
        %888 = vmatpush2.bf16.xpose.msra.mxu0 0
        %889 = vmatprep.subr.bf16.mxu0 0
        %890 = vmatpush2.bf16.xpose.msra.mxu0 0
        %891 = vmatprep.subr.bf16.mxu0 0
        %892 = vmatpush2.bf16.xpose.msra.mxu0 0
        %893 = vmatprep.mubr.bf16.mxu0 0
        %894 = vmatmul.mubr.bf16.gmra.mxu0 %v856
        %v895 = vpop.f32.mrf.mxu0
        %v896 = vadd.f32 0.0, %v895
        %v897 = vpop.f32.mrf.mxu0
        %v898 = vpop.f32.mrf.mxu0
        %v899 = vpop.f32.mrf.mxu0
        %900 = vdwg.mxu0
        %v901 = vmul.f32 %v896, 0.35355338
        %v902 = vsel %vm742, %v901, -inf
        %903 = vmax.xlane.f32.xlu0 %v902
        %v904 = vpop.xlane.xlu0 %903
        %v905 = vsub.f32 %v901, %v904
        %v906 = vmul.f32 %v905, 1.442695
        %v907 = vpow.pop %v906
        %v908 = vsel %vm742, %v907, 0.0
        %909 = vadd.xlane.f32.xlu0 %v908
        %v910 = vpop.xlane.xlu0 %909
        %v911 = vrcp.pop %v910
        %v912 = vmul.f32 %v907, %v911
        %v913 = vpack.c.bf16 %v912, %v912
        %s914 = scalar_lea.vmem [#allocation3], 4
        %v915 = vld [vmem:[%s914] sm:$0xf]
        %v917 = vsel %vm742, %v913, 0
        %v920 = vsel %vm806, %v915, 0
        %922 = vmatprep.subr.bf16.mxu0 0
        %923 = vmatpush1.bf16.msra.mxu0 0
        %924 = vmatprep.subr.bf16.mxu0 0
        %925 = vmatpush1.bf16.msra.mxu0 0
        %926 = vmatprep.subr.bf16.mxu0 0
        %927 = vmatpush1.bf16.msra.mxu0 0
        %928 = vmatprep.subr.bf16.mxu0 0
        %929 = vmatpush1.bf16.msra.mxu0 0
        %930 = vmatprep.subr.bf16.mxu0 0
        %931 = vmatpush1.bf16.msra.mxu0 0
        %932 = vmatprep.subr.bf16.mxu0 0
        %933 = vmatpush1.bf16.msra.mxu0 0
        %934 = vmatprep.subr.bf16.mxu0 0
        %935 = vmatpush1.bf16.msra.mxu0 0
        %936 = vmatprep.subr.bf16.mxu0 0
        %937 = vmatpush1.bf16.msra.mxu0 %v920
        %938 = vmatprep.subr.bf16.mxu0 0
        %939 = vmatpush2.bf16.msra.mxu0 0
        %940 = vmatprep.subr.bf16.mxu0 0
        %941 = vmatpush2.bf16.msra.mxu0 0
        %942 = vmatprep.subr.bf16.mxu0 0
        %943 = vmatpush2.bf16.msra.mxu0 0
        %944 = vmatprep.subr.bf16.mxu0 0
        %945 = vmatpush2.bf16.msra.mxu0 0
        %946 = vmatprep.subr.bf16.mxu0 0
        %947 = vmatpush2.bf16.msra.mxu0 0
        %948 = vmatprep.subr.bf16.mxu0 0
        %949 = vmatpush2.bf16.msra.mxu0 0
        %950 = vmatprep.subr.bf16.mxu0 0
        %951 = vmatpush2.bf16.msra.mxu0 0
        %952 = vmatprep.subr.bf16.mxu0 0
        %953 = vmatpush2.bf16.msra.mxu0 0
        %954 = vmatprep.mubr.bf16.mxu0 0
        %955 = vmatmul.mubr.bf16.gmra.mxu0 %v917
        %v956 = vpop.f32.mrf.mxu0
        %v957 = vadd.f32 0.0, %v956
        %v958 = vpop.f32.mrf.mxu0
        %v959 = vpop.f32.mrf.mxu0
        %v960 = vpop.f32.mrf.mxu0
        %961 = vdwg.mxu0
        %s962 = scalar_lea.vmem [#allocation2], 8
        %v963 = vld [vmem:[%s962] sm:$0xf]
        %964 = vrot.lane.b32.xlu0 %v740, 112
        %v965 = vpop.permute.xlu0 %964
        %v967 = vsel %vm742, %v965, 0
        %v970 = vsel %vm742, %v963, 0
        %972 = vmatprep.subr.bf16.mxu0 0
        %973 = vmatpush1.bf16.xpose.msra.mxu0 0
        %974 = vmatprep.subr.bf16.mxu0 0
        %975 = vmatpush1.bf16.xpose.msra.mxu0 0
        %976 = vmatprep.subr.bf16.mxu0 0
        %977 = vmatpush1.bf16.xpose.msra.mxu0 0
        %978 = vmatprep.subr.bf16.mxu0 0
        %979 = vmatpush1.bf16.xpose.msra.mxu0 0
        %980 = vmatprep.subr.bf16.mxu0 0
        %981 = vmatpush1.bf16.xpose.msra.mxu0 0
        %982 = vmatprep.subr.bf16.mxu0 0
        %983 = vmatpush1.bf16.xpose.msra.mxu0 0
        %984 = vmatprep.subr.bf16.mxu0 0
        %985 = vmatpush1.bf16.xpose.msra.mxu0 0
        %986 = vmatprep.subr.bf16.mxu0 0
        %987 = vmatpush1.bf16.xpose.msra.mxu0 %v970
        %988 = vmatprep.subr.bf16.mxu0 0
        %989 = vmatpush2.bf16.xpose.msra.mxu0 0
        %990 = vmatprep.subr.bf16.mxu0 0
        %991 = vmatpush2.bf16.xpose.msra.mxu0 0
        %992 = vmatprep.subr.bf16.mxu0 0
        %993 = vmatpush2.bf16.xpose.msra.mxu0 0
        %994 = vmatprep.subr.bf16.mxu0 0
        %995 = vmatpush2.bf16.xpose.msra.mxu0 0
        %996 = vmatprep.subr.bf16.mxu0 0
        %997 = vmatpush2.bf16.xpose.msra.mxu0 0
        %998 = vmatprep.subr.bf16.mxu0 0
        %999 = vmatpush2.bf16.xpose.msra.mxu0 0
        %1000 = vmatprep.subr.bf16.mxu0 0
        %1001 = vmatpush2.bf16.xpose.msra.mxu0 0
        %1002 = vmatprep.subr.bf16.mxu0 0
        %1003 = vmatpush2.bf16.xpose.msra.mxu0 0
        %1004 = vmatprep.mubr.bf16.mxu0 0
        %1005 = vmatmul.mubr.bf16.gmra.mxu0 %v967
        %v1006 = vpop.f32.mrf.mxu0
        %v1007 = vadd.f32 0.0, %v1006
        %v1008 = vpop.f32.mrf.mxu0
        %v1009 = vpop.f32.mrf.mxu0
        %v1010 = vpop.f32.mrf.mxu0
        %1011 = vdwg.mxu0
        %v1012 = vmul.f32 %v1007, 0.35355338
        %v1013 = vsel %vm742, %v1012, -inf
        %1014 = vmax.xlane.f32.xlu0 %v1013
        %v1015 = vpop.xlane.xlu0 %1014
        %v1016 = vsub.f32 %v1012, %v1015
        %v1017 = vmul.f32 %v1016, 1.442695
        %v1018 = vpow.pop %v1017
        %v1019 = vsel %vm742, %v1018, 0.0
        %1020 = vadd.xlane.f32.xlu0 %v1019
        %v1021 = vpop.xlane.xlu0 %1020
        %v1022 = vrcp.pop %v1021
        %v1023 = vmul.f32 %v1018, %v1022
        %v1024 = vpack.c.bf16 %v1023, %v1023
        %s1025 = scalar_lea.vmem [#allocation3], 8
        %v1026 = vld [vmem:[%s1025] sm:$0xf]
        %v1028 = vsel %vm742, %v1024, 0
        %v1031 = vsel %vm806, %v1026, 0
        %1033 = vmatprep.subr.bf16.mxu0 0
        %1034 = vmatpush1.bf16.msra.mxu0 0
        %1035 = vmatprep.subr.bf16.mxu0 0
        %1036 = vmatpush1.bf16.msra.mxu0 0
        %1037 = vmatprep.subr.bf16.mxu0 0
        %1038 = vmatpush1.bf16.msra.mxu0 0
        %1039 = vmatprep.subr.bf16.mxu0 0
        %1040 = vmatpush1.bf16.msra.mxu0 0
        %1041 = vmatprep.subr.bf16.mxu0 0
        %1042 = vmatpush1.bf16.msra.mxu0 0
        %1043 = vmatprep.subr.bf16.mxu0 0
        %1044 = vmatpush1.bf16.msra.mxu0 0
        %1045 = vmatprep.subr.bf16.mxu0 0
        %1046 = vmatpush1.bf16.msra.mxu0 0
        %1047 = vmatprep.subr.bf16.mxu0 0
        %1048 = vmatpush1.bf16.msra.mxu0 %v1031
        %1049 = vmatprep.subr.bf16.mxu0 0
        %1050 = vmatpush2.bf16.msra.mxu0 0
        %1051 = vmatprep.subr.bf16.mxu0 0
        %1052 = vmatpush2.bf16.msra.mxu0 0
        %1053 = vmatprep.subr.bf16.mxu0 0
        %1054 = vmatpush2.bf16.msra.mxu0 0
        %1055 = vmatprep.subr.bf16.mxu0 0
        %1056 = vmatpush2.bf16.msra.mxu0 0
        %1057 = vmatprep.subr.bf16.mxu0 0
        %1058 = vmatpush2.bf16.msra.mxu0 0
        %1059 = vmatprep.subr.bf16.mxu0 0
        %1060 = vmatpush2.bf16.msra.mxu0 0
        %1061 = vmatprep.subr.bf16.mxu0 0
        %1062 = vmatpush2.bf16.msra.mxu0 0
        %1063 = vmatprep.subr.bf16.mxu0 0
        %1064 = vmatpush2.bf16.msra.mxu0 0
        %1065 = vmatprep.mubr.bf16.mxu0 0
        %1066 = vmatmul.mubr.bf16.gmra.mxu0 %v1028
        %v1067 = vpop.f32.mrf.mxu0
        %v1068 = vadd.f32 0.0, %v1067
        %v1069 = vpop.f32.mrf.mxu0
        %v1070 = vpop.f32.mrf.mxu0
        %v1071 = vpop.f32.mrf.mxu0
        %1072 = vdwg.mxu0
        %s1073 = scalar_lea.vmem [#allocation2], 12
        %v1074 = vld [vmem:[%s1073] sm:$0xf]
        %1075 = vrot.lane.b32.xlu0 %v740, 104
        %v1076 = vpop.permute.xlu0 %1075
        %v1078 = vsel %vm742, %v1076, 0
        %v1081 = vsel %vm742, %v1074, 0
        %1083 = vmatprep.subr.bf16.mxu0 0
        %1084 = vmatpush1.bf16.xpose.msra.mxu0 0
        %1085 = vmatprep.subr.bf16.mxu0 0
        %1086 = vmatpush1.bf16.xpose.msra.mxu0 0
        %1087 = vmatprep.subr.bf16.mxu0 0
        %1088 = vmatpush1.bf16.xpose.msra.mxu0 0
        %1089 = vmatprep.subr.bf16.mxu0 0
        %1090 = vmatpush1.bf16.xpose.msra.mxu0 0
        %1091 = vmatprep.subr.bf16.mxu0 0
        %1092 = vmatpush1.bf16.xpose.msra.mxu0 0
        %1093 = vmatprep.subr.bf16.mxu0 0
        %1094 = vmatpush1.bf16.xpose.msra.mxu0 0
        %1095 = vmatprep.subr.bf16.mxu0 0
        %1096 = vmatpush1.bf16.xpose.msra.mxu0 0
        %1097 = vmatprep.subr.bf16.mxu0 0
        %1098 = vmatpush1.bf16.xpose.msra.mxu0 %v1081
        %1099 = vmatprep.subr.bf16.mxu0 0
        %1100 = vmatpush2.bf16.xpose.msra.mxu0 0
        %1101 = vmatprep.subr.bf16.mxu0 0
        %1102 = vmatpush2.bf16.xpose.msra.mxu0 0
        %1103 = vmatprep.subr.bf16.mxu0 0
        %1104 = vmatpush2.bf16.xpose.msra.mxu0 0
        %1105 = vmatprep.subr.bf16.mxu0 0
        %1106 = vmatpush2.bf16.xpose.msra.mxu0 0
        %1107 = vmatprep.subr.bf16.mxu0 0
        %1108 = vmatpush2.bf16.xpose.msra.mxu0 0
        %1109 = vmatprep.subr.bf16.mxu0 0
        %1110 = vmatpush2.bf16.xpose.msra.mxu0 0
        %1111 = vmatprep.subr.bf16.mxu0 0
        %1112 = vmatpush2.bf16.xpose.msra.mxu0 0
        %1113 = vmatprep.subr.bf16.mxu0 0
        %1114 = vmatpush2.bf16.xpose.msra.mxu0 0
        %1115 = vmatprep.mubr.bf16.mxu0 0
        %1116 = vmatmul.mubr.bf16.gmra.mxu0 %v1078
        %v1117 = vpop.f32.mrf.mxu0
        %v1118 = vadd.f32 0.0, %v1117
        %v1119 = vpop.f32.mrf.mxu0
        %v1120 = vpop.f32.mrf.mxu0
        %v1121 = vpop.f32.mrf.mxu0
        %1122 = vdwg.mxu0
        %v1123 = vmul.f32 %v1118, 0.35355338
        %v1124 = vsel %vm742, %v1123, -inf
        %1125 = vmax.xlane.f32.xlu0 %v1124
        %v1126 = vpop.xlane.xlu0 %1125
        %v1127 = vsub.f32 %v1123, %v1126
        %v1128 = vmul.f32 %v1127, 1.442695
        %v1129 = vpow.pop %v1128
        %v1130 = vsel %vm742, %v1129, 0.0
        %1131 = vadd.xlane.f32.xlu0 %v1130
        %v1132 = vpop.xlane.xlu0 %1131
        %v1133 = vrcp.pop %v1132
        %v1134 = vmul.f32 %v1129, %v1133
        %v1135 = vpack.c.bf16 %v1134, %v1134
        %s1136 = scalar_lea.vmem [#allocation3], 12
        %v1137 = vld [vmem:[%s1136] sm:$0xf]
        %v1139 = vsel %vm742, %v1135, 0
        %v1142 = vsel %vm806, %v1137, 0
        %1144 = vmatprep.subr.bf16.mxu0 0
        %1145 = vmatpush1.bf16.msra.mxu0 0
        %1146 = vmatprep.subr.bf16.mxu0 0
        %1147 = vmatpush1.bf16.msra.mxu0 0
        %1148 = vmatprep.subr.bf16.mxu0 0
        %1149 = vmatpush1.bf16.msra.mxu0 0
        %1150 = vmatprep.subr.bf16.mxu0 0
        %1151 = vmatpush1.bf16.msra.mxu0 0
        %1152 = vmatprep.subr.bf16.mxu0 0
        %1153 = vmatpush1.bf16.msra.mxu0 0
        %1154 = vmatprep.subr.bf16.mxu0 0
        %1155 = vmatpush1.bf16.msra.mxu0 0
        %1156 = vmatprep.subr.bf16.mxu0 0
        %1157 = vmatpush1.bf16.msra.mxu0 0
        %1158 = vmatprep.subr.bf16.mxu0 0
        %1159 = vmatpush1.bf16.msra.mxu0 %v1142
        %1160 = vmatprep.subr.bf16.mxu0 0
        %1161 = vmatpush2.bf16.msra.mxu0 0
        %1162 = vmatprep.subr.bf16.mxu0 0
        %1163 = vmatpush2.bf16.msra.mxu0 0
        %1164 = vmatprep.subr.bf16.mxu0 0
        %1165 = vmatpush2.bf16.msra.mxu0 0
        %1166 = vmatprep.subr.bf16.mxu0 0
        %1167 = vmatpush2.bf16.msra.mxu0 0
        %1168 = vmatprep.subr.bf16.mxu0 0
        %1169 = vmatpush2.bf16.msra.mxu0 0
        %1170 = vmatprep.subr.bf16.mxu0 0
        %1171 = vmatpush2.bf16.msra.mxu0 0
        %1172 = vmatprep.subr.bf16.mxu0 0
        %1173 = vmatpush2.bf16.msra.mxu0 0
        %1174 = vmatprep.subr.bf16.mxu0 0
        %1175 = vmatpush2.bf16.msra.mxu0 0
        %1176 = vmatprep.mubr.bf16.mxu0 0
        %1177 = vmatmul.mubr.bf16.gmra.mxu0 %v1139
        %v1178 = vpop.f32.mrf.mxu0
        %v1179 = vadd.f32 0.0, %v1178
        %v1180 = vpop.f32.mrf.mxu0
        %v1181 = vpop.f32.mrf.mxu0
        %v1182 = vpop.f32.mrf.mxu0
        %1183 = vdwg.mxu0
        %1185 = vrot.lane.b32.xlu0 %v957, 8
        %v1186 = vpop.permute.xlu0 %1185
        %1189 = vrot.lane.b32.xlu0 %v1068, 16
        %v1190 = vpop.permute.xlu0 %1189
        %1193 = vrot.lane.b32.xlu0 %v1179, 24
        %v1194 = vpop.permute.xlu0 %1193
        %v1196 = vsel %vm742, %v845, %v1186
        %vm1197 = vcmask 130048
        %v1198 = vsel %vm1197, %v1196, %v1190
        %vm1199 = vcmask 195584
        %v1200 = vsel %vm1199, %v1198, %v1194
        %v1201 = vpack.c.bf16 %v1200, %v1200
        %v1202 = vld [vmem:[%s5] sm:$0xf]
        %v1203 = vld [vmem:[%s5 + $0x4] sm:$0xf]
        %v1204 = vld [vmem:[%s5 + $0x8] sm:$0xf]
        %v1205 = vld [vmem:[%s5 + $0xc] sm:$0xf]
        %v1206 = vld [vmem:[#allocation9] sm:$0x1]
        %v1208 = vlaneseq
        %v1209 = vshrl.u32 %v1208, 7
        %v1210 = vsub.s32 0, %v1209
        %v1211 = vrot.slane %v1206, %v1210
        %v1217 = vunpack.c.l.b16 %v1202
        %v1218 = vunpack.c.l.b16 %v1203
        %v1219 = vunpack.c.l.b16 %v1204
        %v1220 = vunpack.c.l.b16 %v1205
        %v1221 = vpack.c.b16 %v1218, %v1217
        %v1222 = vpack.c.b16 %v1220, %v1219
        %v1226 = vsel %vm696, %v1201, 0
        %1228 = vmatprep.subr.bf16.mxu0 0
        %1229 = vmatpush1.bf16.msra.mxu0 0
        %1230 = vmatprep.subr.bf16.mxu0 0
        %1231 = vmatpush1.bf16.msra.mxu0 0
        %1232 = vmatprep.subr.bf16.mxu0 0
        %1233 = vmatpush1.bf16.msra.mxu0 0
        %1234 = vmatprep.subr.bf16.mxu0 0
        %1235 = vmatpush1.bf16.msra.mxu0 0
        %1236 = vmatprep.subr.bf16.mxu0 0
        %1237 = vmatpush1.bf16.msra.mxu0 0
        %1238 = vmatprep.subr.bf16.mxu0 0
        %1239 = vmatpush1.bf16.msra.mxu0 0
        %1240 = vmatprep.subr.bf16.mxu0 0
        %1241 = vmatpush1.bf16.msra.mxu0 %v1222
        %1242 = vmatprep.subr.bf16.mxu0 0
        %1243 = vmatpush1.bf16.msra.mxu0 %v1221
        %1244 = vmatprep.subr.bf16.mxu0 0
        %1245 = vmatpush2.bf16.msra.mxu0 0
        %1246 = vmatprep.subr.bf16.mxu0 0
        %1247 = vmatpush2.bf16.msra.mxu0 0
        %1248 = vmatprep.subr.bf16.mxu0 0
        %1249 = vmatpush2.bf16.msra.mxu0 0
        %1250 = vmatprep.subr.bf16.mxu0 0
        %1251 = vmatpush2.bf16.msra.mxu0 0
        %1252 = vmatprep.subr.bf16.mxu0 0
        %1253 = vmatpush2.bf16.msra.mxu0 0
        %1254 = vmatprep.subr.bf16.mxu0 0
        %1255 = vmatpush2.bf16.msra.mxu0 0
        %1256 = vmatprep.subr.bf16.mxu0 0
        %1257 = vmatpush2.bf16.msra.mxu0 0
        %1258 = vmatprep.subr.bf16.mxu0 0
        %1259 = vmatpush2.bf16.msra.mxu0 0
        %1260 = vmatprep.mubr.bf16.mxu0 0
        %1261 = vmatmul.mubr.bf16.gmra.mxu0 %v1226
        %v1262 = vpop.f32.mrf.mxu0
        %v1263 = vadd.f32 %v1211, %v1262
        %v1264 = vpop.f32.mrf.mxu0
        %v1265 = vpop.f32.mrf.mxu0
        %v1266 = vpop.f32.mrf.mxu0
        %1267 = vdwg.mxu0
        %v1268 = vadd.f32 %v671, %v1263
        %v1269 = vld [vmem:[%s11] sm:$0x1]
        %v1270 = vld [vmem:[%s12] sm:$0x1]
        %v1271 = vsel %vm696, %v1268, 0.0
        %1272 = vadd.xlane.f32.xlu0 %v1271
        %v1273 = vpop.xlane.xlu0 %1272
        %v1274 = vrcp.pop 32.0
        %v1275 = vmul.f32 %v1273, %v1274
        %v1276 = vsub.f32 %v1268, %v1275
        %v1277 = vmul.f32 %v1276, %v1276
        %v1278 = vsel %vm696, %v1277, 0.0
        %1279 = vadd.xlane.f32.xlu0 %v1278
        %v1280 = vpop.xlane.xlu0 %1279
        %v1281 = vmul.f32 %v1280, %v1274
        %v1282 = vadd.f32 %v1281, 1e-05
        %v1283 = vrsqrt.pop %v1282
        %v1284 = vmul.f32 %v1276, %v1283
        %v1286 = vlaneseq
        %v1287 = vshrl.u32 %v1286, 7
        %v1288 = vsub.s32 0, %v1287
        %v1289 = vrot.slane %v1269, %v1288
        %v1291 = vmul.f32 %v1284, %v1289
        %v1293 = vlaneseq
        %v1294 = vshrl.u32 %v1293, 7
        %v1295 = vsub.s32 0, %v1294
        %v1296 = vrot.slane %v1270, %v1295
        %v1298 = vadd.f32 %v1291, %v1296
        %v1299 = vpack.c.bf16 %v1298, %v1298
        %v1300 = vld [vmem:[%s7] sm:$0xf]
        %v1301 = vld [vmem:[%s7 + $0x4] sm:$0xf]
        %v1302 = vld [vmem:[%s7 + $0x8] sm:$0xf]
        %v1303 = vld [vmem:[%s7 + $0xc] sm:$0xf]
        %v1304 = vld [vmem:[#allocation10] sm:$0x1]
        %v1306 = vlaneseq
        %v1307 = vshrl.u32 %v1306, 7
        %v1308 = vsub.s32 0, %v1307
        %v1309 = vrot.slane %v1304, %v1308
        %v1315 = vunpack.c.l.b16 %v1300
        %v1316 = vunpack.c.l.b16 %v1301
        %v1317 = vunpack.c.l.b16 %v1302
        %v1318 = vunpack.c.l.b16 %v1303
        %v1319 = vpack.c.b16 %v1316, %v1315
        %v1320 = vpack.c.b16 %v1318, %v1317
        %v1324 = vsel %vm696, %v1299, 0
        %1326 = vmatprep.subr.bf16.mxu0 0
        %1327 = vmatpush1.bf16.msra.mxu0 0
        %1328 = vmatprep.subr.bf16.mxu0 0
        %1329 = vmatpush1.bf16.msra.mxu0 0
        %1330 = vmatprep.subr.bf16.mxu0 0
        %1331 = vmatpush1.bf16.msra.mxu0 0
        %1332 = vmatprep.subr.bf16.mxu0 0
        %1333 = vmatpush1.bf16.msra.mxu0 0
        %1334 = vmatprep.subr.bf16.mxu0 0
        %1335 = vmatpush1.bf16.msra.mxu0 0
        %1336 = vmatprep.subr.bf16.mxu0 0
        %1337 = vmatpush1.bf16.msra.mxu0 0
        %1338 = vmatprep.subr.bf16.mxu0 0
        %1339 = vmatpush1.bf16.msra.mxu0 %v1320
        %1340 = vmatprep.subr.bf16.mxu0 0
        %1341 = vmatpush1.bf16.msra.mxu0 %v1319
        %1342 = vmatprep.subr.bf16.mxu0 0
        %1343 = vmatpush2.bf16.msra.mxu0 0
        %1344 = vmatprep.subr.bf16.mxu0 0
        %1345 = vmatpush2.bf16.msra.mxu0 0
        %1346 = vmatprep.subr.bf16.mxu0 0
        %1347 = vmatpush2.bf16.msra.mxu0 0
        %1348 = vmatprep.subr.bf16.mxu0 0
        %1349 = vmatpush2.bf16.msra.mxu0 0
        %1350 = vmatprep.subr.bf16.mxu0 0
        %1351 = vmatpush2.bf16.msra.mxu0 0
        %1352 = vmatprep.subr.bf16.mxu0 0
        %1353 = vmatpush2.bf16.msra.mxu0 0
        %1354 = vmatprep.subr.bf16.mxu0 0
        %1355 = vmatpush2.bf16.msra.mxu0 0
        %1356 = vmatprep.subr.bf16.mxu0 0
        %1357 = vmatpush2.bf16.msra.mxu0 0
        %1358 = vmatprep.mubr.bf16.mxu0 0
        %1359 = vmatmul.mubr.bf16.gmra.mxu0 %v1324
        %v1360 = vpop.f32.mrf.mxu0
        %v1361 = vadd.f32 %v1309, %v1360
        %v1362 = vpop.f32.mrf.mxu0
        %v1363 = vpop.f32.mrf.mxu0
        %v1364 = vpop.f32.mrf.mxu0
        %1365 = vdwg.mxu0
        %v1366 = vmax.f32 %v1361, 0.0
        %v1367 = vpack.c.bf16 %v1366, %v1366
        %v1368 = vld [vmem:[%s9] sm:$0xf]
        %v1369 = vld [vmem:[%s9 + $0x4] sm:$0xf]
        %v1370 = vld [vmem:[%s9 + $0x8] sm:$0xf]
        %v1371 = vld [vmem:[%s9 + $0xc] sm:$0xf]
        %v1372 = vld [vmem:[%s9 + $0x10] sm:$0xf]
        %v1373 = vld [vmem:[%s9 + $0x14] sm:$0xf]
        %v1374 = vld [vmem:[%s9 + $0x18] sm:$0xf]
        %v1375 = vld [vmem:[%s9 + $0x1c] sm:$0xf]
        %v1376 = vld [vmem:[%s9 + $0x20] sm:$0xf]
        %v1377 = vld [vmem:[%s9 + $0x24] sm:$0xf]
        %v1378 = vld [vmem:[%s9 + $0x28] sm:$0xf]
        %v1379 = vld [vmem:[%s9 + $0x2c] sm:$0xf]
        %v1380 = vld [vmem:[%s9 + $0x30] sm:$0xf]
        %v1381 = vld [vmem:[%s9 + $0x34] sm:$0xf]
        %v1382 = vld [vmem:[%s9 + $0x38] sm:$0xf]
        %v1383 = vld [vmem:[%s9 + $0x3c] sm:$0xf]
        %v1384 = vld [vmem:[%s10] sm:$0x1]
        %v1386 = vlaneseq
        %v1387 = vshrl.u32 %v1386, 7
        %v1388 = vsub.s32 0, %v1387
        %v1389 = vrot.slane %v1384, %v1388
        %v1407 = vunpack.c.l.b16 %v1368
        %v1408 = vunpack.c.l.b16 %v1369
        %v1409 = vunpack.c.l.b16 %v1370
        %v1410 = vunpack.c.l.b16 %v1371
        %v1411 = vunpack.c.l.b16 %v1372
        %v1412 = vunpack.c.l.b16 %v1373
        %v1413 = vunpack.c.l.b16 %v1374
        %v1414 = vunpack.c.l.b16 %v1375
        %v1415 = vunpack.c.l.b16 %v1376
        %v1416 = vunpack.c.l.b16 %v1377
        %v1417 = vunpack.c.l.b16 %v1378
        %v1418 = vunpack.c.l.b16 %v1379
        %v1419 = vunpack.c.l.b16 %v1380
        %v1420 = vunpack.c.l.b16 %v1381
        %v1421 = vunpack.c.l.b16 %v1382
        %v1422 = vunpack.c.l.b16 %v1383
        %v1423 = vpack.c.b16 %v1408, %v1407
        %v1424 = vpack.c.b16 %v1410, %v1409
        %v1425 = vpack.c.b16 %v1412, %v1411
        %v1426 = vpack.c.b16 %v1414, %v1413
        %v1427 = vpack.c.b16 %v1416, %v1415
        %v1428 = vpack.c.b16 %v1418, %v1417
        %v1429 = vpack.c.b16 %v1420, %v1419
        %v1430 = vpack.c.b16 %v1422, %v1421
        %1439 = vmatprep.subr.bf16.mxu0 0
        %1440 = vmatpush1.bf16.msra.mxu0 %v1430
        %1441 = vmatprep.subr.bf16.mxu0 0
        %1442 = vmatpush1.bf16.msra.mxu0 %v1429
        %1443 = vmatprep.subr.bf16.mxu0 0
        %1444 = vmatpush1.bf16.msra.mxu0 %v1428
        %1445 = vmatprep.subr.bf16.mxu0 0
        %1446 = vmatpush1.bf16.msra.mxu0 %v1427
        %1447 = vmatprep.subr.bf16.mxu0 0
        %1448 = vmatpush1.bf16.msra.mxu0 %v1426
        %1449 = vmatprep.subr.bf16.mxu0 0
        %1450 = vmatpush1.bf16.msra.mxu0 %v1425
        %1451 = vmatprep.subr.bf16.mxu0 0
        %1452 = vmatpush1.bf16.msra.mxu0 %v1424
        %1453 = vmatprep.subr.bf16.mxu0 0
        %1454 = vmatpush1.bf16.msra.mxu0 %v1423
        %1455 = vmatprep.subr.bf16.mxu0 0
        %1456 = vmatpush2.bf16.msra.mxu0 0
        %1457 = vmatprep.subr.bf16.mxu0 0
        %1458 = vmatpush2.bf16.msra.mxu0 0
        %1459 = vmatprep.subr.bf16.mxu0 0
        %1460 = vmatpush2.bf16.msra.mxu0 0
        %1461 = vmatprep.subr.bf16.mxu0 0
        %1462 = vmatpush2.bf16.msra.mxu0 0
        %1463 = vmatprep.subr.bf16.mxu0 0
        %1464 = vmatpush2.bf16.msra.mxu0 0
        %1465 = vmatprep.subr.bf16.mxu0 0
        %1466 = vmatpush2.bf16.msra.mxu0 0
        %1467 = vmatprep.subr.bf16.mxu0 0
        %1468 = vmatpush2.bf16.msra.mxu0 0
        %1469 = vmatprep.subr.bf16.mxu0 0
        %1470 = vmatpush2.bf16.msra.mxu0 0
        %1471 = vmatprep.mubr.bf16.mxu0 0
        %1472 = vmatmul.mubr.bf16.gmra.mxu0 %v1367
        %v1473 = vpop.f32.mrf.mxu0
        %v1474 = vadd.f32 %v1389, %v1473
        %v1475 = vpop.f32.mrf.mxu0
        %v1476 = vpop.f32.mrf.mxu0
        %v1477 = vpop.f32.mrf.mxu0
        %1478 = vdwg.mxu0
        %v1479 = vadd.f32 %v1298, %v1474
        %v1480 = vld [vmem:[%s13] sm:$0x1]
        %v1481 = vld [vmem:[%s14] sm:$0x1]
        %v1482 = vsel %vm696, %v1479, 0.0
        %1483 = vadd.xlane.f32.xlu0 %v1482
        %v1484 = vpop.xlane.xlu0 %1483
        %v1485 = vmul.f32 %v1484, %v1274
        %v1486 = vsub.f32 %v1479, %v1485
        %v1487 = vmul.f32 %v1486, %v1486
        %v1488 = vsel %vm696, %v1487, 0.0
        %1489 = vadd.xlane.f32.xlu0 %v1488
        %v1490 = vpop.xlane.xlu0 %1489
        %v1491 = vmul.f32 %v1490, %v1274
        %v1492 = vadd.f32 %v1491, 1e-05
        %v1493 = vrsqrt.pop %v1492
        %v1494 = vmul.f32 %v1486, %v1493
        %v1496 = vlaneseq
        %v1497 = vshrl.u32 %v1496, 7
        %v1498 = vsub.s32 0, %v1497
        %v1499 = vrot.slane %v1480, %v1498
        %v1501 = vmul.f32 %v1494, %v1499
        %v1503 = vlaneseq
        %v1504 = vshrl.u32 %v1503, 7
        %v1505 = vsub.s32 0, %v1504
        %v1506 = vrot.slane %v1481, %v1505
        %v1508 = vadd.f32 %v1501, %v1506
        %1509 = vst.msk [vmem:[%s550] sm:$0xff] %vm696, %v1508
        %s1510 = sand.u32 %s374, 1
        %s1511 = scalar_lea.sflag [#allocation6], %s1510
        %s1512 = sand.u32 %s374, 1
        %s1513 = smul.addr %s1512, 8
        %s1514 = scalar_lea.vmem [#allocation12], %s1513
        // Predicated region
        $region101: #{tpu_custom_call.1} parent=79 // pred_check
          %p1515 = pneg %p384
        $region102: #{tpu_custom_call.1} parent=79 // pred_check_branch
          %1517 = sbr.rel (%p1515) target = $region104
        $region103: #{tpu_custom_call.1} parent=79 // pred_region
          %s1519 = ssub.s32 128, 128
          %1520 = vsyncadd %s1511, %s1519
          %s1521 = sadd.s32 %s37, %s36
          %s1522 = smul.addr %s1521, 128
          %s1523 = scalar_lea.hbm %s15, %s1522
          %s1525 = sshll.u32 %s1514, 4
          %s1526 = int_to_ptr.vmem [resolvable:$true] %s1525
          %1528 = dma.vmem_to_hbm [thread:$0]  %s1526, 128, %s1523, %s1511
        $region104: #{tpu_custom_call.1} parent=79 // pred_fallthru
          _
      $region80: #{tpu_custom_call.1} parent=5 // pred_fallthru
        _
      %p1529 = scmp.le.s32.totalorder 2, %s27
      // Predicated region
      $region105: #{tpu_custom_call.1} parent=5 // pred_check
        %p1530 = pneg %p1529
      $region106: #{tpu_custom_call.1} parent=5 // pred_check_branch
        %1532 = sbr.rel (%p1530) target = $region108
      $region107: #{tpu_custom_call.1} parent=5 // pred_region
        %s1533 = ssub.s32 %s27, 2
        // Predicated region
        $region109: #{tpu_custom_call.1} parent=107 // pred_check
          %p1534 = pneg %p390
        $region110: #{tpu_custom_call.1} parent=107 // pred_check_branch
          %1536 = sbr.rel (%p1534) target = $region112
        $region111: #{tpu_custom_call.1} parent=107 // pred_region
          %s1537 = sand.u32 %s375, 1
          %s1538 = scalar_lea.sflag [#allocation6], %s1537
          %s1539 = sand.u32 %s375, 1
          %s1540 = smul.addr %s1539, 8
          %s1541 = scalar_lea.vmem [#allocation12], %s1540
          %1542 = dma.done %s1538, 128
        $region112: #{tpu_custom_call.1} parent=107 // pred_fallthru
          _
      $region108: #{tpu_custom_call.1} parent=5 // pred_fallthru
        _
    $region6: #{tpu_custom_call.1} parent=1 // loop_footer
      %s31 = sadd.s32 1, %s27
    $region7: #{tpu_custom_call.1} parent=1 // loop_footer_branch
      %26 = sbr.rel target = $region3
    $region8: #{tpu_custom_call.1} parent=1 // loop_exit
      _
    %1543 = vsyncpa [#allocation5], 1
    %s1544 = scalar_lea.sflag [#allocation5], 1
    %1545 = vsyncpa %s1544, 1
    %1546 = vsyncpa [#allocation8], 1
    %1547 = vsyncpa [#allocation11], 1
    %1548 = vsyncpa [#allocation6], 1
    %s1549 = scalar_lea.sflag [#allocation6], 1
    %1550 = vsyncpa %s1549, 1

</llo_original>
